<compile_context>
chip_gen: v7x
topology: tpu7x:2x2x1
jax: 0.10.0
libtpu: 0.0.40
codegen_flags: <defaults>
</compile_context>

<pallas_src>
import numpy as np
import jax
import jax.numpy as jnp
from jax.experimental import pallas as pl
from jax.experimental.pallas import tpu as pltpu

# Fixed architecture constants (18x18 single-channel input).
K1 = 336          # conv1 GEMM K: 324 pixels + 1 ones column + 11 zero pad
G1 = 896          # conv1 output group per pool position: 49 pix * 16 ch -> pad to 7*128
N1 = 4 * G1       # 4 pool positions
K2 = G1           # conv2 GEMM K: pooled conv1 map (49*16, zero-padded to 896)
G2 = 128          # conv2 output group per pool position: 24 ch -> pad to 128
N2 = 4 * G2
MAX_TILE_B = 128  # batch tile (sublane) size cap


# --------------------------------------------------------------------------
# Fused Pallas kernel: conv1+pool+relu -> conv2+pool+relu -> fc0+relu -> fc1
# --------------------------------------------------------------------------
def fused_cnn_kernel(x_ref, w1_ref, w2_ref, w0_ref, wf_ref,
                     b2_ref, b0_ref, bf_ref, o_ref):
    # x_ref : (TB, 336)  bf16  raw pixels + ones column (conv1 bias) + pad
    # w1_ref: (336, 3584) bf16 conv1 zero-inflated weight, 4 pool groups of 896
    # w2_ref: (896, 512)  bf16 conv2 zero-inflated weight, 4 pool groups of 128
    # w0_ref: (128, 128)  bf16 fc0   (input rows padded 24 -> 128)
    # wf_ref: (128, 128)  bf16 fc1   (output lanes padded 32 -> 128)
    # b2/b0/bf_ref: (1, 128) f32 biases
    # o_ref : (TB, 128) f32

    # conv1 (+bias via ones column) as one GEMM over the whole image; the 2x2
    # max-pool is an elementwise max of four 128-aligned 896-wide lane groups.
    c1 = jnp.dot(x_ref[...], w1_ref[...], preferred_element_type=jnp.float32)
    y1 = jnp.maximum(jnp.maximum(c1[:, 0 * G1:1 * G1], c1[:, 1 * G1:2 * G1]),
                     jnp.maximum(c1[:, 2 * G1:3 * G1], c1[:, 3 * G1:4 * G1]))
    y1 = jnp.maximum(y1, 0.0).astype(jnp.bfloat16)   # (TB, 896): col = pixel*16 + chan

    # conv2 as one GEMM over the whole pooled conv1 map; max-pool over the four
    # 128-wide lane groups; bias + relu.
    # TODO(synk): nn.Dropout2d here is stochastic; identity (inference).
    c2 = jnp.dot(y1, w2_ref[...], preferred_element_type=jnp.float32)
    h = jnp.maximum(jnp.maximum(c2[:, 0 * G2:1 * G2], c2[:, 1 * G2:2 * G2]),
                    jnp.maximum(c2[:, 2 * G2:3 * G2], c2[:, 3 * G2:4 * G2]))
    h = jnp.maximum(h + b2_ref[...], 0.0).astype(jnp.bfloat16)     # (TB, 128), 24 valid

    # fc0 + relu.  TODO(synk): F.dropout after fc0 is stochastic; identity.
    a = jnp.dot(h, w0_ref[...], preferred_element_type=jnp.float32) + b0_ref[...]
    a = jnp.maximum(a, 0.0).astype(jnp.bfloat16)                    # (TB, 128)

    # fc1 (output padded 32 -> 128 lanes for unmasked full-lane stores).
    o_ref[...] = (jnp.dot(a, wf_ref[...], preferred_element_type=jnp.float32)
                  + bf_ref[...])


# --------------------------------------------------------------------------
# One-time parameter preparation (hoisted out of the forward pass)
# --------------------------------------------------------------------------
def prepare_params(params):
    """Re-layout PyTorch-layout params into the zero-inflated bf16 GEMM operands."""
    w1, b1, w2, b2, w0, bb0, wf1, bf1 = [np.asarray(p, np.float32) for p in params]

    # conv1 inflated: W1[pix_in, p*G1 + q*16 + co] = w1[co,0,kh,kw]
    #   where q = ip*7+jp (pooled pixel), p = 2*ph+pw (pool position) and
    #   pix_in = (2*ip+ph+kh)*18 + (2*jp+pw+kw);  row 324 carries the bias
    #   (added pre-max is valid since it is constant per channel).
    W1 = np.zeros((K1, N1), np.float32)
    for ph in range(2):
        for pw in range(2):
            p = 2 * ph + pw
            for ip in range(7):
                for jp in range(7):
                    c0 = p * G1 + (ip * 7 + jp) * 16
                    for kh in range(5):
                        for kw in range(5):
                            r = (2 * ip + ph + kh) * 18 + (2 * jp + pw + kw)
                            W1[r, c0:c0 + 16] = w1[:, 0, kh, kw]
                    W1[324, c0:c0 + 16] = b1

    # conv2 inflated: W2[q*16 + ci, p*G2 + co] = w2[co, ci, kh, kw]
    #   with q = (ph+kh)*7 + (pw+kw) indexing the pooled conv1 map.
    W2 = np.zeros((K2, N2), np.float32)
    for ph in range(2):
        for pw in range(2):
            p = 2 * ph + pw
            for kh in range(5):
                for kw in range(5):
                    q = (ph + kh) * 7 + (pw + kw)
                    W2[q * 16:(q + 1) * 16, p * G2:p * G2 + 24] = w2[:, :, kh, kw].T

    W0 = np.zeros((128, 128), np.float32); W0[:24, :] = w0.T        # (in, out)
    Wf = np.zeros((128, 128), np.float32); Wf[:, :32] = wf1.T       # pad 32 -> 128 lanes
    b2r = np.zeros((1, 128), np.float32); b2r[0, :24] = b2
    b0r = bb0.reshape(1, 128)
    bfr = np.zeros((1, 128), np.float32); bfr[0, :32] = bf1

    bf16 = jnp.bfloat16
    return (jnp.asarray(W1, bf16), jnp.asarray(W2, bf16),
            jnp.asarray(W0, bf16), jnp.asarray(Wf, bf16),
            jnp.asarray(b2r), jnp.asarray(b0r), jnp.asarray(bfr))


def _round_up(n, m):
    return ((n + m - 1) // m) * m


# --------------------------------------------------------------------------
# Forward pass wrapper
# --------------------------------------------------------------------------
def simple_cnn_forward(x, prepped, *, max_tile_b=MAX_TILE_B):
    """x: (B, 1, 18, 18) float32 NCHW. Returns (B, 32) reps (fc1 output)."""
    w1p, w2p, w0p, wfp, b2r, b0r, bfr = prepped
    B = x.shape[0]
    assert x.shape[1:] == (1, 18, 18), "SimpleCNN expects 1x18x18 inputs"

    tile_b = min(_round_up(B, 8), max_tile_b)   # big tiles, but no waste on tiny batches
    Bp = _round_up(B, tile_b)

    # Raw-image slab: 324 pixels + ones column (carries conv1 bias) + zero pad.
    xf = x.reshape(B, 324)
    slab = jnp.concatenate(
        [xf, jnp.ones((B, 1), xf.dtype), jnp.zeros((B, K1 - 325), xf.dtype)], axis=1)
    if Bp != B:
        slab = jnp.pad(slab, ((0, Bp - B), (0, 0)))
    slab = slab.astype(jnp.bfloat16)                                 # (Bp, 336)

    out = pl.pallas_call(
        fused_cnn_kernel,
        out_shape=jax.ShapeDtypeStruct((Bp, 128), jnp.float32),
        grid=(Bp // tile_b,),
        in_specs=[
            pl.BlockSpec((tile_b, K1), lambda t: (t, 0)),   # image slab (batch tile)
            pl.BlockSpec((K1, N1), lambda t: (0, 0)),       # conv1 inflated weight
            pl.BlockSpec((K2, N2), lambda t: (0, 0)),       # conv2 inflated weight
            pl.BlockSpec((128, 128), lambda t: (0, 0)),     # fc0
            pl.BlockSpec((128, 128), lambda t: (0, 0)),     # fc1 (padded)
            pl.BlockSpec((1, 128), lambda t: (0, 0)),       # b2
            pl.BlockSpec((1, 128), lambda t: (0, 0)),       # b0
            pl.BlockSpec((1, 128), lambda t: (0, 0)),       # bf1
        ],
        out_specs=pl.BlockSpec((tile_b, 128), lambda t: (t, 0)),
        compiler_params=pltpu.CompilerParams(
            dimension_semantics=("parallel",),               # batch tiles -> both TCs (v7x)
            vmem_limit_bytes=32 * 1024 * 1024),
    )(slab, w1p, w2p, w0p, wfp, b2r, b0r, bfr)

    return out[:B, :32]


# --------------------------------------------------------------------------
# Pure-JAX reference (same inference semantics) for verification
# --------------------------------------------------------------------------
def reference_forward(x, params):
    w1, b1, w2, b2, w0, bb0, wf1, bf1 = params
    dn = ('NCHW', 'OIHW', 'NCHW')
    y = jax.lax.conv_general_dilated(x, w1, (1, 1), 'VALID', dimension_numbers=dn)
    y = y + b1[None, :, None, None]
    y = jax.lax.reduce_window(y, -jnp.inf, jax.lax.max, (1, 1, 2, 2), (1, 1, 2, 2), 'VALID')
    y = jnp.maximum(y, 0.0)
    y = jax.lax.conv_general_dilated(y, w2, (1, 1), 'VALID', dimension_numbers=dn)
    y = y + b2[None, :, None, None]
    y = jax.lax.reduce_window(y, -jnp.inf, jax.lax.max, (1, 1, 2, 2), (1, 1, 2, 2), 'VALID')
    y = jnp.maximum(y, 0.0)
    y = y.reshape(x.shape[0], -1)
    y = jnp.maximum(y @ w0.T + bb0, 0.0)
    return y @ wf1.T + bf1


# --------------------------------------------------------------------------
if __name__ == "__main__":
    key = jax.random.PRNGKey(0)
    ks = jax.random.split(key, 9)

    # Deterministic synthetic parameters (PyTorch layouts: OIHW convs, (out,in) linears).
    w1 = 0.10 * jax.random.normal(ks[0], (16, 1, 5, 5), jnp.float32)
    b1 = 0.10 * jax.random.normal(ks[1], (16,), jnp.float32)
    w2 = 0.05 * jax.random.normal(ks[2], (24, 16, 5, 5), jnp.float32)
    b2 = 0.10 * jax.random.normal(ks[3], (24,), jnp.float32)
    w0 = 0.05 * jax.random.normal(ks[4], (128, 24), jnp.float32)
    bb0 = 0.10 * jax.random.normal(ks[5], (128,), jnp.float32)
    wf1 = 0.05 * jax.random.normal(ks[6], (32, 128), jnp.float32)
    bf1 = 0.10 * jax.random.normal(ks[7], (32,), jnp.float32)
    params = (w1, b1, w2, b2, w0, bb0, wf1, bf1)

    # Module requires exactly C x H x W = 1 x 18 x 18; small batch = 2.
    x = jax.random.normal(ks[8], (2, 1, 18, 18), jnp.float32)

    prepped = prepare_params(params)                 # one-time weight re-layout
    fwd = jax.jit(simple_cnn_forward)
    out = jax.block_until_ready(fwd(x, prepped))
    ref = jax.block_until_ready(reference_forward(x, params))

    assert out.shape == (2, 32) and out.dtype == jnp.float32
    assert jnp.allclose(out, ref, rtol=1e-2, atol=1e-2), (
        f"mismatch: max abs err {float(jnp.max(jnp.abs(out - ref)))}"
    )
    print("KERNEL_OK")
</pallas_src>

<mosaic_0001>
module attributes {stable_mosaic.version = 11 : i64} {
  func.func @fused_cnn_kernel(%arg0: i32, %arg1: memref<8x336xbf16, #tpu.memory_space<vmem>>, %arg2: memref<336x3584xbf16, #tpu.memory_space<vmem>>, %arg3: memref<896x512xbf16, #tpu.memory_space<vmem>>, %arg4: memref<128x128xbf16, #tpu.memory_space<vmem>>, %arg5: memref<128x128xbf16, #tpu.memory_space<vmem>>, %arg6: memref<1x128xf32, #tpu.memory_space<vmem>>, %arg7: memref<1x128xf32, #tpu.memory_space<vmem>>, %arg8: memref<1x128xf32, #tpu.memory_space<vmem>>, %arg9: memref<8x128xf32, #tpu.memory_space<vmem>>) attributes {dimension_semantics = [#tpu.dimension_semantics<parallel>], iteration_bounds = array<i64: 1>, scalar_prefetch = 0 : i64, scratch_operands = 0 : i64, tpu.core_type = #tpu.core_type<tc>, window_params = [{transform_indices = @transform_0, window_bounds = array<i64: 8, 336>}, {pipeline_mode = #tpu.pipeline_mode<synchronous>, transform_indices = @transform_1, window_bounds = array<i64: 336, 3584>}, {pipeline_mode = #tpu.pipeline_mode<synchronous>, transform_indices = @transform_2, window_bounds = array<i64: 896, 512>}, {pipeline_mode = #tpu.pipeline_mode<synchronous>, transform_indices = @transform_3, window_bounds = array<i64: 128, 128>}, {pipeline_mode = #tpu.pipeline_mode<synchronous>, transform_indices = @transform_4, window_bounds = array<i64: 128, 128>}, {pipeline_mode = #tpu.pipeline_mode<synchronous>, transform_indices = @transform_5, window_bounds = array<i64: 1, 128>}, {pipeline_mode = #tpu.pipeline_mode<synchronous>, transform_indices = @transform_6, window_bounds = array<i64: 1, 128>}, {pipeline_mode = #tpu.pipeline_mode<synchronous>, transform_indices = @transform_7, window_bounds = array<i64: 1, 128>}, {transform_indices = @transform_8, window_bounds = array<i64: 8, 128>}]} {
    %c0 = arith.constant 0 : index
    %c0_0 = arith.constant 0 : index
    %0 = vector.load %arg1[%c0, %c0_0] : memref<8x336xbf16, #tpu.memory_space<vmem>>, vector<8x336xbf16>
    %c0_1 = arith.constant 0 : index
    %c0_2 = arith.constant 0 : index
    %1 = vector.load %arg2[%c0_1, %c0_2] : memref<336x3584xbf16, #tpu.memory_space<vmem>>, vector<336x3584xbf16>
    %cst = arith.constant dense<0.000000e+00> : vector<8x3584xf32>
    %2 = tpu.matmul %0, %1, %cst {dimension_numbers = #tpu.dot_dimension_numbers<[1], [0], [0], [1], [0, 0, 1, 1], [], []>} : vector<8x336xbf16>, vector<336x3584xbf16>, vector<8x3584xf32> -> vector<8x3584xf32>
    %3 = vector.extract_strided_slice %2 {offsets = [0, 0], sizes = [8, 896], strides = [1, 1]} : vector<8x3584xf32> to vector<8x896xf32>
    %4 = vector.extract_strided_slice %2 {offsets = [0, 896], sizes = [8, 896], strides = [1, 1]} : vector<8x3584xf32> to vector<8x896xf32>
    %5 = arith.maximumf %3, %4 : vector<8x896xf32>
    %6 = vector.extract_strided_slice %2 {offsets = [0, 1792], sizes = [8, 896], strides = [1, 1]} : vector<8x3584xf32> to vector<8x896xf32>
    %7 = vector.extract_strided_slice %2 {offsets = [0, 2688], sizes = [8, 896], strides = [1, 1]} : vector<8x3584xf32> to vector<8x896xf32>
    %8 = arith.maximumf %6, %7 : vector<8x896xf32>
    %9 = arith.maximumf %5, %8 : vector<8x896xf32>
    %cst_3 = arith.constant 0.000000e+00 : f32
    %10 = vector.broadcast %cst_3 : f32 to vector<8x896xf32>
    %11 = arith.maximumf %9, %10 : vector<8x896xf32>
    %12 = arith.truncf %11 : vector<8x896xf32> to vector<8x896xbf16>
    %c0_4 = arith.constant 0 : index
    %c0_5 = arith.constant 0 : index
    %13 = vector.load %arg3[%c0_4, %c0_5] : memref<896x512xbf16, #tpu.memory_space<vmem>>, vector<896x512xbf16>
    %cst_6 = arith.constant dense<0.000000e+00> : vector<8x512xf32>
    %14 = tpu.matmul %12, %13, %cst_6 {dimension_numbers = #tpu.dot_dimension_numbers<[1], [0], [0], [1], [0, 0, 1, 1], [], []>} : vector<8x896xbf16>, vector<896x512xbf16>, vector<8x512xf32> -> vector<8x512xf32>
    %15 = vector.extract_strided_slice %14 {offsets = [0, 0], sizes = [8, 128], strides = [1, 1]} : vector<8x512xf32> to vector<8x128xf32>
    %16 = vector.extract_strided_slice %14 {offsets = [0, 128], sizes = [8, 128], strides = [1, 1]} : vector<8x512xf32> to vector<8x128xf32>
    %17 = arith.maximumf %15, %16 : vector<8x128xf32>
    %18 = vector.extract_strided_slice %14 {offsets = [0, 256], sizes = [8, 128], strides = [1, 1]} : vector<8x512xf32> to vector<8x128xf32>
    %19 = vector.extract_strided_slice %14 {offsets = [0, 384], sizes = [8, 128], strides = [1, 1]} : vector<8x512xf32> to vector<8x128xf32>
    %20 = arith.maximumf %18, %19 : vector<8x128xf32>
    %21 = arith.maximumf %17, %20 : vector<8x128xf32>
    %c0_7 = arith.constant 0 : index
    %c0_8 = arith.constant 0 : index
    %22 = vector.load %arg6[%c0_7, %c0_8] : memref<1x128xf32, #tpu.memory_space<vmem>>, vector<1x128xf32>
    %23 = vector.broadcast %22 : vector<1x128xf32> to vector<8x128xf32>
    %24 = arith.addf %21, %23 : vector<8x128xf32>
    %cst_9 = arith.constant 0.000000e+00 : f32
    %25 = vector.broadcast %cst_9 : f32 to vector<8x128xf32>
    %26 = arith.maximumf %24, %25 : vector<8x128xf32>
    %27 = arith.truncf %26 : vector<8x128xf32> to vector<8x128xbf16>
    %c0_10 = arith.constant 0 : index
    %c0_11 = arith.constant 0 : index
    %28 = vector.load %arg4[%c0_10, %c0_11] : memref<128x128xbf16, #tpu.memory_space<vmem>>, vector<128x128xbf16>
    %cst_12 = arith.constant dense<0.000000e+00> : vector<8x128xf32>
    %29 = tpu.matmul %27, %28, %cst_12 {dimension_numbers = #tpu.dot_dimension_numbers<[1], [0], [0], [1], [0, 0, 1, 1], [], []>} : vector<8x128xbf16>, vector<128x128xbf16>, vector<8x128xf32> -> vector<8x128xf32>
    %c0_13 = arith.constant 0 : index
    %c0_14 = arith.constant 0 : index
    %30 = vector.load %arg7[%c0_13, %c0_14] : memref<1x128xf32, #tpu.memory_space<vmem>>, vector<1x128xf32>
    %31 = vector.broadcast %30 : vector<1x128xf32> to vector<8x128xf32>
    %32 = arith.addf %29, %31 : vector<8x128xf32>
    %cst_15 = arith.constant 0.000000e+00 : f32
    %33 = vector.broadcast %cst_15 : f32 to vector<8x128xf32>
    %34 = arith.maximumf %32, %33 : vector<8x128xf32>
    %35 = arith.truncf %34 : vector<8x128xf32> to vector<8x128xbf16>
    %c0_16 = arith.constant 0 : index
    %c0_17 = arith.constant 0 : index
    %36 = vector.load %arg5[%c0_16, %c0_17] : memref<128x128xbf16, #tpu.memory_space<vmem>>, vector<128x128xbf16>
    %cst_18 = arith.constant dense<0.000000e+00> : vector<8x128xf32>
    %37 = tpu.matmul %35, %36, %cst_18 {dimension_numbers = #tpu.dot_dimension_numbers<[1], [0], [0], [1], [0, 0, 1, 1], [], []>} : vector<8x128xbf16>, vector<128x128xbf16>, vector<8x128xf32> -> vector<8x128xf32>
    %c0_19 = arith.constant 0 : index
    %c0_20 = arith.constant 0 : index
    %38 = vector.load %arg8[%c0_19, %c0_20] : memref<1x128xf32, #tpu.memory_space<vmem>>, vector<1x128xf32>
    %39 = vector.broadcast %38 : vector<1x128xf32> to vector<8x128xf32>
    %40 = arith.addf %37, %39 : vector<8x128xf32>
    %c0_21 = arith.constant 0 : index
    %c0_22 = arith.constant 0 : index
    %41 = vector.load %arg9[%c0_21, %c0_22] : memref<8x128xf32, #tpu.memory_space<vmem>>, vector<8x128xf32>
    tpu.vector_store %arg9[%c0_21, %c0_22], %40 {strides = array<i32>} : memref<8x128xf32, #tpu.memory_space<vmem>>, vector<8x128xf32>,
    return
  }
  func.func @transform_0(%arg0: i32) -> (i32, i32) {
    %c0_i32 = arith.constant 0 : i32
    %c0_i32_0 = arith.constant 0 : i32
    return %arg0, %c0_i32 : i32, i32
  }
  func.func @transform_1(%arg0: i32) -> (i32, i32) {
    %c0_i32 = arith.constant 0 : i32
    %c0_i32_0 = arith.constant 0 : i32
    %c0_i32_1 = arith.constant 0 : i32
    return %c0_i32, %c0_i32_0 : i32, i32
  }
  func.func @transform_2(%arg0: i32) -> (i32, i32) {
    %c0_i32 = arith.constant 0 : i32
    %c0_i32_0 = arith.constant 0 : i32
    %c0_i32_1 = arith.constant 0 : i32
    return %c0_i32, %c0_i32_0 : i32, i32
  }
  func.func @transform_3(%arg0: i32) -> (i32, i32) {
    %c0_i32 = arith.constant 0 : i32
    %c0_i32_0 = arith.constant 0 : i32
    %c0_i32_1 = arith.constant 0 : i32
    return %c0_i32, %c0_i32_0 : i32, i32
  }
  func.func @transform_4(%arg0: i32) -> (i32, i32) {
    %c0_i32 = arith.constant 0 : i32
    %c0_i32_0 = arith.constant 0 : i32
    %c0_i32_1 = arith.constant 0 : i32
    return %c0_i32, %c0_i32_0 : i32, i32
  }
  func.func @transform_5(%arg0: i32) -> (i32, i32) {
    %c0_i32 = arith.constant 0 : i32
    %c0_i32_0 = arith.constant 0 : i32
    %c0_i32_1 = arith.constant 0 : i32
    return %c0_i32, %c0_i32_0 : i32, i32
  }
  func.func @transform_6(%arg0: i32) -> (i32, i32) {
    %c0_i32 = arith.constant 0 : i32
    %c0_i32_0 = arith.constant 0 : i32
    %c0_i32_1 = arith.constant 0 : i32
    return %c0_i32, %c0_i32_0 : i32, i32
  }
  func.func @transform_7(%arg0: i32) -> (i32, i32) {
    %c0_i32 = arith.constant 0 : i32
    %c0_i32_0 = arith.constant 0 : i32
    %c0_i32_1 = arith.constant 0 : i32
    return %c0_i32, %c0_i32_0 : i32, i32
  }
  func.func @transform_8(%arg0: i32) -> (i32, i32) {
    %c0_i32 = arith.constant 0 : i32
    %c0_i32_0 = arith.constant 0 : i32
    return %arg0, %c0_i32 : i32, i32
  }
}

</mosaic_0001>

<llo_original>
// kernel: simple_cnn_forward.1
$region0: #{simple_cnn_forward.1}
  #allocation0 [shape = 'u32[]', space=smem, size = 0x4, offset = 0x4, fixed_abs, tag = 'smem constant byte address 0x4 - core index']
  #allocation1 [shape = 'u32[144,128]{1,0:T(1,128)}', space=vmem, size = 0x12000, scoped, tag = 'internal scratch']
  %s0 = inlined_call_operand.vmem [shape: bf16[8,336], index: 0, kind: input, shape index: {}]
  %s1 = inlined_call_operand.hbm [shape: bf16[336,3584], index: 1, kind: input, shape index: {}]
  %s2 = inlined_call_operand.hbm [shape: bf16[896,512], index: 2, kind: input, shape index: {}]
  %s3 = inlined_call_operand.hbm [shape: bf16[128,128], index: 3, kind: input, shape index: {}]
  %s4 = inlined_call_operand.hbm [shape: bf16[128,128], index: 4, kind: input, shape index: {}]
  %s5 = inlined_call_operand.hbm [shape: f32[1,128], index: 5, kind: input, shape index: {}]
  %s6 = inlined_call_operand.hbm [shape: f32[1,128], index: 6, kind: input, shape index: {}]
  %s7 = inlined_call_operand.hbm [shape: f32[1,128], index: 7, kind: input, shape index: {}]
  %s8 = inlined_call_operand.vmem [shape: f32[8,128], index: 8, kind: output, shape index: {}]
  %s9 = sld [smem:[#allocation0]]
  $region70: #{simple_cnn_forward.1} parent=0
    _
  %s11 = ssub.s32 1, %s9
  %s12 = scalar_select 0, %s11, %s9
  $region1: #{simple_cnn_forward.1} parent=0
    #allocation2 [shape = 'u8[2408448]{0}', space=vmem, size = 0x24c000, scoped, tag = 'input window, operand 1, single buffered']
    #allocation3 [shape = 's32[1]{0}', space=sflag, size = 0x4, scoped, tag = 'scoped memory for simple_cnn_forward.1']
    #allocation4 [shape = 'u8[917504]{0}', space=vmem, size = 0xe0000, scoped, tag = 'input window, operand 2, single buffered']
    #allocation5 [shape = 's32[1]{0}', space=sflag, size = 0x4, scoped, tag = 'scoped memory for simple_cnn_forward.1']
    #allocation6 [shape = 'u8[32768]{0}', space=vmem, size = 0x8000, scoped, tag = 'input window, operand 3, single buffered']
    #allocation7 [shape = 'u8[32768]{0}', space=vmem, size = 0x8000, scoped, tag = 'input window, operand 4, single buffered']
    #allocation8 [shape = 's32[1]{0}', space=sflag, size = 0x4, scoped, tag = 'scoped memory for simple_cnn_forward.1']
    #allocation9 [shape = 'u8[512]{0}', space=vmem, size = 0x400, scoped, tag = 'input window, operand 5, single buffered']
    #allocation10 [shape = 'u8[512]{0}', space=vmem, size = 0x400, scoped, tag = 'input window, operand 6, single buffered']
    #allocation11 [shape = 's32[1]{0}', space=sflag, size = 0x4, scoped, tag = 'scoped memory for simple_cnn_forward.1']
    #allocation12 [shape = 'u8[512]{0}', space=vmem, size = 0x400, scoped, tag = 'input window, operand 7, single buffered']
    %13 = vsyncpa [#allocation3], 0
    %14 = vsyncpa [#allocation5], 0
    %15 = vsyncpa [#allocation8], 0
    %16 = vsyncpa [#allocation11], 0
    // Predicated region
    $region2: #{simple_cnn_forward.1} parent=1 // pred_check
      _
    $region3: #{simple_cnn_forward.1} parent=1 // pred_check_branch
      %18 = sbr.rel (0) target = $region5
    $region4: #{simple_cnn_forward.1} parent=1 // pred_region
      _
    $region5: #{simple_cnn_forward.1} parent=1 // pred_fallthru
      _
    // Predicated region
    $region6: #{simple_cnn_forward.1} parent=1 // pred_check
      _
    $region7: #{simple_cnn_forward.1} parent=1 // pred_check_branch
      %20 = sbr.rel (0) target = $region9
    $region8: #{simple_cnn_forward.1} parent=1 // pred_region
      %s22 = ssub.s32 75264, 75264
      %23 = vsyncadd [#allocation3], %s22
      %s24 = sshll.u32 [#allocation2], 4
      %s25 = int_to_ptr.vmem [resolvable:$true] %s24
      %30 = dma.hbm_to_vmem [thread:$0]  %s1, 75264, %s25, [#allocation3], 1792, 1792, 112
    $region9: #{simple_cnn_forward.1} parent=1 // pred_fallthru
      _
    // Predicated region
    $region10: #{simple_cnn_forward.1} parent=1 // pred_check
      _
    $region11: #{simple_cnn_forward.1} parent=1 // pred_check_branch
      %32 = sbr.rel (0) target = $region13
    $region12: #{simple_cnn_forward.1} parent=1 // pred_region
      %s34 = ssub.s32 28672, 28672
      %35 = vsyncadd [#allocation5], %s34
      %s36 = sshll.u32 [#allocation4], 4
      %s37 = int_to_ptr.vmem [resolvable:$true] %s36
      %42 = dma.hbm_to_vmem [thread:$0]  %s2, 28672, %s37, [#allocation5], 256, 256, 16
    $region13: #{simple_cnn_forward.1} parent=1 // pred_fallthru
      _
    // Predicated region
    $region14: #{simple_cnn_forward.1} parent=1 // pred_check
      _
    $region15: #{simple_cnn_forward.1} parent=1 // pred_check_branch
      %44 = sbr.rel (0) target = $region17
    $region16: #{simple_cnn_forward.1} parent=1 // pred_region
      %s46 = ssub.s32 1024, 1024
      %47 = vsyncadd [#allocation5], %s46
      %s48 = sshll.u32 [#allocation6], 4
      %s49 = int_to_ptr.vmem [resolvable:$true] %s48
      %54 = dma.hbm_to_vmem [thread:$0]  %s3, 1024, %s49, [#allocation5], 64, 64, 4
    $region17: #{simple_cnn_forward.1} parent=1 // pred_fallthru
      _
    // Predicated region
    $region18: #{simple_cnn_forward.1} parent=1 // pred_check
      _
    $region19: #{simple_cnn_forward.1} parent=1 // pred_check_branch
      %56 = sbr.rel (0) target = $region21
    $region20: #{simple_cnn_forward.1} parent=1 // pred_region
      %s58 = ssub.s32 1024, 1024
      %59 = vsyncadd [#allocation8], %s58
      %s60 = sshll.u32 [#allocation7], 4
      %s61 = int_to_ptr.vmem [resolvable:$true] %s60
      %66 = dma.hbm_to_vmem [thread:$0]  %s4, 1024, %s61, [#allocation8], 64, 64, 4
    $region21: #{simple_cnn_forward.1} parent=1 // pred_fallthru
      _
    // Predicated region
    $region22: #{simple_cnn_forward.1} parent=1 // pred_check
      _
    $region23: #{simple_cnn_forward.1} parent=1 // pred_check_branch
      %68 = sbr.rel (0) target = $region25
    $region24: #{simple_cnn_forward.1} parent=1 // pred_region
      %s70 = ssub.s32 16, 16
      %71 = vsyncadd [#allocation8], %s70
      %s73 = sshll.u32 [#allocation9], 4
      %s74 = int_to_ptr.vmem [resolvable:$true] %s73
      %76 = dma.hbm_to_vmem [thread:$0]  %s5, 16, %s74, [#allocation8]
    $region25: #{simple_cnn_forward.1} parent=1 // pred_fallthru
      _
    // Predicated region
    $region26: #{simple_cnn_forward.1} parent=1 // pred_check
      _
    $region27: #{simple_cnn_forward.1} parent=1 // pred_check_branch
      %78 = sbr.rel (0) target = $region29
    $region28: #{simple_cnn_forward.1} parent=1 // pred_region
      %s80 = ssub.s32 16, 16
      %81 = vsyncadd [#allocation11], %s80
      %s83 = sshll.u32 [#allocation10], 4
      %s84 = int_to_ptr.vmem [resolvable:$true] %s83
      %86 = dma.hbm_to_vmem [thread:$0]  %s6, 16, %s84, [#allocation11]
    $region29: #{simple_cnn_forward.1} parent=1 // pred_fallthru
      _
    // Predicated region
    $region30: #{simple_cnn_forward.1} parent=1 // pred_check
      _
    $region31: #{simple_cnn_forward.1} parent=1 // pred_check_branch
      %88 = sbr.rel (0) target = $region33
    $region32: #{simple_cnn_forward.1} parent=1 // pred_region
      %s90 = ssub.s32 16, 16
      %91 = vsyncadd [#allocation11], %s90
      %s93 = sshll.u32 [#allocation12], 4
      %s94 = int_to_ptr.vmem [resolvable:$true] %s93
      %96 = dma.hbm_to_vmem [thread:$0]  %s7, 16, %s94, [#allocation11]
    $region33: #{simple_cnn_forward.1} parent=1 // pred_fallthru
      _
    // Predicated region
    $region34: #{simple_cnn_forward.1} parent=1 // pred_check
      _
    $region35: #{simple_cnn_forward.1} parent=1 // pred_check_branch
      %98 = sbr.rel (0) target = $region37
    $region36: #{simple_cnn_forward.1} parent=1 // pred_region
      %99 = dma.done [#allocation3], 75264
    $region37: #{simple_cnn_forward.1} parent=1 // pred_fallthru
      _
    // Predicated region
    $region38: #{simple_cnn_forward.1} parent=1 // pred_check
      _
    $region39: #{simple_cnn_forward.1} parent=1 // pred_check_branch
      %101 = sbr.rel (0) target = $region41
    $region40: #{simple_cnn_forward.1} parent=1 // pred_region
      %102 = dma.done [#allocation5], 28672
    $region41: #{simple_cnn_forward.1} parent=1 // pred_fallthru
      _
    // Predicated region
    $region42: #{simple_cnn_forward.1} parent=1 // pred_check
      _
    $region43: #{simple_cnn_forward.1} parent=1 // pred_check_branch
      %104 = sbr.rel (0) target = $region45
    $region44: #{simple_cnn_forward.1} parent=1 // pred_region
      %105 = dma.done [#allocation5], 1024
    $region45: #{simple_cnn_forward.1} parent=1 // pred_fallthru
      _
    // Predicated region
    $region46: #{simple_cnn_forward.1} parent=1 // pred_check
      _
    $region47: #{simple_cnn_forward.1} parent=1 // pred_check_branch
      %107 = sbr.rel (0) target = $region49
    $region48: #{simple_cnn_forward.1} parent=1 // pred_region
      %108 = dma.done [#allocation8], 1024
    $region49: #{simple_cnn_forward.1} parent=1 // pred_fallthru
      _
    // Predicated region
    $region50: #{simple_cnn_forward.1} parent=1 // pred_check
      _
    $region51: #{simple_cnn_forward.1} parent=1 // pred_check_branch
      %110 = sbr.rel (0) target = $region53
    $region52: #{simple_cnn_forward.1} parent=1 // pred_region
      %111 = dma.done [#allocation8], 16
    $region53: #{simple_cnn_forward.1} parent=1 // pred_fallthru
      _
    // Predicated region
    $region54: #{simple_cnn_forward.1} parent=1 // pred_check
      _
    $region55: #{simple_cnn_forward.1} parent=1 // pred_check_branch
      %113 = sbr.rel (0) target = $region57
    $region56: #{simple_cnn_forward.1} parent=1 // pred_region
      %114 = dma.done [#allocation11], 16
    $region57: #{simple_cnn_forward.1} parent=1 // pred_fallthru
      _
    // Predicated region
    $region58: #{simple_cnn_forward.1} parent=1 // pred_check
      _
    $region59: #{simple_cnn_forward.1} parent=1 // pred_check_branch
      %116 = sbr.rel (0) target = $region61
    $region60: #{simple_cnn_forward.1} parent=1 // pred_region
      %117 = dma.done [#allocation11], 16
    $region61: #{simple_cnn_forward.1} parent=1 // pred_fallthru
      _
    %v119 = vld [vmem:[%s0] sm:$0xff]
    %v120 = vld [vmem:[%s0 + $0x8] sm:$0xf]
    %v121 = vld [vmem:[#allocation2] sm:$0xff]
    %v122 = vld [vmem:[#allocation2 + $0x8] sm:$0xff]
    %v123 = vld [vmem:[#allocation2 + $0x10] sm:$0xff]
    %v124 = vld [vmem:[#allocation2 + $0x18] sm:$0xff]
    %v125 = vld [vmem:[#allocation2 + $0x20] sm:$0xff]
    %v126 = vld [vmem:[#allocation2 + $0x28] sm:$0xff]
    %v127 = vld [vmem:[#allocation2 + $0x30] sm:$0xff]
    %v128 = vld [vmem:[#allocation2 + $0x38] sm:$0xff]
    %v129 = vld [vmem:[#allocation2 + $0x40] sm:$0xff]
    %v130 = vld [vmem:[#allocation2 + $0x48] sm:$0xff]
    %v131 = vld [vmem:[#allocation2 + $0x50] sm:$0xff]
    %v132 = vld [vmem:[#allocation2 + $0x58] sm:$0xff]
    %v133 = vld [vmem:[#allocation2 + $0x60] sm:$0xff]
    %v134 = vld [vmem:[#allocation2 + $0x68] sm:$0xff]
    %v135 = vld [vmem:[#allocation2 + $0x70] sm:$0xff]
    %v136 = vld [vmem:[#allocation2 + $0x78] sm:$0xff]
    %v137 = vld [vmem:[#allocation2 + $0x80] sm:$0xff]
    %v138 = vld [vmem:[#allocation2 + $0x88] sm:$0xff]
    %v139 = vld [vmem:[#allocation2 + $0x90] sm:$0xff]
    %v140 = vld [vmem:[#allocation2 + $0x98] sm:$0xff]
    %v141 = vld [vmem:[#allocation2 + $0xa0] sm:$0xff]
    %v142 = vld [vmem:[#allocation2 + $0xa8] sm:$0xff]
    %v143 = vld [vmem:[#allocation2 + $0xb0] sm:$0xff]
    %v144 = vld [vmem:[#allocation2 + $0xb8] sm:$0xff]
    %v145 = vld [vmem:[#allocation2 + $0xc0] sm:$0xff]
    %v146 = vld [vmem:[#allocation2 + $0xc8] sm:$0xff]
    %v147 = vld [vmem:[#allocation2 + $0xd0] sm:$0xff]
    %v148 = vld [vmem:[#allocation2 + $0xd8] sm:$0xff]
    %v149 = vld [vmem:[#allocation2 + $0xe0] sm:$0xff]
    %v150 = vld [vmem:[#allocation2 + $0xe8] sm:$0xff]
    %v151 = vld [vmem:[#allocation2 + $0xf0] sm:$0xff]
    %v152 = vld [vmem:[#allocation2 + $0xf8] sm:$0xff]
    %v153 = vld [vmem:[#allocation2 + $0x100] sm:$0xff]
    %v154 = vld [vmem:[#allocation2 + $0x108] sm:$0xff]
    %v155 = vld [vmem:[#allocation2 + $0x110] sm:$0xff]
    %v156 = vld [vmem:[#allocation2 + $0x118] sm:$0xff]
    %v157 = vld [vmem:[#allocation2 + $0x120] sm:$0xff]
    %v158 = vld [vmem:[#allocation2 + $0x128] sm:$0xff]
    %v159 = vld [vmem:[#allocation2 + $0x130] sm:$0xff]
    %v160 = vld [vmem:[#allocation2 + $0x138] sm:$0xff]
    %v161 = vld [vmem:[#allocation2 + $0x140] sm:$0xff]
    %v162 = vld [vmem:[#allocation2 + $0x148] sm:$0xff]
    %v163 = vld [vmem:[#allocation2 + $0x150] sm:$0xff]
    %v164 = vld [vmem:[#allocation2 + $0x158] sm:$0xff]
    %v165 = vld [vmem:[#allocation2 + $0x160] sm:$0xff]
    %v166 = vld [vmem:[#allocation2 + $0x168] sm:$0xff]
    %v167 = vld [vmem:[#allocation2 + $0x170] sm:$0xff]
    %v168 = vld [vmem:[#allocation2 + $0x178] sm:$0xff]
    %v169 = vld [vmem:[#allocation2 + $0x180] sm:$0xff]
    %v170 = vld [vmem:[#allocation2 + $0x188] sm:$0xff]
    %v171 = vld [vmem:[#allocation2 + $0x190] sm:$0xff]
    %v172 = vld [vmem:[#allocation2 + $0x198] sm:$0xff]
    %v173 = vld [vmem:[#allocation2 + $0x1a0] sm:$0xff]
    %v174 = vld [vmem:[#allocation2 + $0x1a8] sm:$0xff]
    %v175 = vld [vmem:[#allocation2 + $0x1b0] sm:$0xff]
    %v176 = vld [vmem:[#allocation2 + $0x1b8] sm:$0xff]
    %v177 = vld [vmem:[#allocation2 + $0x1c0] sm:$0xff]
    %v178 = vld [vmem:[#allocation2 + $0x1c8] sm:$0xff]
    %v179 = vld [vmem:[#allocation2 + $0x1d0] sm:$0xff]
    %v180 = vld [vmem:[#allocation2 + $0x1d8] sm:$0xff]
    %v181 = vld [vmem:[#allocation2 + $0x1e0] sm:$0xff]
    %v182 = vld [vmem:[#allocation2 + $0x1e8] sm:$0xff]
    %v183 = vld [vmem:[#allocation2 + $0x1f0] sm:$0xff]
    %v184 = vld [vmem:[#allocation2 + $0x1f8] sm:$0xff]
    %v185 = vld [vmem:[#allocation2 + $0x200] sm:$0xff]
    %v186 = vld [vmem:[#allocation2 + $0x208] sm:$0xff]
    %v187 = vld [vmem:[#allocation2 + $0x210] sm:$0xff]
    %v188 = vld [vmem:[#allocation2 + $0x218] sm:$0xff]
    %v189 = vld [vmem:[#allocation2 + $0x220] sm:$0xff]
    %v190 = vld [vmem:[#allocation2 + $0x228] sm:$0xff]
    %v191 = vld [vmem:[#allocation2 + $0x230] sm:$0xff]
    %v192 = vld [vmem:[#allocation2 + $0x238] sm:$0xff]
    %v193 = vld [vmem:[#allocation2 + $0x240] sm:$0xff]
    %v194 = vld [vmem:[#allocation2 + $0x248] sm:$0xff]
    %v195 = vld [vmem:[#allocation2 + $0x250] sm:$0xff]
    %v196 = vld [vmem:[#allocation2 + $0x258] sm:$0xff]
    %v197 = vld [vmem:[#allocation2 + $0x260] sm:$0xff]
    %v198 = vld [vmem:[#allocation2 + $0x268] sm:$0xff]
    %v199 = vld [vmem:[#allocation2 + $0x270] sm:$0xff]
    %v200 = vld [vmem:[#allocation2 + $0x278] sm:$0xff]
    %v201 = vld [vmem:[#allocation2 + $0x280] sm:$0xff]
    %v202 = vld [vmem:[#allocation2 + $0x288] sm:$0xff]
    %v203 = vld [vmem:[#allocation2 + $0x290] sm:$0xff]
    %v204 = vld [vmem:[#allocation2 + $0x298] sm:$0xff]
    %v205 = vld [vmem:[#allocation2 + $0x2a0] sm:$0xff]
    %v206 = vld [vmem:[#allocation2 + $0x2a8] sm:$0xff]
    %v207 = vld [vmem:[#allocation2 + $0x2b0] sm:$0xff]
    %v208 = vld [vmem:[#allocation2 + $0x2b8] sm:$0xff]
    %v209 = vld [vmem:[#allocation2 + $0x2c0] sm:$0xff]
    %v210 = vld [vmem:[#allocation2 + $0x2c8] sm:$0xff]
    %v211 = vld [vmem:[#allocation2 + $0x2d0] sm:$0xff]
    %v212 = vld [vmem:[#allocation2 + $0x2d8] sm:$0xff]
    %v213 = vld [vmem:[#allocation2 + $0x2e0] sm:$0xff]
    %v214 = vld [vmem:[#allocation2 + $0x2e8] sm:$0xff]
    %v215 = vld [vmem:[#allocation2 + $0x2f0] sm:$0xff]
    %v216 = vld [vmem:[#allocation2 + $0x2f8] sm:$0xff]
    %v217 = vld [vmem:[#allocation2 + $0x300] sm:$0xff]
    %v218 = vld [vmem:[#allocation2 + $0x308] sm:$0xff]
    %v219 = vld [vmem:[#allocation2 + $0x310] sm:$0xff]
    %v220 = vld [vmem:[#allocation2 + $0x318] sm:$0xff]
    %v221 = vld [vmem:[#allocation2 + $0x320] sm:$0xff]
    %v222 = vld [vmem:[#allocation2 + $0x328] sm:$0xff]
    %v223 = vld [vmem:[#allocation2 + $0x330] sm:$0xff]
    %v224 = vld [vmem:[#allocation2 + $0x338] sm:$0xff]
    %v225 = vld [vmem:[#allocation2 + $0x340] sm:$0xff]
    %v226 = vld [vmem:[#allocation2 + $0x348] sm:$0xff]
    %v227 = vld [vmem:[#allocation2 + $0x350] sm:$0xff]
    %v228 = vld [vmem:[#allocation2 + $0x358] sm:$0xff]
    %v229 = vld [vmem:[#allocation2 + $0x360] sm:$0xff]
    %v230 = vld [vmem:[#allocation2 + $0x368] sm:$0xff]
    %v231 = vld [vmem:[#allocation2 + $0x370] sm:$0xff]
    %v232 = vld [vmem:[#allocation2 + $0x378] sm:$0xff]
    %v233 = vld [vmem:[#allocation2 + $0x380] sm:$0xff]
    %v234 = vld [vmem:[#allocation2 + $0x388] sm:$0xff]
    %v235 = vld [vmem:[#allocation2 + $0x390] sm:$0xff]
    %v236 = vld [vmem:[#allocation2 + $0x398] sm:$0xff]
    %v237 = vld [vmem:[#allocation2 + $0x3a0] sm:$0xff]
    %v238 = vld [vmem:[#allocation2 + $0x3a8] sm:$0xff]
    %v239 = vld [vmem:[#allocation2 + $0x3b0] sm:$0xff]
    %v240 = vld [vmem:[#allocation2 + $0x3b8] sm:$0xff]
    %v241 = vld [vmem:[#allocation2 + $0x3c0] sm:$0xff]
    %v242 = vld [vmem:[#allocation2 + $0x3c8] sm:$0xff]
    %v243 = vld [vmem:[#allocation2 + $0x3d0] sm:$0xff]
    %v244 = vld [vmem:[#allocation2 + $0x3d8] sm:$0xff]
    %v245 = vld [vmem:[#allocation2 + $0x3e0] sm:$0xff]
    %v246 = vld [vmem:[#allocation2 + $0x3e8] sm:$0xff]
    %v247 = vld [vmem:[#allocation2 + $0x3f0] sm:$0xff]
    %v248 = vld [vmem:[#allocation2 + $0x3f8] sm:$0xff]
    %v249 = vld [vmem:[#allocation2 + $0x400] sm:$0xff]
    %v250 = vld [vmem:[#allocation2 + $0x408] sm:$0xff]
    %v251 = vld [vmem:[#allocation2 + $0x410] sm:$0xff]
    %v252 = vld [vmem:[#allocation2 + $0x418] sm:$0xff]
    %v253 = vld [vmem:[#allocation2 + $0x420] sm:$0xff]
    %v254 = vld [vmem:[#allocation2 + $0x428] sm:$0xff]
    %v255 = vld [vmem:[#allocation2 + $0x430] sm:$0xff]
    %v256 = vld [vmem:[#allocation2 + $0x438] sm:$0xff]
    %v257 = vld [vmem:[#allocation2 + $0x440] sm:$0xff]
    %v258 = vld [vmem:[#allocation2 + $0x448] sm:$0xff]
    %v259 = vld [vmem:[#allocation2 + $0x450] sm:$0xff]
    %v260 = vld [vmem:[#allocation2 + $0x458] sm:$0xff]
    %v261 = vld [vmem:[#allocation2 + $0x460] sm:$0xff]
    %v262 = vld [vmem:[#allocation2 + $0x468] sm:$0xff]
    %v263 = vld [vmem:[#allocation2 + $0x470] sm:$0xff]
    %v264 = vld [vmem:[#allocation2 + $0x478] sm:$0xff]
    %v265 = vld [vmem:[#allocation2 + $0x480] sm:$0xff]
    %v266 = vld [vmem:[#allocation2 + $0x488] sm:$0xff]
    %v267 = vld [vmem:[#allocation2 + $0x490] sm:$0xff]
    %v268 = vld [vmem:[#allocation2 + $0x498] sm:$0xff]
    %v269 = vld [vmem:[#allocation2 + $0x4a0] sm:$0xff]
    %v270 = vld [vmem:[#allocation2 + $0x4a8] sm:$0xff]
    %v271 = vld [vmem:[#allocation2 + $0x4b0] sm:$0xff]
    %v272 = vld [vmem:[#allocation2 + $0x4b8] sm:$0xff]
    %v273 = vld [vmem:[#allocation2 + $0x4c0] sm:$0xff]
    %v274 = vld [vmem:[#allocation2 + $0x4c8] sm:$0xff]
    %v275 = vld [vmem:[#allocation2 + $0x4d0] sm:$0xff]
    %v276 = vld [vmem:[#allocation2 + $0x4d8] sm:$0xff]
    %v277 = vld [vmem:[#allocation2 + $0x4e0] sm:$0xff]
    %v278 = vld [vmem:[#allocation2 + $0x4e8] sm:$0xff]
    %v279 = vld [vmem:[#allocation2 + $0x4f0] sm:$0xff]
    %v280 = vld [vmem:[#allocation2 + $0x4f8] sm:$0xff]
    %v281 = vld [vmem:[#allocation2 + $0x500] sm:$0xff]
    %v282 = vld [vmem:[#allocation2 + $0x508] sm:$0xff]
    %v283 = vld [vmem:[#allocation2 + $0x510] sm:$0xff]
    %v284 = vld [vmem:[#allocation2 + $0x518] sm:$0xff]
    %v285 = vld [vmem:[#allocation2 + $0x520] sm:$0xff]
    %v286 = vld [vmem:[#allocation2 + $0x528] sm:$0xff]
    %v287 = vld [vmem:[#allocation2 + $0x530] sm:$0xff]
    %v288 = vld [vmem:[#allocation2 + $0x538] sm:$0xff]
    %v289 = vld [vmem:[#allocation2 + $0x540] sm:$0xff]
    %v290 = vld [vmem:[#allocation2 + $0x548] sm:$0xff]
    %v291 = vld [vmem:[#allocation2 + $0x550] sm:$0xff]
    %v292 = vld [vmem:[#allocation2 + $0x558] sm:$0xff]
    %v293 = vld [vmem:[#allocation2 + $0x560] sm:$0xff]
    %v294 = vld [vmem:[#allocation2 + $0x568] sm:$0xff]
    %v295 = vld [vmem:[#allocation2 + $0x570] sm:$0xff]
    %v296 = vld [vmem:[#allocation2 + $0x578] sm:$0xff]
    %v297 = vld [vmem:[#allocation2 + $0x580] sm:$0xff]
    %v298 = vld [vmem:[#allocation2 + $0x588] sm:$0xff]
    %v299 = vld [vmem:[#allocation2 + $0x590] sm:$0xff]
    %v300 = vld [vmem:[#allocation2 + $0x598] sm:$0xff]
    %v301 = vld [vmem:[#allocation2 + $0x5a0] sm:$0xff]
    %v302 = vld [vmem:[#allocation2 + $0x5a8] sm:$0xff]
    %v303 = vld [vmem:[#allocation2 + $0x5b0] sm:$0xff]
    %v304 = vld [vmem:[#allocation2 + $0x5b8] sm:$0xff]
    %v305 = vld [vmem:[#allocation2 + $0x5c0] sm:$0xff]
    %v306 = vld [vmem:[#allocation2 + $0x5c8] sm:$0xff]
    %v307 = vld [vmem:[#allocation2 + $0x5d0] sm:$0xff]
    %v308 = vld [vmem:[#allocation2 + $0x5d8] sm:$0xff]
    %v309 = vld [vmem:[#allocation2 + $0x5e0] sm:$0xff]
    %v310 = vld [vmem:[#allocation2 + $0x5e8] sm:$0xff]
    %v311 = vld [vmem:[#allocation2 + $0x5f0] sm:$0xff]
    %v312 = vld [vmem:[#allocation2 + $0x5f8] sm:$0xff]
    %v313 = vld [vmem:[#allocation2 + $0x600] sm:$0xff]
    %v314 = vld [vmem:[#allocation2 + $0x608] sm:$0xff]
    %v315 = vld [vmem:[#allocation2 + $0x610] sm:$0xff]
    %v316 = vld [vmem:[#allocation2 + $0x618] sm:$0xff]
    %v317 = vld [vmem:[#allocation2 + $0x620] sm:$0xff]
    %v318 = vld [vmem:[#allocation2 + $0x628] sm:$0xff]
    %v319 = vld [vmem:[#allocation2 + $0x630] sm:$0xff]
    %v320 = vld [vmem:[#allocation2 + $0x638] sm:$0xff]
    %v321 = vld [vmem:[#allocation2 + $0x640] sm:$0xff]
    %v322 = vld [vmem:[#allocation2 + $0x648] sm:$0xff]
    %v323 = vld [vmem:[#allocation2 + $0x650] sm:$0xff]
    %v324 = vld [vmem:[#allocation2 + $0x658] sm:$0xff]
    %v325 = vld [vmem:[#allocation2 + $0x660] sm:$0xff]
    %v326 = vld [vmem:[#allocation2 + $0x668] sm:$0xff]
    %v327 = vld [vmem:[#allocation2 + $0x670] sm:$0xff]
    %v328 = vld [vmem:[#allocation2 + $0x678] sm:$0xff]
    %v329 = vld [vmem:[#allocation2 + $0x680] sm:$0xff]
    %v330 = vld [vmem:[#allocation2 + $0x688] sm:$0xff]
    %v331 = vld [vmem:[#allocation2 + $0x690] sm:$0xff]
    %v332 = vld [vmem:[#allocation2 + $0x698] sm:$0xff]
    %v333 = vld [vmem:[#allocation2 + $0x6a0] sm:$0xff]
    %v334 = vld [vmem:[#allocation2 + $0x6a8] sm:$0xff]
    %v335 = vld [vmem:[#allocation2 + $0x6b0] sm:$0xff]
    %v336 = vld [vmem:[#allocation2 + $0x6b8] sm:$0xff]
    %v337 = vld [vmem:[#allocation2 + $0x6c0] sm:$0xff]
    %v338 = vld [vmem:[#allocation2 + $0x6c8] sm:$0xff]
    %v339 = vld [vmem:[#allocation2 + $0x6d0] sm:$0xff]
    %v340 = vld [vmem:[#allocation2 + $0x6d8] sm:$0xff]
    %v341 = vld [vmem:[#allocation2 + $0x6e0] sm:$0xff]
    %v342 = vld [vmem:[#allocation2 + $0x6e8] sm:$0xff]
    %v343 = vld [vmem:[#allocation2 + $0x6f0] sm:$0xff]
    %v344 = vld [vmem:[#allocation2 + $0x6f8] sm:$0xff]
    %v345 = vld [vmem:[#allocation2 + $0x700] sm:$0xff]
    %v346 = vld [vmem:[#allocation2 + $0x708] sm:$0xff]
    %v347 = vld [vmem:[#allocation2 + $0x710] sm:$0xff]
    %v348 = vld [vmem:[#allocation2 + $0x718] sm:$0xff]
    %v349 = vld [vmem:[#allocation2 + $0x720] sm:$0xff]
    %v350 = vld [vmem:[#allocation2 + $0x728] sm:$0xff]
    %v351 = vld [vmem:[#allocation2 + $0x730] sm:$0xff]
    %v352 = vld [vmem:[#allocation2 + $0x738] sm:$0xff]
    %v353 = vld [vmem:[#allocation2 + $0x740] sm:$0xff]
    %v354 = vld [vmem:[#allocation2 + $0x748] sm:$0xff]
    %v355 = vld [vmem:[#allocation2 + $0x750] sm:$0xff]
    %v356 = vld [vmem:[#allocation2 + $0x758] sm:$0xff]
    %v357 = vld [vmem:[#allocation2 + $0x760] sm:$0xff]
    %v358 = vld [vmem:[#allocation2 + $0x768] sm:$0xff]
    %v359 = vld [vmem:[#allocation2 + $0x770] sm:$0xff]
    %v360 = vld [vmem:[#allocation2 + $0x778] sm:$0xff]
    %v361 = vld [vmem:[#allocation2 + $0x780] sm:$0xff]
    %v362 = vld [vmem:[#allocation2 + $0x788] sm:$0xff]
    %v363 = vld [vmem:[#allocation2 + $0x790] sm:$0xff]
    %v364 = vld [vmem:[#allocation2 + $0x798] sm:$0xff]
    %v365 = vld [vmem:[#allocation2 + $0x7a0] sm:$0xff]
    %v366 = vld [vmem:[#allocation2 + $0x7a8] sm:$0xff]
    %v367 = vld [vmem:[#allocation2 + $0x7b0] sm:$0xff]
    %v368 = vld [vmem:[#allocation2 + $0x7b8] sm:$0xff]
    %v369 = vld [vmem:[#allocation2 + $0x7c0] sm:$0xff]
    %v370 = vld [vmem:[#allocation2 + $0x7c8] sm:$0xff]
    %v371 = vld [vmem:[#allocation2 + $0x7d0] sm:$0xff]
    %v372 = vld [vmem:[#allocation2 + $0x7d8] sm:$0xff]
    %v373 = vld [vmem:[#allocation2 + $0x7e0] sm:$0xff]
    %v374 = vld [vmem:[#allocation2 + $0x7e8] sm:$0xff]
    %v375 = vld [vmem:[#allocation2 + $0x7f0] sm:$0xff]
    %v376 = vld [vmem:[#allocation2 + $0x7f8] sm:$0xff]
    %v377 = vld [vmem:[#allocation2 + $0x800] sm:$0xff]
    %v378 = vld [vmem:[#allocation2 + $0x808] sm:$0xff]
    %v379 = vld [vmem:[#allocation2 + $0x810] sm:$0xff]
    %v380 = vld [vmem:[#allocation2 + $0x818] sm:$0xff]
    %v381 = vld [vmem:[#allocation2 + $0x820] sm:$0xff]
    %v382 = vld [vmem:[#allocation2 + $0x828] sm:$0xff]
    %v383 = vld [vmem:[#allocation2 + $0x830] sm:$0xff]
    %v384 = vld [vmem:[#allocation2 + $0x838] sm:$0xff]
    %v385 = vld [vmem:[#allocation2 + $0x840] sm:$0xff]
    %v386 = vld [vmem:[#allocation2 + $0x848] sm:$0xff]
    %v387 = vld [vmem:[#allocation2 + $0x850] sm:$0xff]
    %v388 = vld [vmem:[#allocation2 + $0x858] sm:$0xff]
    %v389 = vld [vmem:[#allocation2 + $0x860] sm:$0xff]
    %v390 = vld [vmem:[#allocation2 + $0x868] sm:$0xff]
    %v391 = vld [vmem:[#allocation2 + $0x870] sm:$0xff]
    %v392 = vld [vmem:[#allocation2 + $0x878] sm:$0xff]
    %v393 = vld [vmem:[#allocation2 + $0x880] sm:$0xff]
    %v394 = vld [vmem:[#allocation2 + $0x888] sm:$0xff]
    %v395 = vld [vmem:[#allocation2 + $0x890] sm:$0xff]
    %v396 = vld [vmem:[#allocation2 + $0x898] sm:$0xff]
    %v397 = vld [vmem:[#allocation2 + $0x8a0] sm:$0xff]
    %v398 = vld [vmem:[#allocation2 + $0x8a8] sm:$0xff]
    %v399 = vld [vmem:[#allocation2 + $0x8b0] sm:$0xff]
    %v400 = vld [vmem:[#allocation2 + $0x8b8] sm:$0xff]
    %v401 = vld [vmem:[#allocation2 + $0x8c0] sm:$0xff]
    %v402 = vld [vmem:[#allocation2 + $0x8c8] sm:$0xff]
    %v403 = vld [vmem:[#allocation2 + $0x8d0] sm:$0xff]
    %v404 = vld [vmem:[#allocation2 + $0x8d8] sm:$0xff]
    %v405 = vld [vmem:[#allocation2 + $0x8e0] sm:$0xff]
    %v406 = vld [vmem:[#allocation2 + $0x8e8] sm:$0xff]
    %v407 = vld [vmem:[#allocation2 + $0x8f0] sm:$0xff]
    %v408 = vld [vmem:[#allocation2 + $0x8f8] sm:$0xff]
    %v409 = vld [vmem:[#allocation2 + $0x900] sm:$0xff]
    %v410 = vld [vmem:[#allocation2 + $0x908] sm:$0xff]
    %v411 = vld [vmem:[#allocation2 + $0x910] sm:$0xff]
    %v412 = vld [vmem:[#allocation2 + $0x918] sm:$0xff]
    %v413 = vld [vmem:[#allocation2 + $0x920] sm:$0xff]
    %v414 = vld [vmem:[#allocation2 + $0x928] sm:$0xff]
    %v415 = vld [vmem:[#allocation2 + $0x930] sm:$0xff]
    %v416 = vld [vmem:[#allocation2 + $0x938] sm:$0xff]
    %v417 = vld [vmem:[#allocation2 + $0x940] sm:$0xff]
    %v418 = vld [vmem:[#allocation2 + $0x948] sm:$0xff]
    %v419 = vld [vmem:[#allocation2 + $0x950] sm:$0xff]
    %v420 = vld [vmem:[#allocation2 + $0x958] sm:$0xff]
    %v421 = vld [vmem:[#allocation2 + $0x960] sm:$0xff]
    %v422 = vld [vmem:[#allocation2 + $0x968] sm:$0xff]
    %v423 = vld [vmem:[#allocation2 + $0x970] sm:$0xff]
    %v424 = vld [vmem:[#allocation2 + $0x978] sm:$0xff]
    %v425 = vld [vmem:[#allocation2 + $0x980] sm:$0xff]
    %v426 = vld [vmem:[#allocation2 + $0x988] sm:$0xff]
    %v427 = vld [vmem:[#allocation2 + $0x990] sm:$0xff]
    %v428 = vld [vmem:[#allocation2 + $0x998] sm:$0xff]
    %v429 = vld [vmem:[#allocation2 + $0x9a0] sm:$0xff]
    %v430 = vld [vmem:[#allocation2 + $0x9a8] sm:$0xff]
    %v431 = vld [vmem:[#allocation2 + $0x9b0] sm:$0xff]
    %v432 = vld [vmem:[#allocation2 + $0x9b8] sm:$0xff]
    %v433 = vld [vmem:[#allocation2 + $0x9c0] sm:$0xff]
    %v434 = vld [vmem:[#allocation2 + $0x9c8] sm:$0xff]
    %v435 = vld [vmem:[#allocation2 + $0x9d0] sm:$0xff]
    %v436 = vld [vmem:[#allocation2 + $0x9d8] sm:$0xff]
    %v437 = vld [vmem:[#allocation2 + $0x9e0] sm:$0xff]
    %v438 = vld [vmem:[#allocation2 + $0x9e8] sm:$0xff]
    %v439 = vld [vmem:[#allocation2 + $0x9f0] sm:$0xff]
    %v440 = vld [vmem:[#allocation2 + $0x9f8] sm:$0xff]
    %v441 = vld [vmem:[#allocation2 + $0xa00] sm:$0xff]
    %v442 = vld [vmem:[#allocation2 + $0xa08] sm:$0xff]
    %v443 = vld [vmem:[#allocation2 + $0xa10] sm:$0xff]
    %v444 = vld [vmem:[#allocation2 + $0xa18] sm:$0xff]
    %v445 = vld [vmem:[#allocation2 + $0xa20] sm:$0xff]
    %v446 = vld [vmem:[#allocation2 + $0xa28] sm:$0xff]
    %v447 = vld [vmem:[#allocation2 + $0xa30] sm:$0xff]
    %v448 = vld [vmem:[#allocation2 + $0xa38] sm:$0xff]
    %v449 = vld [vmem:[#allocation2 + $0xa40] sm:$0xff]
    %v450 = vld [vmem:[#allocation2 + $0xa48] sm:$0xff]
    %v451 = vld [vmem:[#allocation2 + $0xa50] sm:$0xff]
    %v452 = vld [vmem:[#allocation2 + $0xa58] sm:$0xff]
    %v453 = vld [vmem:[#allocation2 + $0xa60] sm:$0xff]
    %v454 = vld [vmem:[#allocation2 + $0xa68] sm:$0xff]
    %v455 = vld [vmem:[#allocation2 + $0xa70] sm:$0xff]
    %v456 = vld [vmem:[#allocation2 + $0xa78] sm:$0xff]
    %v457 = vld [vmem:[#allocation2 + $0xa80] sm:$0xff]
    %v458 = vld [vmem:[#allocation2 + $0xa88] sm:$0xff]
    %v459 = vld [vmem:[#allocation2 + $0xa90] sm:$0xff]
    %v460 = vld [vmem:[#allocation2 + $0xa98] sm:$0xff]
    %v461 = vld [vmem:[#allocation2 + $0xaa0] sm:$0xff]
    %v462 = vld [vmem:[#allocation2 + $0xaa8] sm:$0xff]
    %v463 = vld [vmem:[#allocation2 + $0xab0] sm:$0xff]
    %v464 = vld [vmem:[#allocation2 + $0xab8] sm:$0xff]
    %v465 = vld [vmem:[#allocation2 + $0xac0] sm:$0xff]
    %v466 = vld [vmem:[#allocation2 + $0xac8] sm:$0xff]
    %v467 = vld [vmem:[#allocation2 + $0xad0] sm:$0xff]
    %v468 = vld [vmem:[#allocation2 + $0xad8] sm:$0xff]
    %v469 = vld [vmem:[#allocation2 + $0xae0] sm:$0xff]
    %v470 = vld [vmem:[#allocation2 + $0xae8] sm:$0xff]
    %v471 = vld [vmem:[#allocation2 + $0xaf0] sm:$0xff]
    %v472 = vld [vmem:[#allocation2 + $0xaf8] sm:$0xff]
    %v473 = vld [vmem:[#allocation2 + $0xb00] sm:$0xff]
    %v474 = vld [vmem:[#allocation2 + $0xb08] sm:$0xff]
    %v475 = vld [vmem:[#allocation2 + $0xb10] sm:$0xff]
    %v476 = vld [vmem:[#allocation2 + $0xb18] sm:$0xff]
    %v477 = vld [vmem:[#allocation2 + $0xb20] sm:$0xff]
    %v478 = vld [vmem:[#allocation2 + $0xb28] sm:$0xff]
    %v479 = vld [vmem:[#allocation2 + $0xb30] sm:$0xff]
    %v480 = vld [vmem:[#allocation2 + $0xb38] sm:$0xff]
    %v481 = vld [vmem:[#allocation2 + $0xb40] sm:$0xff]
    %v482 = vld [vmem:[#allocation2 + $0xb48] sm:$0xff]
    %v483 = vld [vmem:[#allocation2 + $0xb50] sm:$0xff]
    %v484 = vld [vmem:[#allocation2 + $0xb58] sm:$0xff]
    %v485 = vld [vmem:[#allocation2 + $0xb60] sm:$0xff]
    %v486 = vld [vmem:[#allocation2 + $0xb68] sm:$0xff]
    %v487 = vld [vmem:[#allocation2 + $0xb70] sm:$0xff]
    %v488 = vld [vmem:[#allocation2 + $0xb78] sm:$0xff]
    %v489 = vld [vmem:[#allocation2 + $0xb80] sm:$0xff]
    %v490 = vld [vmem:[#allocation2 + $0xb88] sm:$0xff]
    %v491 = vld [vmem:[#allocation2 + $0xb90] sm:$0xff]
    %v492 = vld [vmem:[#allocation2 + $0xb98] sm:$0xff]
    %v493 = vld [vmem:[#allocation2 + $0xba0] sm:$0xff]
    %v494 = vld [vmem:[#allocation2 + $0xba8] sm:$0xff]
    %v495 = vld [vmem:[#allocation2 + $0xbb0] sm:$0xff]
    %v496 = vld [vmem:[#allocation2 + $0xbb8] sm:$0xff]
    %v497 = vld [vmem:[#allocation2 + $0xbc0] sm:$0xff]
    %v498 = vld [vmem:[#allocation2 + $0xbc8] sm:$0xff]
    %v499 = vld [vmem:[#allocation2 + $0xbd0] sm:$0xff]
    %v500 = vld [vmem:[#allocation2 + $0xbd8] sm:$0xff]
    %v501 = vld [vmem:[#allocation2 + $0xbe0] sm:$0xff]
    %v502 = vld [vmem:[#allocation2 + $0xbe8] sm:$0xff]
    %v503 = vld [vmem:[#allocation2 + $0xbf0] sm:$0xff]
    %v504 = vld [vmem:[#allocation2 + $0xbf8] sm:$0xff]
    %v505 = vld [vmem:[#allocation2 + $0xc00] sm:$0xff]
    %v506 = vld [vmem:[#allocation2 + $0xc08] sm:$0xff]
    %v507 = vld [vmem:[#allocation2 + $0xc10] sm:$0xff]
    %v508 = vld [vmem:[#allocation2 + $0xc18] sm:$0xff]
    %v509 = vld [vmem:[#allocation2 + $0xc20] sm:$0xff]
    %v510 = vld [vmem:[#allocation2 + $0xc28] sm:$0xff]
    %v511 = vld [vmem:[#allocation2 + $0xc30] sm:$0xff]
    %v512 = vld [vmem:[#allocation2 + $0xc38] sm:$0xff]
    %v513 = vld [vmem:[#allocation2 + $0xc40] sm:$0xff]
    %v514 = vld [vmem:[#allocation2 + $0xc48] sm:$0xff]
    %v515 = vld [vmem:[#allocation2 + $0xc50] sm:$0xff]
    %v516 = vld [vmem:[#allocation2 + $0xc58] sm:$0xff]
    %v517 = vld [vmem:[#allocation2 + $0xc60] sm:$0xff]
    %v518 = vld [vmem:[#allocation2 + $0xc68] sm:$0xff]
    %v519 = vld [vmem:[#allocation2 + $0xc70] sm:$0xff]
    %v520 = vld [vmem:[#allocation2 + $0xc78] sm:$0xff]
    %v521 = vld [vmem:[#allocation2 + $0xc80] sm:$0xff]
    %v522 = vld [vmem:[#allocation2 + $0xc88] sm:$0xff]
    %v523 = vld [vmem:[#allocation2 + $0xc90] sm:$0xff]
    %v524 = vld [vmem:[#allocation2 + $0xc98] sm:$0xff]
    %v525 = vld [vmem:[#allocation2 + $0xca0] sm:$0xff]
    %v526 = vld [vmem:[#allocation2 + $0xca8] sm:$0xff]
    %v527 = vld [vmem:[#allocation2 + $0xcb0] sm:$0xff]
    %v528 = vld [vmem:[#allocation2 + $0xcb8] sm:$0xff]
    %v529 = vld [vmem:[#allocation2 + $0xcc0] sm:$0xff]
    %v530 = vld [vmem:[#allocation2 + $0xcc8] sm:$0xff]
    %v531 = vld [vmem:[#allocation2 + $0xcd0] sm:$0xff]
    %v532 = vld [vmem:[#allocation2 + $0xcd8] sm:$0xff]
    %v533 = vld [vmem:[#allocation2 + $0xce0] sm:$0xff]
    %v534 = vld [vmem:[#allocation2 + $0xce8] sm:$0xff]
    %v535 = vld [vmem:[#allocation2 + $0xcf0] sm:$0xff]
    %v536 = vld [vmem:[#allocation2 + $0xcf8] sm:$0xff]
    %v537 = vld [vmem:[#allocation2 + $0xd00] sm:$0xff]
    %v538 = vld [vmem:[#allocation2 + $0xd08] sm:$0xff]
    %v539 = vld [vmem:[#allocation2 + $0xd10] sm:$0xff]
    %v540 = vld [vmem:[#allocation2 + $0xd18] sm:$0xff]
    %v541 = vld [vmem:[#allocation2 + $0xd20] sm:$0xff]
    %v542 = vld [vmem:[#allocation2 + $0xd28] sm:$0xff]
    %v543 = vld [vmem:[#allocation2 + $0xd30] sm:$0xff]
    %v544 = vld [vmem:[#allocation2 + $0xd38] sm:$0xff]
    %v545 = vld [vmem:[#allocation2 + $0xd40] sm:$0xff]
    %v546 = vld [vmem:[#allocation2 + $0xd48] sm:$0xff]
    %v547 = vld [vmem:[#allocation2 + $0xd50] sm:$0xff]
    %v548 = vld [vmem:[#allocation2 + $0xd58] sm:$0xff]
    %v549 = vld [vmem:[#allocation2 + $0xd60] sm:$0xff]
    %v550 = vld [vmem:[#allocation2 + $0xd68] sm:$0xff]
    %v551 = vld [vmem:[#allocation2 + $0xd70] sm:$0xff]
    %v552 = vld [vmem:[#allocation2 + $0xd78] sm:$0xff]
    %v553 = vld [vmem:[#allocation2 + $0xd80] sm:$0xff]
    %v554 = vld [vmem:[#allocation2 + $0xd88] sm:$0xff]
    %v555 = vld [vmem:[#allocation2 + $0xd90] sm:$0xff]
    %v556 = vld [vmem:[#allocation2 + $0xd98] sm:$0xff]
    %v557 = vld [vmem:[#allocation2 + $0xda0] sm:$0xff]
    %v558 = vld [vmem:[#allocation2 + $0xda8] sm:$0xff]
    %v559 = vld [vmem:[#allocation2 + $0xdb0] sm:$0xff]
    %v560 = vld [vmem:[#allocation2 + $0xdb8] sm:$0xff]
    %v561 = vld [vmem:[#allocation2 + $0xdc0] sm:$0xff]
    %v562 = vld [vmem:[#allocation2 + $0xdc8] sm:$0xff]
    %v563 = vld [vmem:[#allocation2 + $0xdd0] sm:$0xff]
    %v564 = vld [vmem:[#allocation2 + $0xdd8] sm:$0xff]
    %v565 = vld [vmem:[#allocation2 + $0xde0] sm:$0xff]
    %v566 = vld [vmem:[#allocation2 + $0xde8] sm:$0xff]
    %v567 = vld [vmem:[#allocation2 + $0xdf0] sm:$0xff]
    %v568 = vld [vmem:[#allocation2 + $0xdf8] sm:$0xff]
    %v569 = vld [vmem:[#allocation2 + $0xe00] sm:$0xff]
    %v570 = vld [vmem:[#allocation2 + $0xe08] sm:$0xff]
    %v571 = vld [vmem:[#allocation2 + $0xe10] sm:$0xff]
    %v572 = vld [vmem:[#allocation2 + $0xe18] sm:$0xff]
    %v573 = vld [vmem:[#allocation2 + $0xe20] sm:$0xff]
    %v574 = vld [vmem:[#allocation2 + $0xe28] sm:$0xff]
    %v575 = vld [vmem:[#allocation2 + $0xe30] sm:$0xff]
    %v576 = vld [vmem:[#allocation2 + $0xe38] sm:$0xff]
    %v577 = vld [vmem:[#allocation2 + $0xe40] sm:$0xff]
    %v578 = vld [vmem:[#allocation2 + $0xe48] sm:$0xff]
    %v579 = vld [vmem:[#allocation2 + $0xe50] sm:$0xff]
    %v580 = vld [vmem:[#allocation2 + $0xe58] sm:$0xff]
    %v581 = vld [vmem:[#allocation2 + $0xe60] sm:$0xff]
    %v582 = vld [vmem:[#allocation2 + $0xe68] sm:$0xff]
    %v583 = vld [vmem:[#allocation2 + $0xe70] sm:$0xff]
    %v584 = vld [vmem:[#allocation2 + $0xe78] sm:$0xff]
    %v585 = vld [vmem:[#allocation2 + $0xe80] sm:$0xff]
    %v586 = vld [vmem:[#allocation2 + $0xe88] sm:$0xff]
    %v587 = vld [vmem:[#allocation2 + $0xe90] sm:$0xff]
    %v588 = vld [vmem:[#allocation2 + $0xe98] sm:$0xff]
    %v589 = vld [vmem:[#allocation2 + $0xea0] sm:$0xff]
    %v590 = vld [vmem:[#allocation2 + $0xea8] sm:$0xff]
    %v591 = vld [vmem:[#allocation2 + $0xeb0] sm:$0xff]
    %v592 = vld [vmem:[#allocation2 + $0xeb8] sm:$0xff]
    %v593 = vld [vmem:[#allocation2 + $0xec0] sm:$0xff]
    %v594 = vld [vmem:[#allocation2 + $0xec8] sm:$0xff]
    %v595 = vld [vmem:[#allocation2 + $0xed0] sm:$0xff]
    %v596 = vld [vmem:[#allocation2 + $0xed8] sm:$0xff]
    %v597 = vld [vmem:[#allocation2 + $0xee0] sm:$0xff]
    %v598 = vld [vmem:[#allocation2 + $0xee8] sm:$0xff]
    %v599 = vld [vmem:[#allocation2 + $0xef0] sm:$0xff]
    %v600 = vld [vmem:[#allocation2 + $0xef8] sm:$0xff]
    %v601 = vld [vmem:[#allocation2 + $0xf00] sm:$0xff]
    %v602 = vld [vmem:[#allocation2 + $0xf08] sm:$0xff]
    %v603 = vld [vmem:[#allocation2 + $0xf10] sm:$0xff]
    %v604 = vld [vmem:[#allocation2 + $0xf18] sm:$0xff]
    %v605 = vld [vmem:[#allocation2 + $0xf20] sm:$0xff]
    %v606 = vld [vmem:[#allocation2 + $0xf28] sm:$0xff]
    %v607 = vld [vmem:[#allocation2 + $0xf30] sm:$0xff]
    %v608 = vld [vmem:[#allocation2 + $0xf38] sm:$0xff]
    %v609 = vld [vmem:[#allocation2 + $0xf40] sm:$0xff]
    %v610 = vld [vmem:[#allocation2 + $0xf48] sm:$0xff]
    %v611 = vld [vmem:[#allocation2 + $0xf50] sm:$0xff]
    %v612 = vld [vmem:[#allocation2 + $0xf58] sm:$0xff]
    %v613 = vld [vmem:[#allocation2 + $0xf60] sm:$0xff]
    %v614 = vld [vmem:[#allocation2 + $0xf68] sm:$0xff]
    %v615 = vld [vmem:[#allocation2 + $0xf70] sm:$0xff]
    %v616 = vld [vmem:[#allocation2 + $0xf78] sm:$0xff]
    %v617 = vld [vmem:[#allocation2 + $0xf80] sm:$0xff]
    %v618 = vld [vmem:[#allocation2 + $0xf88] sm:$0xff]
    %v619 = vld [vmem:[#allocation2 + $0xf90] sm:$0xff]
    %v620 = vld [vmem:[#allocation2 + $0xf98] sm:$0xff]
    %v621 = vld [vmem:[#allocation2 + $0xfa0] sm:$0xff]
    %v622 = vld [vmem:[#allocation2 + $0xfa8] sm:$0xff]
    %v623 = vld [vmem:[#allocation2 + $0xfb0] sm:$0xff]
    %v624 = vld [vmem:[#allocation2 + $0xfb8] sm:$0xff]
    %v625 = vld [vmem:[#allocation2 + $0xfc0] sm:$0xff]
    %v626 = vld [vmem:[#allocation2 + $0xfc8] sm:$0xff]
    %v627 = vld [vmem:[#allocation2 + $0xfd0] sm:$0xff]
    %v628 = vld [vmem:[#allocation2 + $0xfd8] sm:$0xff]
    %v629 = vld [vmem:[#allocation2 + $0xfe0] sm:$0xff]
    %v630 = vld [vmem:[#allocation2 + $0xfe8] sm:$0xff]
    %v631 = vld [vmem:[#allocation2 + $0xff0] sm:$0xff]
    %v632 = vld [vmem:[#allocation2 + $0xff8] sm:$0xff]
    %v633 = vld [vmem:[#allocation2 + $0x1000] sm:$0xff]
    %v634 = vld [vmem:[#allocation2 + $0x1008] sm:$0xff]
    %v635 = vld [vmem:[#allocation2 + $0x1010] sm:$0xff]
    %v636 = vld [vmem:[#allocation2 + $0x1018] sm:$0xff]
    %v637 = vld [vmem:[#allocation2 + $0x1020] sm:$0xff]
    %v638 = vld [vmem:[#allocation2 + $0x1028] sm:$0xff]
    %v639 = vld [vmem:[#allocation2 + $0x1030] sm:$0xff]
    %v640 = vld [vmem:[#allocation2 + $0x1038] sm:$0xff]
    %v641 = vld [vmem:[#allocation2 + $0x1040] sm:$0xff]
    %v642 = vld [vmem:[#allocation2 + $0x1048] sm:$0xff]
    %v643 = vld [vmem:[#allocation2 + $0x1050] sm:$0xff]
    %v644 = vld [vmem:[#allocation2 + $0x1058] sm:$0xff]
    %v645 = vld [vmem:[#allocation2 + $0x1060] sm:$0xff]
    %v646 = vld [vmem:[#allocation2 + $0x1068] sm:$0xff]
    %v647 = vld [vmem:[#allocation2 + $0x1070] sm:$0xff]
    %v648 = vld [vmem:[#allocation2 + $0x1078] sm:$0xff]
    %v649 = vld [vmem:[#allocation2 + $0x1080] sm:$0xff]
    %v650 = vld [vmem:[#allocation2 + $0x1088] sm:$0xff]
    %v651 = vld [vmem:[#allocation2 + $0x1090] sm:$0xff]
    %v652 = vld [vmem:[#allocation2 + $0x1098] sm:$0xff]
    %v653 = vld [vmem:[#allocation2 + $0x10a0] sm:$0xff]
    %v654 = vld [vmem:[#allocation2 + $0x10a8] sm:$0xff]
    %v655 = vld [vmem:[#allocation2 + $0x10b0] sm:$0xff]
    %v656 = vld [vmem:[#allocation2 + $0x10b8] sm:$0xff]
    %v657 = vld [vmem:[#allocation2 + $0x10c0] sm:$0xff]
    %v658 = vld [vmem:[#allocation2 + $0x10c8] sm:$0xff]
    %v659 = vld [vmem:[#allocation2 + $0x10d0] sm:$0xff]
    %v660 = vld [vmem:[#allocation2 + $0x10d8] sm:$0xff]
    %v661 = vld [vmem:[#allocation2 + $0x10e0] sm:$0xff]
    %v662 = vld [vmem:[#allocation2 + $0x10e8] sm:$0xff]
    %v663 = vld [vmem:[#allocation2 + $0x10f0] sm:$0xff]
    %v664 = vld [vmem:[#allocation2 + $0x10f8] sm:$0xff]
    %v665 = vld [vmem:[#allocation2 + $0x1100] sm:$0xff]
    %v666 = vld [vmem:[#allocation2 + $0x1108] sm:$0xff]
    %v667 = vld [vmem:[#allocation2 + $0x1110] sm:$0xff]
    %v668 = vld [vmem:[#allocation2 + $0x1118] sm:$0xff]
    %v669 = vld [vmem:[#allocation2 + $0x1120] sm:$0xff]
    %v670 = vld [vmem:[#allocation2 + $0x1128] sm:$0xff]
    %v671 = vld [vmem:[#allocation2 + $0x1130] sm:$0xff]
    %v672 = vld [vmem:[#allocation2 + $0x1138] sm:$0xff]
    %v673 = vld [vmem:[#allocation2 + $0x1140] sm:$0xff]
    %v674 = vld [vmem:[#allocation2 + $0x1148] sm:$0xff]
    %v675 = vld [vmem:[#allocation2 + $0x1150] sm:$0xff]
    %v676 = vld [vmem:[#allocation2 + $0x1158] sm:$0xff]
    %v677 = vld [vmem:[#allocation2 + $0x1160] sm:$0xff]
    %v678 = vld [vmem:[#allocation2 + $0x1168] sm:$0xff]
    %v679 = vld [vmem:[#allocation2 + $0x1170] sm:$0xff]
    %v680 = vld [vmem:[#allocation2 + $0x1178] sm:$0xff]
    %v681 = vld [vmem:[#allocation2 + $0x1180] sm:$0xff]
    %v682 = vld [vmem:[#allocation2 + $0x1188] sm:$0xff]
    %v683 = vld [vmem:[#allocation2 + $0x1190] sm:$0xff]
    %v684 = vld [vmem:[#allocation2 + $0x1198] sm:$0xff]
    %v685 = vld [vmem:[#allocation2 + $0x11a0] sm:$0xff]
    %v686 = vld [vmem:[#allocation2 + $0x11a8] sm:$0xff]
    %v687 = vld [vmem:[#allocation2 + $0x11b0] sm:$0xff]
    %v688 = vld [vmem:[#allocation2 + $0x11b8] sm:$0xff]
    %v689 = vld [vmem:[#allocation2 + $0x11c0] sm:$0xff]
    %v690 = vld [vmem:[#allocation2 + $0x11c8] sm:$0xff]
    %v691 = vld [vmem:[#allocation2 + $0x11d0] sm:$0xff]
    %v692 = vld [vmem:[#allocation2 + $0x11d8] sm:$0xff]
    %v693 = vld [vmem:[#allocation2 + $0x11e0] sm:$0xff]
    %v694 = vld [vmem:[#allocation2 + $0x11e8] sm:$0xff]
    %v695 = vld [vmem:[#allocation2 + $0x11f0] sm:$0xff]
    %v696 = vld [vmem:[#allocation2 + $0x11f8] sm:$0xff]
    %v697 = vld [vmem:[#allocation2 + $0x1200] sm:$0xff]
    %v698 = vld [vmem:[#allocation2 + $0x1208] sm:$0xff]
    %v699 = vld [vmem:[#allocation2 + $0x1210] sm:$0xff]
    %v700 = vld [vmem:[#allocation2 + $0x1218] sm:$0xff]
    %v701 = vld [vmem:[#allocation2 + $0x1220] sm:$0xff]
    %v702 = vld [vmem:[#allocation2 + $0x1228] sm:$0xff]
    %v703 = vld [vmem:[#allocation2 + $0x1230] sm:$0xff]
    %v704 = vld [vmem:[#allocation2 + $0x1238] sm:$0xff]
    %v705 = vld [vmem:[#allocation2 + $0x1240] sm:$0xff]
    %v706 = vld [vmem:[#allocation2 + $0x1248] sm:$0xff]
    %v707 = vld [vmem:[#allocation2 + $0x1250] sm:$0xff]
    %v708 = vld [vmem:[#allocation2 + $0x1258] sm:$0xff]
    %v711 = vunpack.c.l.b16 %v119
    %v712 = vunpack.c.h.b16 %v119
    %v713 = vunpack.c.l.b16 %v120
    %v714 = vpack.c.b16 %v711, %v711
    %v715 = vpack.c.b16 %v712, %v712
    %v716 = vpack.c.b16 %v713, %v713
    %v1307 = vunpack.c.l.b16 %v121
    %v1308 = vunpack.c.h.b16 %v121
    %v1309 = vunpack.c.l.b16 %v122
    %v1310 = vunpack.c.h.b16 %v122
    %v1311 = vunpack.c.l.b16 %v123
    %v1312 = vunpack.c.h.b16 %v123
    %v1313 = vunpack.c.l.b16 %v124
    %v1314 = vunpack.c.h.b16 %v124
    %v1315 = vunpack.c.l.b16 %v125
    %v1316 = vunpack.c.h.b16 %v125
    %v1317 = vunpack.c.l.b16 %v126
    %v1318 = vunpack.c.h.b16 %v126
    %v1319 = vunpack.c.l.b16 %v127
    %v1320 = vunpack.c.h.b16 %v127
    %v1321 = vunpack.c.l.b16 %v128
    %v1322 = vunpack.c.h.b16 %v128
    %v1323 = vunpack.c.l.b16 %v129
    %v1324 = vunpack.c.h.b16 %v129
    %v1325 = vunpack.c.l.b16 %v130
    %v1326 = vunpack.c.h.b16 %v130
    %v1327 = vunpack.c.l.b16 %v131
    %v1328 = vunpack.c.h.b16 %v131
    %v1329 = vunpack.c.l.b16 %v132
    %v1330 = vunpack.c.h.b16 %v132
    %v1331 = vunpack.c.l.b16 %v133
    %v1332 = vunpack.c.h.b16 %v133
    %v1333 = vunpack.c.l.b16 %v134
    %v1334 = vunpack.c.h.b16 %v134
    %v1335 = vunpack.c.l.b16 %v135
    %v1336 = vunpack.c.h.b16 %v135
    %v1337 = vunpack.c.l.b16 %v136
    %v1338 = vunpack.c.h.b16 %v136
    %v1339 = vunpack.c.l.b16 %v137
    %v1340 = vunpack.c.h.b16 %v137
    %v1341 = vunpack.c.l.b16 %v138
    %v1342 = vunpack.c.h.b16 %v138
    %v1343 = vunpack.c.l.b16 %v139
    %v1344 = vunpack.c.h.b16 %v139
    %v1345 = vunpack.c.l.b16 %v140
    %v1346 = vunpack.c.h.b16 %v140
    %v1347 = vunpack.c.l.b16 %v141
    %v1348 = vunpack.c.h.b16 %v141
    %v1349 = vunpack.c.l.b16 %v142
    %v1350 = vunpack.c.h.b16 %v142
    %v1351 = vunpack.c.l.b16 %v143
    %v1352 = vunpack.c.h.b16 %v143
    %v1353 = vunpack.c.l.b16 %v144
    %v1354 = vunpack.c.h.b16 %v144
    %v1355 = vunpack.c.l.b16 %v145
    %v1356 = vunpack.c.h.b16 %v145
    %v1357 = vunpack.c.l.b16 %v146
    %v1358 = vunpack.c.h.b16 %v146
    %v1359 = vunpack.c.l.b16 %v147
    %v1360 = vunpack.c.h.b16 %v147
    %v1361 = vunpack.c.l.b16 %v148
    %v1362 = vunpack.c.h.b16 %v148
    %v1363 = vunpack.c.l.b16 %v149
    %v1364 = vunpack.c.h.b16 %v149
    %v1365 = vunpack.c.l.b16 %v150
    %v1366 = vunpack.c.h.b16 %v150
    %v1367 = vunpack.c.l.b16 %v151
    %v1368 = vunpack.c.h.b16 %v151
    %v1369 = vunpack.c.l.b16 %v152
    %v1370 = vunpack.c.h.b16 %v152
    %v1371 = vunpack.c.l.b16 %v153
    %v1372 = vunpack.c.h.b16 %v153
    %v1373 = vunpack.c.l.b16 %v154
    %v1374 = vunpack.c.h.b16 %v154
    %v1375 = vunpack.c.l.b16 %v155
    %v1376 = vunpack.c.h.b16 %v155
    %v1377 = vunpack.c.l.b16 %v156
    %v1378 = vunpack.c.h.b16 %v156
    %v1379 = vunpack.c.l.b16 %v157
    %v1380 = vunpack.c.h.b16 %v157
    %v1381 = vunpack.c.l.b16 %v158
    %v1382 = vunpack.c.h.b16 %v158
    %v1383 = vunpack.c.l.b16 %v159
    %v1384 = vunpack.c.h.b16 %v159
    %v1385 = vunpack.c.l.b16 %v160
    %v1386 = vunpack.c.h.b16 %v160
    %v1387 = vunpack.c.l.b16 %v161
    %v1388 = vunpack.c.h.b16 %v161
    %v1389 = vunpack.c.l.b16 %v162
    %v1390 = vunpack.c.h.b16 %v162
    %v1391 = vunpack.c.l.b16 %v163
    %v1392 = vunpack.c.h.b16 %v163
    %v1393 = vunpack.c.l.b16 %v164
    %v1394 = vunpack.c.h.b16 %v164
    %v1395 = vunpack.c.l.b16 %v165
    %v1396 = vunpack.c.h.b16 %v165
    %v1397 = vunpack.c.l.b16 %v166
    %v1398 = vunpack.c.h.b16 %v166
    %v1399 = vunpack.c.l.b16 %v167
    %v1400 = vunpack.c.h.b16 %v167
    %v1401 = vunpack.c.l.b16 %v168
    %v1402 = vunpack.c.h.b16 %v168
    %v1403 = vunpack.c.l.b16 %v169
    %v1404 = vunpack.c.h.b16 %v169
    %v1405 = vunpack.c.l.b16 %v170
    %v1406 = vunpack.c.h.b16 %v170
    %v1407 = vunpack.c.l.b16 %v171
    %v1408 = vunpack.c.h.b16 %v171
    %v1409 = vunpack.c.l.b16 %v172
    %v1410 = vunpack.c.h.b16 %v172
    %v1411 = vunpack.c.l.b16 %v173
    %v1412 = vunpack.c.h.b16 %v173
    %v1413 = vunpack.c.l.b16 %v174
    %v1414 = vunpack.c.h.b16 %v174
    %v1415 = vunpack.c.l.b16 %v175
    %v1416 = vunpack.c.h.b16 %v175
    %v1417 = vunpack.c.l.b16 %v176
    %v1418 = vunpack.c.h.b16 %v176
    %v1419 = vunpack.c.l.b16 %v177
    %v1420 = vunpack.c.h.b16 %v177
    %v1421 = vunpack.c.l.b16 %v178
    %v1422 = vunpack.c.h.b16 %v178
    %v1423 = vunpack.c.l.b16 %v179
    %v1424 = vunpack.c.h.b16 %v179
    %v1425 = vunpack.c.l.b16 %v180
    %v1426 = vunpack.c.h.b16 %v180
    %v1427 = vunpack.c.l.b16 %v181
    %v1428 = vunpack.c.h.b16 %v181
    %v1429 = vunpack.c.l.b16 %v182
    %v1430 = vunpack.c.h.b16 %v182
    %v1431 = vunpack.c.l.b16 %v183
    %v1432 = vunpack.c.h.b16 %v183
    %v1433 = vunpack.c.l.b16 %v184
    %v1434 = vunpack.c.h.b16 %v184
    %v1435 = vunpack.c.l.b16 %v185
    %v1436 = vunpack.c.h.b16 %v185
    %v1437 = vunpack.c.l.b16 %v186
    %v1438 = vunpack.c.h.b16 %v186
    %v1439 = vunpack.c.l.b16 %v187
    %v1440 = vunpack.c.h.b16 %v187
    %v1441 = vunpack.c.l.b16 %v188
    %v1442 = vunpack.c.h.b16 %v188
    %v1443 = vunpack.c.l.b16 %v189
    %v1444 = vunpack.c.h.b16 %v189
    %v1445 = vunpack.c.l.b16 %v190
    %v1446 = vunpack.c.h.b16 %v190
    %v1447 = vunpack.c.l.b16 %v191
    %v1448 = vunpack.c.h.b16 %v191
    %v1449 = vunpack.c.l.b16 %v192
    %v1450 = vunpack.c.h.b16 %v192
    %v1451 = vunpack.c.l.b16 %v193
    %v1452 = vunpack.c.h.b16 %v193
    %v1453 = vunpack.c.l.b16 %v194
    %v1454 = vunpack.c.h.b16 %v194
    %v1455 = vunpack.c.l.b16 %v195
    %v1456 = vunpack.c.h.b16 %v195
    %v1457 = vunpack.c.l.b16 %v196
    %v1458 = vunpack.c.h.b16 %v196
    %v1459 = vunpack.c.l.b16 %v197
    %v1460 = vunpack.c.h.b16 %v197
    %v1461 = vunpack.c.l.b16 %v198
    %v1462 = vunpack.c.h.b16 %v198
    %v1463 = vunpack.c.l.b16 %v199
    %v1464 = vunpack.c.h.b16 %v199
    %v1465 = vunpack.c.l.b16 %v200
    %v1466 = vunpack.c.h.b16 %v200
    %v1467 = vunpack.c.l.b16 %v201
    %v1468 = vunpack.c.h.b16 %v201
    %v1469 = vunpack.c.l.b16 %v202
    %v1470 = vunpack.c.h.b16 %v202
    %v1471 = vunpack.c.l.b16 %v203
    %v1472 = vunpack.c.h.b16 %v203
    %v1473 = vunpack.c.l.b16 %v204
    %v1474 = vunpack.c.h.b16 %v204
    %v1475 = vunpack.c.l.b16 %v205
    %v1476 = vunpack.c.h.b16 %v205
    %v1477 = vunpack.c.l.b16 %v206
    %v1478 = vunpack.c.h.b16 %v206
    %v1479 = vunpack.c.l.b16 %v207
    %v1480 = vunpack.c.h.b16 %v207
    %v1481 = vunpack.c.l.b16 %v208
    %v1482 = vunpack.c.h.b16 %v208
    %v1483 = vunpack.c.l.b16 %v209
    %v1484 = vunpack.c.h.b16 %v209
    %v1485 = vunpack.c.l.b16 %v210
    %v1486 = vunpack.c.h.b16 %v210
    %v1487 = vunpack.c.l.b16 %v211
    %v1488 = vunpack.c.h.b16 %v211
    %v1489 = vunpack.c.l.b16 %v212
    %v1490 = vunpack.c.h.b16 %v212
    %v1491 = vunpack.c.l.b16 %v213
    %v1492 = vunpack.c.h.b16 %v213
    %v1493 = vunpack.c.l.b16 %v214
    %v1494 = vunpack.c.h.b16 %v214
    %v1495 = vunpack.c.l.b16 %v215
    %v1496 = vunpack.c.h.b16 %v215
    %v1497 = vunpack.c.l.b16 %v216
    %v1498 = vunpack.c.h.b16 %v216
    %v1499 = vunpack.c.l.b16 %v217
    %v1500 = vunpack.c.h.b16 %v217
    %v1501 = vunpack.c.l.b16 %v218
    %v1502 = vunpack.c.h.b16 %v218
    %v1503 = vunpack.c.l.b16 %v219
    %v1504 = vunpack.c.h.b16 %v219
    %v1505 = vunpack.c.l.b16 %v220
    %v1506 = vunpack.c.h.b16 %v220
    %v1507 = vunpack.c.l.b16 %v221
    %v1508 = vunpack.c.h.b16 %v221
    %v1509 = vunpack.c.l.b16 %v222
    %v1510 = vunpack.c.h.b16 %v222
    %v1511 = vunpack.c.l.b16 %v223
    %v1512 = vunpack.c.h.b16 %v223
    %v1513 = vunpack.c.l.b16 %v224
    %v1514 = vunpack.c.h.b16 %v224
    %v1515 = vunpack.c.l.b16 %v225
    %v1516 = vunpack.c.h.b16 %v225
    %v1517 = vunpack.c.l.b16 %v226
    %v1518 = vunpack.c.h.b16 %v226
    %v1519 = vunpack.c.l.b16 %v227
    %v1520 = vunpack.c.h.b16 %v227
    %v1521 = vunpack.c.l.b16 %v228
    %v1522 = vunpack.c.h.b16 %v228
    %v1523 = vunpack.c.l.b16 %v229
    %v1524 = vunpack.c.h.b16 %v229
    %v1525 = vunpack.c.l.b16 %v230
    %v1526 = vunpack.c.h.b16 %v230
    %v1527 = vunpack.c.l.b16 %v231
    %v1528 = vunpack.c.h.b16 %v231
    %v1529 = vunpack.c.l.b16 %v232
    %v1530 = vunpack.c.h.b16 %v232
    %v1531 = vunpack.c.l.b16 %v233
    %v1532 = vunpack.c.h.b16 %v233
    %v1533 = vunpack.c.l.b16 %v234
    %v1534 = vunpack.c.h.b16 %v234
    %v1535 = vunpack.c.l.b16 %v235
    %v1536 = vunpack.c.h.b16 %v235
    %v1537 = vunpack.c.l.b16 %v236
    %v1538 = vunpack.c.h.b16 %v236
    %v1539 = vunpack.c.l.b16 %v237
    %v1540 = vunpack.c.h.b16 %v237
    %v1541 = vunpack.c.l.b16 %v238
    %v1542 = vunpack.c.h.b16 %v238
    %v1543 = vunpack.c.l.b16 %v239
    %v1544 = vunpack.c.h.b16 %v239
    %v1545 = vunpack.c.l.b16 %v240
    %v1546 = vunpack.c.h.b16 %v240
    %v1547 = vunpack.c.l.b16 %v241
    %v1548 = vunpack.c.h.b16 %v241
    %v1549 = vunpack.c.l.b16 %v242
    %v1550 = vunpack.c.h.b16 %v242
    %v1551 = vunpack.c.l.b16 %v243
    %v1552 = vunpack.c.h.b16 %v243
    %v1553 = vunpack.c.l.b16 %v244
    %v1554 = vunpack.c.h.b16 %v244
    %v1555 = vunpack.c.l.b16 %v245
    %v1556 = vunpack.c.h.b16 %v245
    %v1557 = vunpack.c.l.b16 %v246
    %v1558 = vunpack.c.h.b16 %v246
    %v1559 = vunpack.c.l.b16 %v247
    %v1560 = vunpack.c.h.b16 %v247
    %v1561 = vunpack.c.l.b16 %v248
    %v1562 = vunpack.c.h.b16 %v248
    %v1563 = vunpack.c.l.b16 %v249
    %v1564 = vunpack.c.h.b16 %v249
    %v1565 = vunpack.c.l.b16 %v250
    %v1566 = vunpack.c.h.b16 %v250
    %v1567 = vunpack.c.l.b16 %v251
    %v1568 = vunpack.c.h.b16 %v251
    %v1569 = vunpack.c.l.b16 %v252
    %v1570 = vunpack.c.h.b16 %v252
    %v1571 = vunpack.c.l.b16 %v253
    %v1572 = vunpack.c.h.b16 %v253
    %v1573 = vunpack.c.l.b16 %v254
    %v1574 = vunpack.c.h.b16 %v254
    %v1575 = vunpack.c.l.b16 %v255
    %v1576 = vunpack.c.h.b16 %v255
    %v1577 = vunpack.c.l.b16 %v256
    %v1578 = vunpack.c.h.b16 %v256
    %v1579 = vunpack.c.l.b16 %v257
    %v1580 = vunpack.c.h.b16 %v257
    %v1581 = vunpack.c.l.b16 %v258
    %v1582 = vunpack.c.h.b16 %v258
    %v1583 = vunpack.c.l.b16 %v259
    %v1584 = vunpack.c.h.b16 %v259
    %v1585 = vunpack.c.l.b16 %v260
    %v1586 = vunpack.c.h.b16 %v260
    %v1587 = vunpack.c.l.b16 %v261
    %v1588 = vunpack.c.h.b16 %v261
    %v1589 = vunpack.c.l.b16 %v262
    %v1590 = vunpack.c.h.b16 %v262
    %v1591 = vunpack.c.l.b16 %v263
    %v1592 = vunpack.c.h.b16 %v263
    %v1593 = vunpack.c.l.b16 %v264
    %v1594 = vunpack.c.h.b16 %v264
    %v1595 = vunpack.c.l.b16 %v265
    %v1596 = vunpack.c.h.b16 %v265
    %v1597 = vunpack.c.l.b16 %v266
    %v1598 = vunpack.c.h.b16 %v266
    %v1599 = vunpack.c.l.b16 %v267
    %v1600 = vunpack.c.h.b16 %v267
    %v1601 = vunpack.c.l.b16 %v268
    %v1602 = vunpack.c.h.b16 %v268
    %v1603 = vunpack.c.l.b16 %v269
    %v1604 = vunpack.c.h.b16 %v269
    %v1605 = vunpack.c.l.b16 %v270
    %v1606 = vunpack.c.h.b16 %v270
    %v1607 = vunpack.c.l.b16 %v271
    %v1608 = vunpack.c.h.b16 %v271
    %v1609 = vunpack.c.l.b16 %v272
    %v1610 = vunpack.c.h.b16 %v272
    %v1611 = vunpack.c.l.b16 %v273
    %v1612 = vunpack.c.h.b16 %v273
    %v1613 = vunpack.c.l.b16 %v274
    %v1614 = vunpack.c.h.b16 %v274
    %v1615 = vunpack.c.l.b16 %v275
    %v1616 = vunpack.c.h.b16 %v275
    %v1617 = vunpack.c.l.b16 %v276
    %v1618 = vunpack.c.h.b16 %v276
    %v1619 = vunpack.c.l.b16 %v277
    %v1620 = vunpack.c.h.b16 %v277
    %v1621 = vunpack.c.l.b16 %v278
    %v1622 = vunpack.c.h.b16 %v278
    %v1623 = vunpack.c.l.b16 %v279
    %v1624 = vunpack.c.h.b16 %v279
    %v1625 = vunpack.c.l.b16 %v280
    %v1626 = vunpack.c.h.b16 %v280
    %v1627 = vunpack.c.l.b16 %v281
    %v1628 = vunpack.c.h.b16 %v281
    %v1629 = vunpack.c.l.b16 %v282
    %v1630 = vunpack.c.h.b16 %v282
    %v1631 = vunpack.c.l.b16 %v283
    %v1632 = vunpack.c.h.b16 %v283
    %v1633 = vunpack.c.l.b16 %v284
    %v1634 = vunpack.c.h.b16 %v284
    %v1635 = vunpack.c.l.b16 %v285
    %v1636 = vunpack.c.h.b16 %v285
    %v1637 = vunpack.c.l.b16 %v286
    %v1638 = vunpack.c.h.b16 %v286
    %v1639 = vunpack.c.l.b16 %v287
    %v1640 = vunpack.c.h.b16 %v287
    %v1641 = vunpack.c.l.b16 %v288
    %v1642 = vunpack.c.h.b16 %v288
    %v1643 = vunpack.c.l.b16 %v289
    %v1644 = vunpack.c.h.b16 %v289
    %v1645 = vunpack.c.l.b16 %v290
    %v1646 = vunpack.c.h.b16 %v290
    %v1647 = vunpack.c.l.b16 %v291
    %v1648 = vunpack.c.h.b16 %v291
    %v1649 = vunpack.c.l.b16 %v292
    %v1650 = vunpack.c.h.b16 %v292
    %v1651 = vunpack.c.l.b16 %v293
    %v1652 = vunpack.c.h.b16 %v293
    %v1653 = vunpack.c.l.b16 %v294
    %v1654 = vunpack.c.h.b16 %v294
    %v1655 = vunpack.c.l.b16 %v295
    %v1656 = vunpack.c.h.b16 %v295
    %v1657 = vunpack.c.l.b16 %v296
    %v1658 = vunpack.c.h.b16 %v296
    %v1659 = vunpack.c.l.b16 %v297
    %v1660 = vunpack.c.h.b16 %v297
    %v1661 = vunpack.c.l.b16 %v298
    %v1662 = vunpack.c.h.b16 %v298
    %v1663 = vunpack.c.l.b16 %v299
    %v1664 = vunpack.c.h.b16 %v299
    %v1665 = vunpack.c.l.b16 %v300
    %v1666 = vunpack.c.h.b16 %v300
    %v1667 = vunpack.c.l.b16 %v301
    %v1668 = vunpack.c.h.b16 %v301
    %v1669 = vunpack.c.l.b16 %v302
    %v1670 = vunpack.c.h.b16 %v302
    %v1671 = vunpack.c.l.b16 %v303
    %v1672 = vunpack.c.h.b16 %v303
    %v1673 = vunpack.c.l.b16 %v304
    %v1674 = vunpack.c.h.b16 %v304
    %v1675 = vunpack.c.l.b16 %v305
    %v1676 = vunpack.c.h.b16 %v305
    %v1677 = vunpack.c.l.b16 %v306
    %v1678 = vunpack.c.h.b16 %v306
    %v1679 = vunpack.c.l.b16 %v307
    %v1680 = vunpack.c.h.b16 %v307
    %v1681 = vunpack.c.l.b16 %v308
    %v1682 = vunpack.c.h.b16 %v308
    %v1683 = vunpack.c.l.b16 %v309
    %v1684 = vunpack.c.h.b16 %v309
    %v1685 = vunpack.c.l.b16 %v310
    %v1686 = vunpack.c.h.b16 %v310
    %v1687 = vunpack.c.l.b16 %v311
    %v1688 = vunpack.c.h.b16 %v311
    %v1689 = vunpack.c.l.b16 %v312
    %v1690 = vunpack.c.h.b16 %v312
    %v1691 = vunpack.c.l.b16 %v313
    %v1692 = vunpack.c.h.b16 %v313
    %v1693 = vunpack.c.l.b16 %v314
    %v1694 = vunpack.c.h.b16 %v314
    %v1695 = vunpack.c.l.b16 %v315
    %v1696 = vunpack.c.h.b16 %v315
    %v1697 = vunpack.c.l.b16 %v316
    %v1698 = vunpack.c.h.b16 %v316
    %v1699 = vunpack.c.l.b16 %v317
    %v1700 = vunpack.c.h.b16 %v317
    %v1701 = vunpack.c.l.b16 %v318
    %v1702 = vunpack.c.h.b16 %v318
    %v1703 = vunpack.c.l.b16 %v319
    %v1704 = vunpack.c.h.b16 %v319
    %v1705 = vunpack.c.l.b16 %v320
    %v1706 = vunpack.c.h.b16 %v320
    %v1707 = vunpack.c.l.b16 %v321
    %v1708 = vunpack.c.h.b16 %v321
    %v1709 = vunpack.c.l.b16 %v322
    %v1710 = vunpack.c.h.b16 %v322
    %v1711 = vunpack.c.l.b16 %v323
    %v1712 = vunpack.c.h.b16 %v323
    %v1713 = vunpack.c.l.b16 %v324
    %v1714 = vunpack.c.h.b16 %v324
    %v1715 = vunpack.c.l.b16 %v325
    %v1716 = vunpack.c.h.b16 %v325
    %v1717 = vunpack.c.l.b16 %v326
    %v1718 = vunpack.c.h.b16 %v326
    %v1719 = vunpack.c.l.b16 %v327
    %v1720 = vunpack.c.h.b16 %v327
    %v1721 = vunpack.c.l.b16 %v328
    %v1722 = vunpack.c.h.b16 %v328
    %v1723 = vunpack.c.l.b16 %v329
    %v1724 = vunpack.c.h.b16 %v329
    %v1725 = vunpack.c.l.b16 %v330
    %v1726 = vunpack.c.h.b16 %v330
    %v1727 = vunpack.c.l.b16 %v331
    %v1728 = vunpack.c.h.b16 %v331
    %v1729 = vunpack.c.l.b16 %v332
    %v1730 = vunpack.c.h.b16 %v332
    %v1731 = vunpack.c.l.b16 %v333
    %v1732 = vunpack.c.h.b16 %v333
    %v1733 = vunpack.c.l.b16 %v334
    %v1734 = vunpack.c.h.b16 %v334
    %v1735 = vunpack.c.l.b16 %v335
    %v1736 = vunpack.c.h.b16 %v335
    %v1737 = vunpack.c.l.b16 %v336
    %v1738 = vunpack.c.h.b16 %v336
    %v1739 = vunpack.c.l.b16 %v337
    %v1740 = vunpack.c.h.b16 %v337
    %v1741 = vunpack.c.l.b16 %v338
    %v1742 = vunpack.c.h.b16 %v338
    %v1743 = vunpack.c.l.b16 %v339
    %v1744 = vunpack.c.h.b16 %v339
    %v1745 = vunpack.c.l.b16 %v340
    %v1746 = vunpack.c.h.b16 %v340
    %v1747 = vunpack.c.l.b16 %v341
    %v1748 = vunpack.c.h.b16 %v341
    %v1749 = vunpack.c.l.b16 %v342
    %v1750 = vunpack.c.h.b16 %v342
    %v1751 = vunpack.c.l.b16 %v343
    %v1752 = vunpack.c.h.b16 %v343
    %v1753 = vunpack.c.l.b16 %v344
    %v1754 = vunpack.c.h.b16 %v344
    %v1755 = vunpack.c.l.b16 %v345
    %v1756 = vunpack.c.h.b16 %v345
    %v1757 = vunpack.c.l.b16 %v346
    %v1758 = vunpack.c.h.b16 %v346
    %v1759 = vunpack.c.l.b16 %v347
    %v1760 = vunpack.c.h.b16 %v347
    %v1761 = vunpack.c.l.b16 %v348
    %v1762 = vunpack.c.h.b16 %v348
    %v1763 = vunpack.c.l.b16 %v349
    %v1764 = vunpack.c.h.b16 %v349
    %v1765 = vunpack.c.l.b16 %v350
    %v1766 = vunpack.c.h.b16 %v350
    %v1767 = vunpack.c.l.b16 %v351
    %v1768 = vunpack.c.h.b16 %v351
    %v1769 = vunpack.c.l.b16 %v352
    %v1770 = vunpack.c.h.b16 %v352
    %v1771 = vunpack.c.l.b16 %v353
    %v1772 = vunpack.c.h.b16 %v353
    %v1773 = vunpack.c.l.b16 %v354
    %v1774 = vunpack.c.h.b16 %v354
    %v1775 = vunpack.c.l.b16 %v355
    %v1776 = vunpack.c.h.b16 %v355
    %v1777 = vunpack.c.l.b16 %v356
    %v1778 = vunpack.c.h.b16 %v356
    %v1779 = vunpack.c.l.b16 %v357
    %v1780 = vunpack.c.h.b16 %v357
    %v1781 = vunpack.c.l.b16 %v358
    %v1782 = vunpack.c.h.b16 %v358
    %v1783 = vunpack.c.l.b16 %v359
    %v1784 = vunpack.c.h.b16 %v359
    %v1785 = vunpack.c.l.b16 %v360
    %v1786 = vunpack.c.h.b16 %v360
    %v1787 = vunpack.c.l.b16 %v361
    %v1788 = vunpack.c.h.b16 %v361
    %v1789 = vunpack.c.l.b16 %v362
    %v1790 = vunpack.c.h.b16 %v362
    %v1791 = vunpack.c.l.b16 %v363
    %v1792 = vunpack.c.h.b16 %v363
    %v1793 = vunpack.c.l.b16 %v364
    %v1794 = vunpack.c.h.b16 %v364
    %v1795 = vunpack.c.l.b16 %v365
    %v1796 = vunpack.c.h.b16 %v365
    %v1797 = vunpack.c.l.b16 %v366
    %v1798 = vunpack.c.h.b16 %v366
    %v1799 = vunpack.c.l.b16 %v367
    %v1800 = vunpack.c.h.b16 %v367
    %v1801 = vunpack.c.l.b16 %v368
    %v1802 = vunpack.c.h.b16 %v368
    %v1803 = vunpack.c.l.b16 %v369
    %v1804 = vunpack.c.h.b16 %v369
    %v1805 = vunpack.c.l.b16 %v370
    %v1806 = vunpack.c.h.b16 %v370
    %v1807 = vunpack.c.l.b16 %v371
    %v1808 = vunpack.c.h.b16 %v371
    %v1809 = vunpack.c.l.b16 %v372
    %v1810 = vunpack.c.h.b16 %v372
    %v1811 = vunpack.c.l.b16 %v373
    %v1812 = vunpack.c.h.b16 %v373
    %v1813 = vunpack.c.l.b16 %v374
    %v1814 = vunpack.c.h.b16 %v374
    %v1815 = vunpack.c.l.b16 %v375
    %v1816 = vunpack.c.h.b16 %v375
    %v1817 = vunpack.c.l.b16 %v376
    %v1818 = vunpack.c.h.b16 %v376
    %v1819 = vunpack.c.l.b16 %v377
    %v1820 = vunpack.c.h.b16 %v377
    %v1821 = vunpack.c.l.b16 %v378
    %v1822 = vunpack.c.h.b16 %v378
    %v1823 = vunpack.c.l.b16 %v379
    %v1824 = vunpack.c.h.b16 %v379
    %v1825 = vunpack.c.l.b16 %v380
    %v1826 = vunpack.c.h.b16 %v380
    %v1827 = vunpack.c.l.b16 %v381
    %v1828 = vunpack.c.h.b16 %v381
    %v1829 = vunpack.c.l.b16 %v382
    %v1830 = vunpack.c.h.b16 %v382
    %v1831 = vunpack.c.l.b16 %v383
    %v1832 = vunpack.c.h.b16 %v383
    %v1833 = vunpack.c.l.b16 %v384
    %v1834 = vunpack.c.h.b16 %v384
    %v1835 = vunpack.c.l.b16 %v385
    %v1836 = vunpack.c.h.b16 %v385
    %v1837 = vunpack.c.l.b16 %v386
    %v1838 = vunpack.c.h.b16 %v386
    %v1839 = vunpack.c.l.b16 %v387
    %v1840 = vunpack.c.h.b16 %v387
    %v1841 = vunpack.c.l.b16 %v388
    %v1842 = vunpack.c.h.b16 %v388
    %v1843 = vunpack.c.l.b16 %v389
    %v1844 = vunpack.c.h.b16 %v389
    %v1845 = vunpack.c.l.b16 %v390
    %v1846 = vunpack.c.h.b16 %v390
    %v1847 = vunpack.c.l.b16 %v391
    %v1848 = vunpack.c.h.b16 %v391
    %v1849 = vunpack.c.l.b16 %v392
    %v1850 = vunpack.c.h.b16 %v392
    %v1851 = vunpack.c.l.b16 %v393
    %v1852 = vunpack.c.h.b16 %v393
    %v1853 = vunpack.c.l.b16 %v394
    %v1854 = vunpack.c.h.b16 %v394
    %v1855 = vunpack.c.l.b16 %v395
    %v1856 = vunpack.c.h.b16 %v395
    %v1857 = vunpack.c.l.b16 %v396
    %v1858 = vunpack.c.h.b16 %v396
    %v1859 = vunpack.c.l.b16 %v397
    %v1860 = vunpack.c.h.b16 %v397
    %v1861 = vunpack.c.l.b16 %v398
    %v1862 = vunpack.c.h.b16 %v398
    %v1863 = vunpack.c.l.b16 %v399
    %v1864 = vunpack.c.h.b16 %v399
    %v1865 = vunpack.c.l.b16 %v400
    %v1866 = vunpack.c.h.b16 %v400
    %v1867 = vunpack.c.l.b16 %v401
    %v1868 = vunpack.c.h.b16 %v401
    %v1869 = vunpack.c.l.b16 %v402
    %v1870 = vunpack.c.h.b16 %v402
    %v1871 = vunpack.c.l.b16 %v403
    %v1872 = vunpack.c.h.b16 %v403
    %v1873 = vunpack.c.l.b16 %v404
    %v1874 = vunpack.c.h.b16 %v404
    %v1875 = vunpack.c.l.b16 %v405
    %v1876 = vunpack.c.h.b16 %v405
    %v1877 = vunpack.c.l.b16 %v406
    %v1878 = vunpack.c.h.b16 %v406
    %v1879 = vunpack.c.l.b16 %v407
    %v1880 = vunpack.c.h.b16 %v407
    %v1881 = vunpack.c.l.b16 %v408
    %v1882 = vunpack.c.h.b16 %v408
    %v1883 = vunpack.c.l.b16 %v409
    %v1884 = vunpack.c.h.b16 %v409
    %v1885 = vunpack.c.l.b16 %v410
    %v1886 = vunpack.c.h.b16 %v410
    %v1887 = vunpack.c.l.b16 %v411
    %v1888 = vunpack.c.h.b16 %v411
    %v1889 = vunpack.c.l.b16 %v412
    %v1890 = vunpack.c.h.b16 %v412
    %v1891 = vunpack.c.l.b16 %v413
    %v1892 = vunpack.c.h.b16 %v413
    %v1893 = vunpack.c.l.b16 %v414
    %v1894 = vunpack.c.h.b16 %v414
    %v1895 = vunpack.c.l.b16 %v415
    %v1896 = vunpack.c.h.b16 %v415
    %v1897 = vunpack.c.l.b16 %v416
    %v1898 = vunpack.c.h.b16 %v416
    %v1899 = vunpack.c.l.b16 %v417
    %v1900 = vunpack.c.h.b16 %v417
    %v1901 = vunpack.c.l.b16 %v418
    %v1902 = vunpack.c.h.b16 %v418
    %v1903 = vunpack.c.l.b16 %v419
    %v1904 = vunpack.c.h.b16 %v419
    %v1905 = vunpack.c.l.b16 %v420
    %v1906 = vunpack.c.h.b16 %v420
    %v1907 = vunpack.c.l.b16 %v421
    %v1908 = vunpack.c.h.b16 %v421
    %v1909 = vunpack.c.l.b16 %v422
    %v1910 = vunpack.c.h.b16 %v422
    %v1911 = vunpack.c.l.b16 %v423
    %v1912 = vunpack.c.h.b16 %v423
    %v1913 = vunpack.c.l.b16 %v424
    %v1914 = vunpack.c.h.b16 %v424
    %v1915 = vunpack.c.l.b16 %v425
    %v1916 = vunpack.c.h.b16 %v425
    %v1917 = vunpack.c.l.b16 %v426
    %v1918 = vunpack.c.h.b16 %v426
    %v1919 = vunpack.c.l.b16 %v427
    %v1920 = vunpack.c.h.b16 %v427
    %v1921 = vunpack.c.l.b16 %v428
    %v1922 = vunpack.c.h.b16 %v428
    %v1923 = vunpack.c.l.b16 %v429
    %v1924 = vunpack.c.h.b16 %v429
    %v1925 = vunpack.c.l.b16 %v430
    %v1926 = vunpack.c.h.b16 %v430
    %v1927 = vunpack.c.l.b16 %v431
    %v1928 = vunpack.c.h.b16 %v431
    %v1929 = vunpack.c.l.b16 %v432
    %v1930 = vunpack.c.h.b16 %v432
    %v1931 = vunpack.c.l.b16 %v433
    %v1932 = vunpack.c.h.b16 %v433
    %v1933 = vunpack.c.l.b16 %v434
    %v1934 = vunpack.c.h.b16 %v434
    %v1935 = vunpack.c.l.b16 %v435
    %v1936 = vunpack.c.h.b16 %v435
    %v1937 = vunpack.c.l.b16 %v436
    %v1938 = vunpack.c.h.b16 %v436
    %v1939 = vunpack.c.l.b16 %v437
    %v1940 = vunpack.c.h.b16 %v437
    %v1941 = vunpack.c.l.b16 %v438
    %v1942 = vunpack.c.h.b16 %v438
    %v1943 = vunpack.c.l.b16 %v439
    %v1944 = vunpack.c.h.b16 %v439
    %v1945 = vunpack.c.l.b16 %v440
    %v1946 = vunpack.c.h.b16 %v440
    %v1947 = vunpack.c.l.b16 %v441
    %v1948 = vunpack.c.h.b16 %v441
    %v1949 = vunpack.c.l.b16 %v442
    %v1950 = vunpack.c.h.b16 %v442
    %v1951 = vunpack.c.l.b16 %v443
    %v1952 = vunpack.c.h.b16 %v443
    %v1953 = vunpack.c.l.b16 %v444
    %v1954 = vunpack.c.h.b16 %v444
    %v1955 = vunpack.c.l.b16 %v445
    %v1956 = vunpack.c.h.b16 %v445
    %v1957 = vunpack.c.l.b16 %v446
    %v1958 = vunpack.c.h.b16 %v446
    %v1959 = vunpack.c.l.b16 %v447
    %v1960 = vunpack.c.h.b16 %v447
    %v1961 = vunpack.c.l.b16 %v448
    %v1962 = vunpack.c.h.b16 %v448
    %v1963 = vunpack.c.l.b16 %v449
    %v1964 = vunpack.c.h.b16 %v449
    %v1965 = vunpack.c.l.b16 %v450
    %v1966 = vunpack.c.h.b16 %v450
    %v1967 = vunpack.c.l.b16 %v451
    %v1968 = vunpack.c.h.b16 %v451
    %v1969 = vunpack.c.l.b16 %v452
    %v1970 = vunpack.c.h.b16 %v452
    %v1971 = vunpack.c.l.b16 %v453
    %v1972 = vunpack.c.h.b16 %v453
    %v1973 = vunpack.c.l.b16 %v454
    %v1974 = vunpack.c.h.b16 %v454
    %v1975 = vunpack.c.l.b16 %v455
    %v1976 = vunpack.c.h.b16 %v455
    %v1977 = vunpack.c.l.b16 %v456
    %v1978 = vunpack.c.h.b16 %v456
    %v1979 = vunpack.c.l.b16 %v457
    %v1980 = vunpack.c.h.b16 %v457
    %v1981 = vunpack.c.l.b16 %v458
    %v1982 = vunpack.c.h.b16 %v458
    %v1983 = vunpack.c.l.b16 %v459
    %v1984 = vunpack.c.h.b16 %v459
    %v1985 = vunpack.c.l.b16 %v460
    %v1986 = vunpack.c.h.b16 %v460
    %v1987 = vunpack.c.l.b16 %v461
    %v1988 = vunpack.c.h.b16 %v461
    %v1989 = vunpack.c.l.b16 %v462
    %v1990 = vunpack.c.h.b16 %v462
    %v1991 = vunpack.c.l.b16 %v463
    %v1992 = vunpack.c.h.b16 %v463
    %v1993 = vunpack.c.l.b16 %v464
    %v1994 = vunpack.c.h.b16 %v464
    %v1995 = vunpack.c.l.b16 %v465
    %v1996 = vunpack.c.h.b16 %v465
    %v1997 = vunpack.c.l.b16 %v466
    %v1998 = vunpack.c.h.b16 %v466
    %v1999 = vunpack.c.l.b16 %v467
    %v2000 = vunpack.c.h.b16 %v467
    %v2001 = vunpack.c.l.b16 %v468
    %v2002 = vunpack.c.h.b16 %v468
    %v2003 = vunpack.c.l.b16 %v469
    %v2004 = vunpack.c.h.b16 %v469
    %v2005 = vunpack.c.l.b16 %v470
    %v2006 = vunpack.c.h.b16 %v470
    %v2007 = vunpack.c.l.b16 %v471
    %v2008 = vunpack.c.h.b16 %v471
    %v2009 = vunpack.c.l.b16 %v472
    %v2010 = vunpack.c.h.b16 %v472
    %v2011 = vunpack.c.l.b16 %v473
    %v2012 = vunpack.c.h.b16 %v473
    %v2013 = vunpack.c.l.b16 %v474
    %v2014 = vunpack.c.h.b16 %v474
    %v2015 = vunpack.c.l.b16 %v475
    %v2016 = vunpack.c.h.b16 %v475
    %v2017 = vunpack.c.l.b16 %v476
    %v2018 = vunpack.c.h.b16 %v476
    %v2019 = vunpack.c.l.b16 %v477
    %v2020 = vunpack.c.h.b16 %v477
    %v2021 = vunpack.c.l.b16 %v478
    %v2022 = vunpack.c.h.b16 %v478
    %v2023 = vunpack.c.l.b16 %v479
    %v2024 = vunpack.c.h.b16 %v479
    %v2025 = vunpack.c.l.b16 %v480
    %v2026 = vunpack.c.h.b16 %v480
    %v2027 = vunpack.c.l.b16 %v481
    %v2028 = vunpack.c.h.b16 %v481
    %v2029 = vunpack.c.l.b16 %v482
    %v2030 = vunpack.c.h.b16 %v482
    %v2031 = vunpack.c.l.b16 %v483
    %v2032 = vunpack.c.h.b16 %v483
    %v2033 = vunpack.c.l.b16 %v484
    %v2034 = vunpack.c.h.b16 %v484
    %v2035 = vunpack.c.l.b16 %v485
    %v2036 = vunpack.c.h.b16 %v485
    %v2037 = vunpack.c.l.b16 %v486
    %v2038 = vunpack.c.h.b16 %v486
    %v2039 = vunpack.c.l.b16 %v487
    %v2040 = vunpack.c.h.b16 %v487
    %v2041 = vunpack.c.l.b16 %v488
    %v2042 = vunpack.c.h.b16 %v488
    %v2043 = vunpack.c.l.b16 %v489
    %v2044 = vunpack.c.h.b16 %v489
    %v2045 = vunpack.c.l.b16 %v490
    %v2046 = vunpack.c.h.b16 %v490
    %v2047 = vunpack.c.l.b16 %v491
    %v2048 = vunpack.c.h.b16 %v491
    %v2049 = vunpack.c.l.b16 %v492
    %v2050 = vunpack.c.h.b16 %v492
    %v2051 = vunpack.c.l.b16 %v493
    %v2052 = vunpack.c.h.b16 %v493
    %v2053 = vunpack.c.l.b16 %v494
    %v2054 = vunpack.c.h.b16 %v494
    %v2055 = vunpack.c.l.b16 %v495
    %v2056 = vunpack.c.h.b16 %v495
    %v2057 = vunpack.c.l.b16 %v496
    %v2058 = vunpack.c.h.b16 %v496
    %v2059 = vunpack.c.l.b16 %v497
    %v2060 = vunpack.c.h.b16 %v497
    %v2061 = vunpack.c.l.b16 %v498
    %v2062 = vunpack.c.h.b16 %v498
    %v2063 = vunpack.c.l.b16 %v499
    %v2064 = vunpack.c.h.b16 %v499
    %v2065 = vunpack.c.l.b16 %v500
    %v2066 = vunpack.c.h.b16 %v500
    %v2067 = vunpack.c.l.b16 %v501
    %v2068 = vunpack.c.h.b16 %v501
    %v2069 = vunpack.c.l.b16 %v502
    %v2070 = vunpack.c.h.b16 %v502
    %v2071 = vunpack.c.l.b16 %v503
    %v2072 = vunpack.c.h.b16 %v503
    %v2073 = vunpack.c.l.b16 %v504
    %v2074 = vunpack.c.h.b16 %v504
    %v2075 = vunpack.c.l.b16 %v505
    %v2076 = vunpack.c.h.b16 %v505
    %v2077 = vunpack.c.l.b16 %v506
    %v2078 = vunpack.c.h.b16 %v506
    %v2079 = vunpack.c.l.b16 %v507
    %v2080 = vunpack.c.h.b16 %v507
    %v2081 = vunpack.c.l.b16 %v508
    %v2082 = vunpack.c.h.b16 %v508
    %v2083 = vunpack.c.l.b16 %v509
    %v2084 = vunpack.c.h.b16 %v509
    %v2085 = vunpack.c.l.b16 %v510
    %v2086 = vunpack.c.h.b16 %v510
    %v2087 = vunpack.c.l.b16 %v511
    %v2088 = vunpack.c.h.b16 %v511
    %v2089 = vunpack.c.l.b16 %v512
    %v2090 = vunpack.c.h.b16 %v512
    %v2091 = vunpack.c.l.b16 %v513
    %v2092 = vunpack.c.h.b16 %v513
    %v2093 = vunpack.c.l.b16 %v514
    %v2094 = vunpack.c.h.b16 %v514
    %v2095 = vunpack.c.l.b16 %v515
    %v2096 = vunpack.c.h.b16 %v515
    %v2097 = vunpack.c.l.b16 %v516
    %v2098 = vunpack.c.h.b16 %v516
    %v2099 = vunpack.c.l.b16 %v517
    %v2100 = vunpack.c.h.b16 %v517
    %v2101 = vunpack.c.l.b16 %v518
    %v2102 = vunpack.c.h.b16 %v518
    %v2103 = vunpack.c.l.b16 %v519
    %v2104 = vunpack.c.h.b16 %v519
    %v2105 = vunpack.c.l.b16 %v520
    %v2106 = vunpack.c.h.b16 %v520
    %v2107 = vunpack.c.l.b16 %v521
    %v2108 = vunpack.c.h.b16 %v521
    %v2109 = vunpack.c.l.b16 %v522
    %v2110 = vunpack.c.h.b16 %v522
    %v2111 = vunpack.c.l.b16 %v523
    %v2112 = vunpack.c.h.b16 %v523
    %v2113 = vunpack.c.l.b16 %v524
    %v2114 = vunpack.c.h.b16 %v524
    %v2115 = vunpack.c.l.b16 %v525
    %v2116 = vunpack.c.h.b16 %v525
    %v2117 = vunpack.c.l.b16 %v526
    %v2118 = vunpack.c.h.b16 %v526
    %v2119 = vunpack.c.l.b16 %v527
    %v2120 = vunpack.c.h.b16 %v527
    %v2121 = vunpack.c.l.b16 %v528
    %v2122 = vunpack.c.h.b16 %v528
    %v2123 = vunpack.c.l.b16 %v529
    %v2124 = vunpack.c.h.b16 %v529
    %v2125 = vunpack.c.l.b16 %v530
    %v2126 = vunpack.c.h.b16 %v530
    %v2127 = vunpack.c.l.b16 %v531
    %v2128 = vunpack.c.h.b16 %v531
    %v2129 = vunpack.c.l.b16 %v532
    %v2130 = vunpack.c.h.b16 %v532
    %v2131 = vunpack.c.l.b16 %v533
    %v2132 = vunpack.c.h.b16 %v533
    %v2133 = vunpack.c.l.b16 %v534
    %v2134 = vunpack.c.h.b16 %v534
    %v2135 = vunpack.c.l.b16 %v535
    %v2136 = vunpack.c.h.b16 %v535
    %v2137 = vunpack.c.l.b16 %v536
    %v2138 = vunpack.c.h.b16 %v536
    %v2139 = vunpack.c.l.b16 %v537
    %v2140 = vunpack.c.h.b16 %v537
    %v2141 = vunpack.c.l.b16 %v538
    %v2142 = vunpack.c.h.b16 %v538
    %v2143 = vunpack.c.l.b16 %v539
    %v2144 = vunpack.c.h.b16 %v539
    %v2145 = vunpack.c.l.b16 %v540
    %v2146 = vunpack.c.h.b16 %v540
    %v2147 = vunpack.c.l.b16 %v541
    %v2148 = vunpack.c.h.b16 %v541
    %v2149 = vunpack.c.l.b16 %v542
    %v2150 = vunpack.c.h.b16 %v542
    %v2151 = vunpack.c.l.b16 %v543
    %v2152 = vunpack.c.h.b16 %v543
    %v2153 = vunpack.c.l.b16 %v544
    %v2154 = vunpack.c.h.b16 %v544
    %v2155 = vunpack.c.l.b16 %v545
    %v2156 = vunpack.c.h.b16 %v545
    %v2157 = vunpack.c.l.b16 %v546
    %v2158 = vunpack.c.h.b16 %v546
    %v2159 = vunpack.c.l.b16 %v547
    %v2160 = vunpack.c.h.b16 %v547
    %v2161 = vunpack.c.l.b16 %v548
    %v2162 = vunpack.c.h.b16 %v548
    %v2163 = vunpack.c.l.b16 %v549
    %v2164 = vunpack.c.h.b16 %v549
    %v2165 = vunpack.c.l.b16 %v550
    %v2166 = vunpack.c.h.b16 %v550
    %v2167 = vunpack.c.l.b16 %v551
    %v2168 = vunpack.c.h.b16 %v551
    %v2169 = vunpack.c.l.b16 %v552
    %v2170 = vunpack.c.h.b16 %v552
    %v2171 = vunpack.c.l.b16 %v553
    %v2172 = vunpack.c.h.b16 %v553
    %v2173 = vunpack.c.l.b16 %v554
    %v2174 = vunpack.c.h.b16 %v554
    %v2175 = vunpack.c.l.b16 %v555
    %v2176 = vunpack.c.h.b16 %v555
    %v2177 = vunpack.c.l.b16 %v556
    %v2178 = vunpack.c.h.b16 %v556
    %v2179 = vunpack.c.l.b16 %v557
    %v2180 = vunpack.c.h.b16 %v557
    %v2181 = vunpack.c.l.b16 %v558
    %v2182 = vunpack.c.h.b16 %v558
    %v2183 = vunpack.c.l.b16 %v559
    %v2184 = vunpack.c.h.b16 %v559
    %v2185 = vunpack.c.l.b16 %v560
    %v2186 = vunpack.c.h.b16 %v560
    %v2187 = vunpack.c.l.b16 %v561
    %v2188 = vunpack.c.h.b16 %v561
    %v2189 = vunpack.c.l.b16 %v562
    %v2190 = vunpack.c.h.b16 %v562
    %v2191 = vunpack.c.l.b16 %v563
    %v2192 = vunpack.c.h.b16 %v563
    %v2193 = vunpack.c.l.b16 %v564
    %v2194 = vunpack.c.h.b16 %v564
    %v2195 = vunpack.c.l.b16 %v565
    %v2196 = vunpack.c.h.b16 %v565
    %v2197 = vunpack.c.l.b16 %v566
    %v2198 = vunpack.c.h.b16 %v566
    %v2199 = vunpack.c.l.b16 %v567
    %v2200 = vunpack.c.h.b16 %v567
    %v2201 = vunpack.c.l.b16 %v568
    %v2202 = vunpack.c.h.b16 %v568
    %v2203 = vunpack.c.l.b16 %v569
    %v2204 = vunpack.c.h.b16 %v569
    %v2205 = vunpack.c.l.b16 %v570
    %v2206 = vunpack.c.h.b16 %v570
    %v2207 = vunpack.c.l.b16 %v571
    %v2208 = vunpack.c.h.b16 %v571
    %v2209 = vunpack.c.l.b16 %v572
    %v2210 = vunpack.c.h.b16 %v572
    %v2211 = vunpack.c.l.b16 %v573
    %v2212 = vunpack.c.h.b16 %v573
    %v2213 = vunpack.c.l.b16 %v574
    %v2214 = vunpack.c.h.b16 %v574
    %v2215 = vunpack.c.l.b16 %v575
    %v2216 = vunpack.c.h.b16 %v575
    %v2217 = vunpack.c.l.b16 %v576
    %v2218 = vunpack.c.h.b16 %v576
    %v2219 = vunpack.c.l.b16 %v577
    %v2220 = vunpack.c.h.b16 %v577
    %v2221 = vunpack.c.l.b16 %v578
    %v2222 = vunpack.c.h.b16 %v578
    %v2223 = vunpack.c.l.b16 %v579
    %v2224 = vunpack.c.h.b16 %v579
    %v2225 = vunpack.c.l.b16 %v580
    %v2226 = vunpack.c.h.b16 %v580
    %v2227 = vunpack.c.l.b16 %v581
    %v2228 = vunpack.c.h.b16 %v581
    %v2229 = vunpack.c.l.b16 %v582
    %v2230 = vunpack.c.h.b16 %v582
    %v2231 = vunpack.c.l.b16 %v583
    %v2232 = vunpack.c.h.b16 %v583
    %v2233 = vunpack.c.l.b16 %v584
    %v2234 = vunpack.c.h.b16 %v584
    %v2235 = vunpack.c.l.b16 %v585
    %v2236 = vunpack.c.h.b16 %v585
    %v2237 = vunpack.c.l.b16 %v586
    %v2238 = vunpack.c.h.b16 %v586
    %v2239 = vunpack.c.l.b16 %v587
    %v2240 = vunpack.c.h.b16 %v587
    %v2241 = vunpack.c.l.b16 %v588
    %v2242 = vunpack.c.h.b16 %v588
    %v2243 = vunpack.c.l.b16 %v589
    %v2244 = vunpack.c.h.b16 %v589
    %v2245 = vunpack.c.l.b16 %v590
    %v2246 = vunpack.c.h.b16 %v590
    %v2247 = vunpack.c.l.b16 %v591
    %v2248 = vunpack.c.h.b16 %v591
    %v2249 = vunpack.c.l.b16 %v592
    %v2250 = vunpack.c.h.b16 %v592
    %v2251 = vunpack.c.l.b16 %v593
    %v2252 = vunpack.c.h.b16 %v593
    %v2253 = vunpack.c.l.b16 %v594
    %v2254 = vunpack.c.h.b16 %v594
    %v2255 = vunpack.c.l.b16 %v595
    %v2256 = vunpack.c.h.b16 %v595
    %v2257 = vunpack.c.l.b16 %v596
    %v2258 = vunpack.c.h.b16 %v596
    %v2259 = vunpack.c.l.b16 %v597
    %v2260 = vunpack.c.h.b16 %v597
    %v2261 = vunpack.c.l.b16 %v598
    %v2262 = vunpack.c.h.b16 %v598
    %v2263 = vunpack.c.l.b16 %v599
    %v2264 = vunpack.c.h.b16 %v599
    %v2265 = vunpack.c.l.b16 %v600
    %v2266 = vunpack.c.h.b16 %v600
    %v2267 = vunpack.c.l.b16 %v601
    %v2268 = vunpack.c.h.b16 %v601
    %v2269 = vunpack.c.l.b16 %v602
    %v2270 = vunpack.c.h.b16 %v602
    %v2271 = vunpack.c.l.b16 %v603
    %v2272 = vunpack.c.h.b16 %v603
    %v2273 = vunpack.c.l.b16 %v604
    %v2274 = vunpack.c.h.b16 %v604
    %v2275 = vunpack.c.l.b16 %v605
    %v2276 = vunpack.c.h.b16 %v605
    %v2277 = vunpack.c.l.b16 %v606
    %v2278 = vunpack.c.h.b16 %v606
    %v2279 = vunpack.c.l.b16 %v607
    %v2280 = vunpack.c.h.b16 %v607
    %v2281 = vunpack.c.l.b16 %v608
    %v2282 = vunpack.c.h.b16 %v608
    %v2283 = vunpack.c.l.b16 %v609
    %v2284 = vunpack.c.h.b16 %v609
    %v2285 = vunpack.c.l.b16 %v610
    %v2286 = vunpack.c.h.b16 %v610
    %v2287 = vunpack.c.l.b16 %v611
    %v2288 = vunpack.c.h.b16 %v611
    %v2289 = vunpack.c.l.b16 %v612
    %v2290 = vunpack.c.h.b16 %v612
    %v2291 = vunpack.c.l.b16 %v613
    %v2292 = vunpack.c.h.b16 %v613
    %v2293 = vunpack.c.l.b16 %v614
    %v2294 = vunpack.c.h.b16 %v614
    %v2295 = vunpack.c.l.b16 %v615
    %v2296 = vunpack.c.h.b16 %v615
    %v2297 = vunpack.c.l.b16 %v616
    %v2298 = vunpack.c.h.b16 %v616
    %v2299 = vunpack.c.l.b16 %v617
    %v2300 = vunpack.c.h.b16 %v617
    %v2301 = vunpack.c.l.b16 %v618
    %v2302 = vunpack.c.h.b16 %v618
    %v2303 = vunpack.c.l.b16 %v619
    %v2304 = vunpack.c.h.b16 %v619
    %v2305 = vunpack.c.l.b16 %v620
    %v2306 = vunpack.c.h.b16 %v620
    %v2307 = vunpack.c.l.b16 %v621
    %v2308 = vunpack.c.h.b16 %v621
    %v2309 = vunpack.c.l.b16 %v622
    %v2310 = vunpack.c.h.b16 %v622
    %v2311 = vunpack.c.l.b16 %v623
    %v2312 = vunpack.c.h.b16 %v623
    %v2313 = vunpack.c.l.b16 %v624
    %v2314 = vunpack.c.h.b16 %v624
    %v2315 = vunpack.c.l.b16 %v625
    %v2316 = vunpack.c.h.b16 %v625
    %v2317 = vunpack.c.l.b16 %v626
    %v2318 = vunpack.c.h.b16 %v626
    %v2319 = vunpack.c.l.b16 %v627
    %v2320 = vunpack.c.h.b16 %v627
    %v2321 = vunpack.c.l.b16 %v628
    %v2322 = vunpack.c.h.b16 %v628
    %v2323 = vunpack.c.l.b16 %v629
    %v2324 = vunpack.c.h.b16 %v629
    %v2325 = vunpack.c.l.b16 %v630
    %v2326 = vunpack.c.h.b16 %v630
    %v2327 = vunpack.c.l.b16 %v631
    %v2328 = vunpack.c.h.b16 %v631
    %v2329 = vunpack.c.l.b16 %v632
    %v2330 = vunpack.c.h.b16 %v632
    %v2331 = vunpack.c.l.b16 %v633
    %v2332 = vunpack.c.h.b16 %v633
    %v2333 = vunpack.c.l.b16 %v634
    %v2334 = vunpack.c.h.b16 %v634
    %v2335 = vunpack.c.l.b16 %v635
    %v2336 = vunpack.c.h.b16 %v635
    %v2337 = vunpack.c.l.b16 %v636
    %v2338 = vunpack.c.h.b16 %v636
    %v2339 = vunpack.c.l.b16 %v637
    %v2340 = vunpack.c.h.b16 %v637
    %v2341 = vunpack.c.l.b16 %v638
    %v2342 = vunpack.c.h.b16 %v638
    %v2343 = vunpack.c.l.b16 %v639
    %v2344 = vunpack.c.h.b16 %v639
    %v2345 = vunpack.c.l.b16 %v640
    %v2346 = vunpack.c.h.b16 %v640
    %v2347 = vunpack.c.l.b16 %v641
    %v2348 = vunpack.c.h.b16 %v641
    %v2349 = vunpack.c.l.b16 %v642
    %v2350 = vunpack.c.h.b16 %v642
    %v2351 = vunpack.c.l.b16 %v643
    %v2352 = vunpack.c.h.b16 %v643
    %v2353 = vunpack.c.l.b16 %v644
    %v2354 = vunpack.c.h.b16 %v644
    %v2355 = vunpack.c.l.b16 %v645
    %v2356 = vunpack.c.h.b16 %v645
    %v2357 = vunpack.c.l.b16 %v646
    %v2358 = vunpack.c.h.b16 %v646
    %v2359 = vunpack.c.l.b16 %v647
    %v2360 = vunpack.c.h.b16 %v647
    %v2361 = vunpack.c.l.b16 %v648
    %v2362 = vunpack.c.h.b16 %v648
    %v2363 = vunpack.c.l.b16 %v649
    %v2364 = vunpack.c.h.b16 %v649
    %v2365 = vunpack.c.l.b16 %v650
    %v2366 = vunpack.c.h.b16 %v650
    %v2367 = vunpack.c.l.b16 %v651
    %v2368 = vunpack.c.h.b16 %v651
    %v2369 = vunpack.c.l.b16 %v652
    %v2370 = vunpack.c.h.b16 %v652
    %v2371 = vunpack.c.l.b16 %v653
    %v2372 = vunpack.c.h.b16 %v653
    %v2373 = vunpack.c.l.b16 %v654
    %v2374 = vunpack.c.h.b16 %v654
    %v2375 = vunpack.c.l.b16 %v655
    %v2376 = vunpack.c.h.b16 %v655
    %v2377 = vunpack.c.l.b16 %v656
    %v2378 = vunpack.c.h.b16 %v656
    %v2379 = vunpack.c.l.b16 %v657
    %v2380 = vunpack.c.h.b16 %v657
    %v2381 = vunpack.c.l.b16 %v658
    %v2382 = vunpack.c.h.b16 %v658
    %v2383 = vunpack.c.l.b16 %v659
    %v2384 = vunpack.c.h.b16 %v659
    %v2385 = vunpack.c.l.b16 %v660
    %v2386 = vunpack.c.h.b16 %v660
    %v2387 = vunpack.c.l.b16 %v661
    %v2388 = vunpack.c.h.b16 %v661
    %v2389 = vunpack.c.l.b16 %v662
    %v2390 = vunpack.c.h.b16 %v662
    %v2391 = vunpack.c.l.b16 %v663
    %v2392 = vunpack.c.h.b16 %v663
    %v2393 = vunpack.c.l.b16 %v664
    %v2394 = vunpack.c.h.b16 %v664
    %v2395 = vunpack.c.l.b16 %v665
    %v2396 = vunpack.c.h.b16 %v665
    %v2397 = vunpack.c.l.b16 %v666
    %v2398 = vunpack.c.h.b16 %v666
    %v2399 = vunpack.c.l.b16 %v667
    %v2400 = vunpack.c.h.b16 %v667
    %v2401 = vunpack.c.l.b16 %v668
    %v2402 = vunpack.c.h.b16 %v668
    %v2403 = vunpack.c.l.b16 %v669
    %v2404 = vunpack.c.h.b16 %v669
    %v2405 = vunpack.c.l.b16 %v670
    %v2406 = vunpack.c.h.b16 %v670
    %v2407 = vunpack.c.l.b16 %v671
    %v2408 = vunpack.c.h.b16 %v671
    %v2409 = vunpack.c.l.b16 %v672
    %v2410 = vunpack.c.h.b16 %v672
    %v2411 = vunpack.c.l.b16 %v673
    %v2412 = vunpack.c.h.b16 %v673
    %v2413 = vunpack.c.l.b16 %v674
    %v2414 = vunpack.c.h.b16 %v674
    %v2415 = vunpack.c.l.b16 %v675
    %v2416 = vunpack.c.h.b16 %v675
    %v2417 = vunpack.c.l.b16 %v676
    %v2418 = vunpack.c.h.b16 %v676
    %v2419 = vunpack.c.l.b16 %v677
    %v2420 = vunpack.c.h.b16 %v677
    %v2421 = vunpack.c.l.b16 %v678
    %v2422 = vunpack.c.h.b16 %v678
    %v2423 = vunpack.c.l.b16 %v679
    %v2424 = vunpack.c.h.b16 %v679
    %v2425 = vunpack.c.l.b16 %v680
    %v2426 = vunpack.c.h.b16 %v680
    %v2427 = vunpack.c.l.b16 %v681
    %v2428 = vunpack.c.h.b16 %v681
    %v2429 = vunpack.c.l.b16 %v682
    %v2430 = vunpack.c.h.b16 %v682
    %v2431 = vunpack.c.l.b16 %v683
    %v2432 = vunpack.c.h.b16 %v683
    %v2433 = vunpack.c.l.b16 %v684
    %v2434 = vunpack.c.h.b16 %v684
    %v2435 = vunpack.c.l.b16 %v685
    %v2436 = vunpack.c.h.b16 %v685
    %v2437 = vunpack.c.l.b16 %v686
    %v2438 = vunpack.c.h.b16 %v686
    %v2439 = vunpack.c.l.b16 %v687
    %v2440 = vunpack.c.h.b16 %v687
    %v2441 = vunpack.c.l.b16 %v688
    %v2442 = vunpack.c.h.b16 %v688
    %v2443 = vunpack.c.l.b16 %v689
    %v2444 = vunpack.c.h.b16 %v689
    %v2445 = vunpack.c.l.b16 %v690
    %v2446 = vunpack.c.h.b16 %v690
    %v2447 = vunpack.c.l.b16 %v691
    %v2448 = vunpack.c.h.b16 %v691
    %v2449 = vunpack.c.l.b16 %v692
    %v2450 = vunpack.c.h.b16 %v692
    %v2451 = vunpack.c.l.b16 %v693
    %v2452 = vunpack.c.h.b16 %v693
    %v2453 = vunpack.c.l.b16 %v694
    %v2454 = vunpack.c.h.b16 %v694
    %v2455 = vunpack.c.l.b16 %v695
    %v2456 = vunpack.c.h.b16 %v695
    %v2457 = vunpack.c.l.b16 %v696
    %v2458 = vunpack.c.h.b16 %v696
    %v2459 = vunpack.c.l.b16 %v697
    %v2460 = vunpack.c.h.b16 %v697
    %v2461 = vunpack.c.l.b16 %v698
    %v2462 = vunpack.c.h.b16 %v698
    %v2463 = vunpack.c.l.b16 %v699
    %v2464 = vunpack.c.h.b16 %v699
    %v2465 = vunpack.c.l.b16 %v700
    %v2466 = vunpack.c.h.b16 %v700
    %v2467 = vunpack.c.l.b16 %v701
    %v2468 = vunpack.c.h.b16 %v701
    %v2469 = vunpack.c.l.b16 %v702
    %v2470 = vunpack.c.h.b16 %v702
    %v2471 = vunpack.c.l.b16 %v703
    %v2472 = vunpack.c.h.b16 %v703
    %v2473 = vunpack.c.l.b16 %v704
    %v2474 = vunpack.c.h.b16 %v704
    %v2475 = vunpack.c.l.b16 %v705
    %v2476 = vunpack.c.h.b16 %v705
    %v2477 = vunpack.c.l.b16 %v706
    %v2478 = vunpack.c.h.b16 %v706
    %v2479 = vunpack.c.l.b16 %v707
    %v2480 = vunpack.c.h.b16 %v707
    %v2481 = vunpack.c.l.b16 %v708
    %v2482 = vunpack.c.h.b16 %v708
    %v2483 = vpack.c.b16 %v1335, %v1307
    %v2484 = vpack.c.b16 %v1336, %v1308
    %v2485 = vpack.c.b16 %v1337, %v1309
    %v2486 = vpack.c.b16 %v1338, %v1310
    %v2487 = vpack.c.b16 %v1339, %v1311
    %v2488 = vpack.c.b16 %v1340, %v1312
    %v2489 = vpack.c.b16 %v1341, %v1313
    %v2490 = vpack.c.b16 %v1342, %v1314
    %v2491 = vpack.c.b16 %v1343, %v1315
    %v2492 = vpack.c.b16 %v1344, %v1316
    %v2493 = vpack.c.b16 %v1345, %v1317
    %v2494 = vpack.c.b16 %v1346, %v1318
    %v2495 = vpack.c.b16 %v1347, %v1319
    %v2496 = vpack.c.b16 %v1348, %v1320
    %v2497 = vpack.c.b16 %v1349, %v1321
    %v2498 = vpack.c.b16 %v1350, %v1322
    %v2499 = vpack.c.b16 %v1351, %v1323
    %v2500 = vpack.c.b16 %v1352, %v1324
    %v2501 = vpack.c.b16 %v1353, %v1325
    %v2502 = vpack.c.b16 %v1354, %v1326
    %v2503 = vpack.c.b16 %v1355, %v1327
    %v2504 = vpack.c.b16 %v1356, %v1328
    %v2505 = vpack.c.b16 %v1357, %v1329
    %v2506 = vpack.c.b16 %v1358, %v1330
    %v2507 = vpack.c.b16 %v1359, %v1331
    %v2508 = vpack.c.b16 %v1360, %v1332
    %v2509 = vpack.c.b16 %v1361, %v1333
    %v2510 = vpack.c.b16 %v1362, %v1334
    %v2511 = vpack.c.b16 %v1391, %v1363
    %v2512 = vpack.c.b16 %v1392, %v1364
    %v2513 = vpack.c.b16 %v1393, %v1365
    %v2514 = vpack.c.b16 %v1394, %v1366
    %v2515 = vpack.c.b16 %v1395, %v1367
    %v2516 = vpack.c.b16 %v1396, %v1368
    %v2517 = vpack.c.b16 %v1397, %v1369
    %v2518 = vpack.c.b16 %v1398, %v1370
    %v2519 = vpack.c.b16 %v1399, %v1371
    %v2520 = vpack.c.b16 %v1400, %v1372
    %v2521 = vpack.c.b16 %v1401, %v1373
    %v2522 = vpack.c.b16 %v1402, %v1374
    %v2523 = vpack.c.b16 %v1403, %v1375
    %v2524 = vpack.c.b16 %v1404, %v1376
    %v2525 = vpack.c.b16 %v1405, %v1377
    %v2526 = vpack.c.b16 %v1406, %v1378
    %v2527 = vpack.c.b16 %v1407, %v1379
    %v2528 = vpack.c.b16 %v1408, %v1380
    %v2529 = vpack.c.b16 %v1409, %v1381
    %v2530 = vpack.c.b16 %v1410, %v1382
    %v2531 = vpack.c.b16 %v1411, %v1383
    %v2532 = vpack.c.b16 %v1412, %v1384
    %v2533 = vpack.c.b16 %v1413, %v1385
    %v2534 = vpack.c.b16 %v1414, %v1386
    %v2535 = vpack.c.b16 %v1415, %v1387
    %v2536 = vpack.c.b16 %v1416, %v1388
    %v2537 = vpack.c.b16 %v1417, %v1389
    %v2538 = vpack.c.b16 %v1418, %v1390
    %v2539 = vpack.c.b16 %v1447, %v1419
    %v2540 = vpack.c.b16 %v1448, %v1420
    %v2541 = vpack.c.b16 %v1449, %v1421
    %v2542 = vpack.c.b16 %v1450, %v1422
    %v2543 = vpack.c.b16 %v1451, %v1423
    %v2544 = vpack.c.b16 %v1452, %v1424
    %v2545 = vpack.c.b16 %v1453, %v1425
    %v2546 = vpack.c.b16 %v1454, %v1426
    %v2547 = vpack.c.b16 %v1455, %v1427
    %v2548 = vpack.c.b16 %v1456, %v1428
    %v2549 = vpack.c.b16 %v1457, %v1429
    %v2550 = vpack.c.b16 %v1458, %v1430
    %v2551 = vpack.c.b16 %v1459, %v1431
    %v2552 = vpack.c.b16 %v1460, %v1432
    %v2553 = vpack.c.b16 %v1461, %v1433
    %v2554 = vpack.c.b16 %v1462, %v1434
    %v2555 = vpack.c.b16 %v1463, %v1435
    %v2556 = vpack.c.b16 %v1464, %v1436
    %v2557 = vpack.c.b16 %v1465, %v1437
    %v2558 = vpack.c.b16 %v1466, %v1438
    %v2559 = vpack.c.b16 %v1467, %v1439
    %v2560 = vpack.c.b16 %v1468, %v1440
    %v2561 = vpack.c.b16 %v1469, %v1441
    %v2562 = vpack.c.b16 %v1470, %v1442
    %v2563 = vpack.c.b16 %v1471, %v1443
    %v2564 = vpack.c.b16 %v1472, %v1444
    %v2565 = vpack.c.b16 %v1473, %v1445
    %v2566 = vpack.c.b16 %v1474, %v1446
    %v2567 = vpack.c.b16 %v1503, %v1475
    %v2568 = vpack.c.b16 %v1504, %v1476
    %v2569 = vpack.c.b16 %v1505, %v1477
    %v2570 = vpack.c.b16 %v1506, %v1478
    %v2571 = vpack.c.b16 %v1507, %v1479
    %v2572 = vpack.c.b16 %v1508, %v1480
    %v2573 = vpack.c.b16 %v1509, %v1481
    %v2574 = vpack.c.b16 %v1510, %v1482
    %v2575 = vpack.c.b16 %v1511, %v1483
    %v2576 = vpack.c.b16 %v1512, %v1484
    %v2577 = vpack.c.b16 %v1513, %v1485
    %v2578 = vpack.c.b16 %v1514, %v1486
    %v2579 = vpack.c.b16 %v1515, %v1487
    %v2580 = vpack.c.b16 %v1516, %v1488
    %v2581 = vpack.c.b16 %v1517, %v1489
    %v2582 = vpack.c.b16 %v1518, %v1490
    %v2583 = vpack.c.b16 %v1519, %v1491
    %v2584 = vpack.c.b16 %v1520, %v1492
    %v2585 = vpack.c.b16 %v1521, %v1493
    %v2586 = vpack.c.b16 %v1522, %v1494
    %v2587 = vpack.c.b16 %v1523, %v1495
    %v2588 = vpack.c.b16 %v1524, %v1496
    %v2589 = vpack.c.b16 %v1525, %v1497
    %v2590 = vpack.c.b16 %v1526, %v1498
    %v2591 = vpack.c.b16 %v1527, %v1499
    %v2592 = vpack.c.b16 %v1528, %v1500
    %v2593 = vpack.c.b16 %v1529, %v1501
    %v2594 = vpack.c.b16 %v1530, %v1502
    %v2595 = vpack.c.b16 %v1559, %v1531
    %v2596 = vpack.c.b16 %v1560, %v1532
    %v2597 = vpack.c.b16 %v1561, %v1533
    %v2598 = vpack.c.b16 %v1562, %v1534
    %v2599 = vpack.c.b16 %v1563, %v1535
    %v2600 = vpack.c.b16 %v1564, %v1536
    %v2601 = vpack.c.b16 %v1565, %v1537
    %v2602 = vpack.c.b16 %v1566, %v1538
    %v2603 = vpack.c.b16 %v1567, %v1539
    %v2604 = vpack.c.b16 %v1568, %v1540
    %v2605 = vpack.c.b16 %v1569, %v1541
    %v2606 = vpack.c.b16 %v1570, %v1542
    %v2607 = vpack.c.b16 %v1571, %v1543
    %v2608 = vpack.c.b16 %v1572, %v1544
    %v2609 = vpack.c.b16 %v1573, %v1545
    %v2610 = vpack.c.b16 %v1574, %v1546
    %v2611 = vpack.c.b16 %v1575, %v1547
    %v2612 = vpack.c.b16 %v1576, %v1548
    %v2613 = vpack.c.b16 %v1577, %v1549
    %v2614 = vpack.c.b16 %v1578, %v1550
    %v2615 = vpack.c.b16 %v1579, %v1551
    %v2616 = vpack.c.b16 %v1580, %v1552
    %v2617 = vpack.c.b16 %v1581, %v1553
    %v2618 = vpack.c.b16 %v1582, %v1554
    %v2619 = vpack.c.b16 %v1583, %v1555
    %v2620 = vpack.c.b16 %v1584, %v1556
    %v2621 = vpack.c.b16 %v1585, %v1557
    %v2622 = vpack.c.b16 %v1586, %v1558
    %v2623 = vpack.c.b16 %v1615, %v1587
    %v2624 = vpack.c.b16 %v1616, %v1588
    %v2625 = vpack.c.b16 %v1617, %v1589
    %v2626 = vpack.c.b16 %v1618, %v1590
    %v2627 = vpack.c.b16 %v1619, %v1591
    %v2628 = vpack.c.b16 %v1620, %v1592
    %v2629 = vpack.c.b16 %v1621, %v1593
    %v2630 = vpack.c.b16 %v1622, %v1594
    %v2631 = vpack.c.b16 %v1623, %v1595
    %v2632 = vpack.c.b16 %v1624, %v1596
    %v2633 = vpack.c.b16 %v1625, %v1597
    %v2634 = vpack.c.b16 %v1626, %v1598
    %v2635 = vpack.c.b16 %v1627, %v1599
    %v2636 = vpack.c.b16 %v1628, %v1600
    %v2637 = vpack.c.b16 %v1629, %v1601
    %v2638 = vpack.c.b16 %v1630, %v1602
    %v2639 = vpack.c.b16 %v1631, %v1603
    %v2640 = vpack.c.b16 %v1632, %v1604
    %v2641 = vpack.c.b16 %v1633, %v1605
    %v2642 = vpack.c.b16 %v1634, %v1606
    %v2643 = vpack.c.b16 %v1635, %v1607
    %v2644 = vpack.c.b16 %v1636, %v1608
    %v2645 = vpack.c.b16 %v1637, %v1609
    %v2646 = vpack.c.b16 %v1638, %v1610
    %v2647 = vpack.c.b16 %v1639, %v1611
    %v2648 = vpack.c.b16 %v1640, %v1612
    %v2649 = vpack.c.b16 %v1641, %v1613
    %v2650 = vpack.c.b16 %v1642, %v1614
    %v2651 = vpack.c.b16 %v1671, %v1643
    %v2652 = vpack.c.b16 %v1672, %v1644
    %v2653 = vpack.c.b16 %v1673, %v1645
    %v2654 = vpack.c.b16 %v1674, %v1646
    %v2655 = vpack.c.b16 %v1675, %v1647
    %v2656 = vpack.c.b16 %v1676, %v1648
    %v2657 = vpack.c.b16 %v1677, %v1649
    %v2658 = vpack.c.b16 %v1678, %v1650
    %v2659 = vpack.c.b16 %v1679, %v1651
    %v2660 = vpack.c.b16 %v1680, %v1652
    %v2661 = vpack.c.b16 %v1681, %v1653
    %v2662 = vpack.c.b16 %v1682, %v1654
    %v2663 = vpack.c.b16 %v1683, %v1655
    %v2664 = vpack.c.b16 %v1684, %v1656
    %v2665 = vpack.c.b16 %v1685, %v1657
    %v2666 = vpack.c.b16 %v1686, %v1658
    %v2667 = vpack.c.b16 %v1687, %v1659
    %v2668 = vpack.c.b16 %v1688, %v1660
    %v2669 = vpack.c.b16 %v1689, %v1661
    %v2670 = vpack.c.b16 %v1690, %v1662
    %v2671 = vpack.c.b16 %v1691, %v1663
    %v2672 = vpack.c.b16 %v1692, %v1664
    %v2673 = vpack.c.b16 %v1693, %v1665
    %v2674 = vpack.c.b16 %v1694, %v1666
    %v2675 = vpack.c.b16 %v1695, %v1667
    %v2676 = vpack.c.b16 %v1696, %v1668
    %v2677 = vpack.c.b16 %v1697, %v1669
    %v2678 = vpack.c.b16 %v1698, %v1670
    %v2679 = vpack.c.b16 %v1727, %v1699
    %v2680 = vpack.c.b16 %v1728, %v1700
    %v2681 = vpack.c.b16 %v1729, %v1701
    %v2682 = vpack.c.b16 %v1730, %v1702
    %v2683 = vpack.c.b16 %v1731, %v1703
    %v2684 = vpack.c.b16 %v1732, %v1704
    %v2685 = vpack.c.b16 %v1733, %v1705
    %v2686 = vpack.c.b16 %v1734, %v1706
    %v2687 = vpack.c.b16 %v1735, %v1707
    %v2688 = vpack.c.b16 %v1736, %v1708
    %v2689 = vpack.c.b16 %v1737, %v1709
    %v2690 = vpack.c.b16 %v1738, %v1710
    %v2691 = vpack.c.b16 %v1739, %v1711
    %v2692 = vpack.c.b16 %v1740, %v1712
    %v2693 = vpack.c.b16 %v1741, %v1713
    %v2694 = vpack.c.b16 %v1742, %v1714
    %v2695 = vpack.c.b16 %v1743, %v1715
    %v2696 = vpack.c.b16 %v1744, %v1716
    %v2697 = vpack.c.b16 %v1745, %v1717
    %v2698 = vpack.c.b16 %v1746, %v1718
    %v2699 = vpack.c.b16 %v1747, %v1719
    %v2700 = vpack.c.b16 %v1748, %v1720
    %v2701 = vpack.c.b16 %v1749, %v1721
    %v2702 = vpack.c.b16 %v1750, %v1722
    %v2703 = vpack.c.b16 %v1751, %v1723
    %v2704 = vpack.c.b16 %v1752, %v1724
    %v2705 = vpack.c.b16 %v1753, %v1725
    %v2706 = vpack.c.b16 %v1754, %v1726
    %v2707 = vpack.c.b16 %v1783, %v1755
    %v2708 = vpack.c.b16 %v1784, %v1756
    %v2709 = vpack.c.b16 %v1785, %v1757
    %v2710 = vpack.c.b16 %v1786, %v1758
    %v2711 = vpack.c.b16 %v1787, %v1759
    %v2712 = vpack.c.b16 %v1788, %v1760
    %v2713 = vpack.c.b16 %v1789, %v1761
    %v2714 = vpack.c.b16 %v1790, %v1762
    %v2715 = vpack.c.b16 %v1791, %v1763
    %v2716 = vpack.c.b16 %v1792, %v1764
    %v2717 = vpack.c.b16 %v1793, %v1765
    %v2718 = vpack.c.b16 %v1794, %v1766
    %v2719 = vpack.c.b16 %v1795, %v1767
    %v2720 = vpack.c.b16 %v1796, %v1768
    %v2721 = vpack.c.b16 %v1797, %v1769
    %v2722 = vpack.c.b16 %v1798, %v1770
    %v2723 = vpack.c.b16 %v1799, %v1771
    %v2724 = vpack.c.b16 %v1800, %v1772
    %v2725 = vpack.c.b16 %v1801, %v1773
    %v2726 = vpack.c.b16 %v1802, %v1774
    %v2727 = vpack.c.b16 %v1803, %v1775
    %v2728 = vpack.c.b16 %v1804, %v1776
    %v2729 = vpack.c.b16 %v1805, %v1777
    %v2730 = vpack.c.b16 %v1806, %v1778
    %v2731 = vpack.c.b16 %v1807, %v1779
    %v2732 = vpack.c.b16 %v1808, %v1780
    %v2733 = vpack.c.b16 %v1809, %v1781
    %v2734 = vpack.c.b16 %v1810, %v1782
    %v2735 = vpack.c.b16 %v1839, %v1811
    %v2736 = vpack.c.b16 %v1840, %v1812
    %v2737 = vpack.c.b16 %v1841, %v1813
    %v2738 = vpack.c.b16 %v1842, %v1814
    %v2739 = vpack.c.b16 %v1843, %v1815
    %v2740 = vpack.c.b16 %v1844, %v1816
    %v2741 = vpack.c.b16 %v1845, %v1817
    %v2742 = vpack.c.b16 %v1846, %v1818
    %v2743 = vpack.c.b16 %v1847, %v1819
    %v2744 = vpack.c.b16 %v1848, %v1820
    %v2745 = vpack.c.b16 %v1849, %v1821
    %v2746 = vpack.c.b16 %v1850, %v1822
    %v2747 = vpack.c.b16 %v1851, %v1823
    %v2748 = vpack.c.b16 %v1852, %v1824
    %v2749 = vpack.c.b16 %v1853, %v1825
    %v2750 = vpack.c.b16 %v1854, %v1826
    %v2751 = vpack.c.b16 %v1855, %v1827
    %v2752 = vpack.c.b16 %v1856, %v1828
    %v2753 = vpack.c.b16 %v1857, %v1829
    %v2754 = vpack.c.b16 %v1858, %v1830
    %v2755 = vpack.c.b16 %v1859, %v1831
    %v2756 = vpack.c.b16 %v1860, %v1832
    %v2757 = vpack.c.b16 %v1861, %v1833
    %v2758 = vpack.c.b16 %v1862, %v1834
    %v2759 = vpack.c.b16 %v1863, %v1835
    %v2760 = vpack.c.b16 %v1864, %v1836
    %v2761 = vpack.c.b16 %v1865, %v1837
    %v2762 = vpack.c.b16 %v1866, %v1838
    %v2763 = vpack.c.b16 %v1895, %v1867
    %v2764 = vpack.c.b16 %v1896, %v1868
    %v2765 = vpack.c.b16 %v1897, %v1869
    %v2766 = vpack.c.b16 %v1898, %v1870
    %v2767 = vpack.c.b16 %v1899, %v1871
    %v2768 = vpack.c.b16 %v1900, %v1872
    %v2769 = vpack.c.b16 %v1901, %v1873
    %v2770 = vpack.c.b16 %v1902, %v1874
    %v2771 = vpack.c.b16 %v1903, %v1875
    %v2772 = vpack.c.b16 %v1904, %v1876
    %v2773 = vpack.c.b16 %v1905, %v1877
    %v2774 = vpack.c.b16 %v1906, %v1878
    %v2775 = vpack.c.b16 %v1907, %v1879
    %v2776 = vpack.c.b16 %v1908, %v1880
    %v2777 = vpack.c.b16 %v1909, %v1881
    %v2778 = vpack.c.b16 %v1910, %v1882
    %v2779 = vpack.c.b16 %v1911, %v1883
    %v2780 = vpack.c.b16 %v1912, %v1884
    %v2781 = vpack.c.b16 %v1913, %v1885
    %v2782 = vpack.c.b16 %v1914, %v1886
    %v2783 = vpack.c.b16 %v1915, %v1887
    %v2784 = vpack.c.b16 %v1916, %v1888
    %v2785 = vpack.c.b16 %v1917, %v1889
    %v2786 = vpack.c.b16 %v1918, %v1890
    %v2787 = vpack.c.b16 %v1919, %v1891
    %v2788 = vpack.c.b16 %v1920, %v1892
    %v2789 = vpack.c.b16 %v1921, %v1893
    %v2790 = vpack.c.b16 %v1922, %v1894
    %v2791 = vpack.c.b16 %v1951, %v1923
    %v2792 = vpack.c.b16 %v1952, %v1924
    %v2793 = vpack.c.b16 %v1953, %v1925
    %v2794 = vpack.c.b16 %v1954, %v1926
    %v2795 = vpack.c.b16 %v1955, %v1927
    %v2796 = vpack.c.b16 %v1956, %v1928
    %v2797 = vpack.c.b16 %v1957, %v1929
    %v2798 = vpack.c.b16 %v1958, %v1930
    %v2799 = vpack.c.b16 %v1959, %v1931
    %v2800 = vpack.c.b16 %v1960, %v1932
    %v2801 = vpack.c.b16 %v1961, %v1933
    %v2802 = vpack.c.b16 %v1962, %v1934
    %v2803 = vpack.c.b16 %v1963, %v1935
    %v2804 = vpack.c.b16 %v1964, %v1936
    %v2805 = vpack.c.b16 %v1965, %v1937
    %v2806 = vpack.c.b16 %v1966, %v1938
    %v2807 = vpack.c.b16 %v1967, %v1939
    %v2808 = vpack.c.b16 %v1968, %v1940
    %v2809 = vpack.c.b16 %v1969, %v1941
    %v2810 = vpack.c.b16 %v1970, %v1942
    %v2811 = vpack.c.b16 %v1971, %v1943
    %v2812 = vpack.c.b16 %v1972, %v1944
    %v2813 = vpack.c.b16 %v1973, %v1945
    %v2814 = vpack.c.b16 %v1974, %v1946
    %v2815 = vpack.c.b16 %v1975, %v1947
    %v2816 = vpack.c.b16 %v1976, %v1948
    %v2817 = vpack.c.b16 %v1977, %v1949
    %v2818 = vpack.c.b16 %v1978, %v1950
    %v2819 = vpack.c.b16 %v2007, %v1979
    %v2820 = vpack.c.b16 %v2008, %v1980
    %v2821 = vpack.c.b16 %v2009, %v1981
    %v2822 = vpack.c.b16 %v2010, %v1982
    %v2823 = vpack.c.b16 %v2011, %v1983
    %v2824 = vpack.c.b16 %v2012, %v1984
    %v2825 = vpack.c.b16 %v2013, %v1985
    %v2826 = vpack.c.b16 %v2014, %v1986
    %v2827 = vpack.c.b16 %v2015, %v1987
    %v2828 = vpack.c.b16 %v2016, %v1988
    %v2829 = vpack.c.b16 %v2017, %v1989
    %v2830 = vpack.c.b16 %v2018, %v1990
    %v2831 = vpack.c.b16 %v2019, %v1991
    %v2832 = vpack.c.b16 %v2020, %v1992
    %v2833 = vpack.c.b16 %v2021, %v1993
    %v2834 = vpack.c.b16 %v2022, %v1994
    %v2835 = vpack.c.b16 %v2023, %v1995
    %v2836 = vpack.c.b16 %v2024, %v1996
    %v2837 = vpack.c.b16 %v2025, %v1997
    %v2838 = vpack.c.b16 %v2026, %v1998
    %v2839 = vpack.c.b16 %v2027, %v1999
    %v2840 = vpack.c.b16 %v2028, %v2000
    %v2841 = vpack.c.b16 %v2029, %v2001
    %v2842 = vpack.c.b16 %v2030, %v2002
    %v2843 = vpack.c.b16 %v2031, %v2003
    %v2844 = vpack.c.b16 %v2032, %v2004
    %v2845 = vpack.c.b16 %v2033, %v2005
    %v2846 = vpack.c.b16 %v2034, %v2006
    %v2847 = vpack.c.b16 %v2063, %v2035
    %v2848 = vpack.c.b16 %v2064, %v2036
    %v2849 = vpack.c.b16 %v2065, %v2037
    %v2850 = vpack.c.b16 %v2066, %v2038
    %v2851 = vpack.c.b16 %v2067, %v2039
    %v2852 = vpack.c.b16 %v2068, %v2040
    %v2853 = vpack.c.b16 %v2069, %v2041
    %v2854 = vpack.c.b16 %v2070, %v2042
    %v2855 = vpack.c.b16 %v2071, %v2043
    %v2856 = vpack.c.b16 %v2072, %v2044
    %v2857 = vpack.c.b16 %v2073, %v2045
    %v2858 = vpack.c.b16 %v2074, %v2046
    %v2859 = vpack.c.b16 %v2075, %v2047
    %v2860 = vpack.c.b16 %v2076, %v2048
    %v2861 = vpack.c.b16 %v2077, %v2049
    %v2862 = vpack.c.b16 %v2078, %v2050
    %v2863 = vpack.c.b16 %v2079, %v2051
    %v2864 = vpack.c.b16 %v2080, %v2052
    %v2865 = vpack.c.b16 %v2081, %v2053
    %v2866 = vpack.c.b16 %v2082, %v2054
    %v2867 = vpack.c.b16 %v2083, %v2055
    %v2868 = vpack.c.b16 %v2084, %v2056
    %v2869 = vpack.c.b16 %v2085, %v2057
    %v2870 = vpack.c.b16 %v2086, %v2058
    %v2871 = vpack.c.b16 %v2087, %v2059
    %v2872 = vpack.c.b16 %v2088, %v2060
    %v2873 = vpack.c.b16 %v2089, %v2061
    %v2874 = vpack.c.b16 %v2090, %v2062
    %v2875 = vpack.c.b16 %v2119, %v2091
    %v2876 = vpack.c.b16 %v2120, %v2092
    %v2877 = vpack.c.b16 %v2121, %v2093
    %v2878 = vpack.c.b16 %v2122, %v2094
    %v2879 = vpack.c.b16 %v2123, %v2095
    %v2880 = vpack.c.b16 %v2124, %v2096
    %v2881 = vpack.c.b16 %v2125, %v2097
    %v2882 = vpack.c.b16 %v2126, %v2098
    %v2883 = vpack.c.b16 %v2127, %v2099
    %v2884 = vpack.c.b16 %v2128, %v2100
    %v2885 = vpack.c.b16 %v2129, %v2101
    %v2886 = vpack.c.b16 %v2130, %v2102
    %v2887 = vpack.c.b16 %v2131, %v2103
    %v2888 = vpack.c.b16 %v2132, %v2104
    %v2889 = vpack.c.b16 %v2133, %v2105
    %v2890 = vpack.c.b16 %v2134, %v2106
    %v2891 = vpack.c.b16 %v2135, %v2107
    %v2892 = vpack.c.b16 %v2136, %v2108
    %v2893 = vpack.c.b16 %v2137, %v2109
    %v2894 = vpack.c.b16 %v2138, %v2110
    %v2895 = vpack.c.b16 %v2139, %v2111
    %v2896 = vpack.c.b16 %v2140, %v2112
    %v2897 = vpack.c.b16 %v2141, %v2113
    %v2898 = vpack.c.b16 %v2142, %v2114
    %v2899 = vpack.c.b16 %v2143, %v2115
    %v2900 = vpack.c.b16 %v2144, %v2116
    %v2901 = vpack.c.b16 %v2145, %v2117
    %v2902 = vpack.c.b16 %v2146, %v2118
    %v2903 = vpack.c.b16 %v2175, %v2147
    %v2904 = vpack.c.b16 %v2176, %v2148
    %v2905 = vpack.c.b16 %v2177, %v2149
    %v2906 = vpack.c.b16 %v2178, %v2150
    %v2907 = vpack.c.b16 %v2179, %v2151
    %v2908 = vpack.c.b16 %v2180, %v2152
    %v2909 = vpack.c.b16 %v2181, %v2153
    %v2910 = vpack.c.b16 %v2182, %v2154
    %v2911 = vpack.c.b16 %v2183, %v2155
    %v2912 = vpack.c.b16 %v2184, %v2156
    %v2913 = vpack.c.b16 %v2185, %v2157
    %v2914 = vpack.c.b16 %v2186, %v2158
    %v2915 = vpack.c.b16 %v2187, %v2159
    %v2916 = vpack.c.b16 %v2188, %v2160
    %v2917 = vpack.c.b16 %v2189, %v2161
    %v2918 = vpack.c.b16 %v2190, %v2162
    %v2919 = vpack.c.b16 %v2191, %v2163
    %v2920 = vpack.c.b16 %v2192, %v2164
    %v2921 = vpack.c.b16 %v2193, %v2165
    %v2922 = vpack.c.b16 %v2194, %v2166
    %v2923 = vpack.c.b16 %v2195, %v2167
    %v2924 = vpack.c.b16 %v2196, %v2168
    %v2925 = vpack.c.b16 %v2197, %v2169
    %v2926 = vpack.c.b16 %v2198, %v2170
    %v2927 = vpack.c.b16 %v2199, %v2171
    %v2928 = vpack.c.b16 %v2200, %v2172
    %v2929 = vpack.c.b16 %v2201, %v2173
    %v2930 = vpack.c.b16 %v2202, %v2174
    %v2931 = vpack.c.b16 %v2231, %v2203
    %v2932 = vpack.c.b16 %v2232, %v2204
    %v2933 = vpack.c.b16 %v2233, %v2205
    %v2934 = vpack.c.b16 %v2234, %v2206
    %v2935 = vpack.c.b16 %v2235, %v2207
    %v2936 = vpack.c.b16 %v2236, %v2208
    %v2937 = vpack.c.b16 %v2237, %v2209
    %v2938 = vpack.c.b16 %v2238, %v2210
    %v2939 = vpack.c.b16 %v2239, %v2211
    %v2940 = vpack.c.b16 %v2240, %v2212
    %v2941 = vpack.c.b16 %v2241, %v2213
    %v2942 = vpack.c.b16 %v2242, %v2214
    %v2943 = vpack.c.b16 %v2243, %v2215
    %v2944 = vpack.c.b16 %v2244, %v2216
    %v2945 = vpack.c.b16 %v2245, %v2217
    %v2946 = vpack.c.b16 %v2246, %v2218
    %v2947 = vpack.c.b16 %v2247, %v2219
    %v2948 = vpack.c.b16 %v2248, %v2220
    %v2949 = vpack.c.b16 %v2249, %v2221
    %v2950 = vpack.c.b16 %v2250, %v2222
    %v2951 = vpack.c.b16 %v2251, %v2223
    %v2952 = vpack.c.b16 %v2252, %v2224
    %v2953 = vpack.c.b16 %v2253, %v2225
    %v2954 = vpack.c.b16 %v2254, %v2226
    %v2955 = vpack.c.b16 %v2255, %v2227
    %v2956 = vpack.c.b16 %v2256, %v2228
    %v2957 = vpack.c.b16 %v2257, %v2229
    %v2958 = vpack.c.b16 %v2258, %v2230
    %v2959 = vpack.c.b16 %v2287, %v2259
    %v2960 = vpack.c.b16 %v2288, %v2260
    %v2961 = vpack.c.b16 %v2289, %v2261
    %v2962 = vpack.c.b16 %v2290, %v2262
    %v2963 = vpack.c.b16 %v2291, %v2263
    %v2964 = vpack.c.b16 %v2292, %v2264
    %v2965 = vpack.c.b16 %v2293, %v2265
    %v2966 = vpack.c.b16 %v2294, %v2266
    %v2967 = vpack.c.b16 %v2295, %v2267
    %v2968 = vpack.c.b16 %v2296, %v2268
    %v2969 = vpack.c.b16 %v2297, %v2269
    %v2970 = vpack.c.b16 %v2298, %v2270
    %v2971 = vpack.c.b16 %v2299, %v2271
    %v2972 = vpack.c.b16 %v2300, %v2272
    %v2973 = vpack.c.b16 %v2301, %v2273
    %v2974 = vpack.c.b16 %v2302, %v2274
    %v2975 = vpack.c.b16 %v2303, %v2275
    %v2976 = vpack.c.b16 %v2304, %v2276
    %v2977 = vpack.c.b16 %v2305, %v2277
    %v2978 = vpack.c.b16 %v2306, %v2278
    %v2979 = vpack.c.b16 %v2307, %v2279
    %v2980 = vpack.c.b16 %v2308, %v2280
    %v2981 = vpack.c.b16 %v2309, %v2281
    %v2982 = vpack.c.b16 %v2310, %v2282
    %v2983 = vpack.c.b16 %v2311, %v2283
    %v2984 = vpack.c.b16 %v2312, %v2284
    %v2985 = vpack.c.b16 %v2313, %v2285
    %v2986 = vpack.c.b16 %v2314, %v2286
    %v2987 = vpack.c.b16 %v2343, %v2315
    %v2988 = vpack.c.b16 %v2344, %v2316
    %v2989 = vpack.c.b16 %v2345, %v2317
    %v2990 = vpack.c.b16 %v2346, %v2318
    %v2991 = vpack.c.b16 %v2347, %v2319
    %v2992 = vpack.c.b16 %v2348, %v2320
    %v2993 = vpack.c.b16 %v2349, %v2321
    %v2994 = vpack.c.b16 %v2350, %v2322
    %v2995 = vpack.c.b16 %v2351, %v2323
    %v2996 = vpack.c.b16 %v2352, %v2324
    %v2997 = vpack.c.b16 %v2353, %v2325
    %v2998 = vpack.c.b16 %v2354, %v2326
    %v2999 = vpack.c.b16 %v2355, %v2327
    %v3000 = vpack.c.b16 %v2356, %v2328
    %v3001 = vpack.c.b16 %v2357, %v2329
    %v3002 = vpack.c.b16 %v2358, %v2330
    %v3003 = vpack.c.b16 %v2359, %v2331
    %v3004 = vpack.c.b16 %v2360, %v2332
    %v3005 = vpack.c.b16 %v2361, %v2333
    %v3006 = vpack.c.b16 %v2362, %v2334
    %v3007 = vpack.c.b16 %v2363, %v2335
    %v3008 = vpack.c.b16 %v2364, %v2336
    %v3009 = vpack.c.b16 %v2365, %v2337
    %v3010 = vpack.c.b16 %v2366, %v2338
    %v3011 = vpack.c.b16 %v2367, %v2339
    %v3012 = vpack.c.b16 %v2368, %v2340
    %v3013 = vpack.c.b16 %v2369, %v2341
    %v3014 = vpack.c.b16 %v2370, %v2342
    %v3015 = vpack.c.b16 %v2399, %v2371
    %v3016 = vpack.c.b16 %v2400, %v2372
    %v3017 = vpack.c.b16 %v2401, %v2373
    %v3018 = vpack.c.b16 %v2402, %v2374
    %v3019 = vpack.c.b16 %v2403, %v2375
    %v3020 = vpack.c.b16 %v2404, %v2376
    %v3021 = vpack.c.b16 %v2405, %v2377
    %v3022 = vpack.c.b16 %v2406, %v2378
    %v3023 = vpack.c.b16 %v2407, %v2379
    %v3024 = vpack.c.b16 %v2408, %v2380
    %v3025 = vpack.c.b16 %v2409, %v2381
    %v3026 = vpack.c.b16 %v2410, %v2382
    %v3027 = vpack.c.b16 %v2411, %v2383
    %v3028 = vpack.c.b16 %v2412, %v2384
    %v3029 = vpack.c.b16 %v2413, %v2385
    %v3030 = vpack.c.b16 %v2414, %v2386
    %v3031 = vpack.c.b16 %v2415, %v2387
    %v3032 = vpack.c.b16 %v2416, %v2388
    %v3033 = vpack.c.b16 %v2417, %v2389
    %v3034 = vpack.c.b16 %v2418, %v2390
    %v3035 = vpack.c.b16 %v2419, %v2391
    %v3036 = vpack.c.b16 %v2420, %v2392
    %v3037 = vpack.c.b16 %v2421, %v2393
    %v3038 = vpack.c.b16 %v2422, %v2394
    %v3039 = vpack.c.b16 %v2423, %v2395
    %v3040 = vpack.c.b16 %v2424, %v2396
    %v3041 = vpack.c.b16 %v2425, %v2397
    %v3042 = vpack.c.b16 %v2426, %v2398
    %v3043 = vpack.c.b16 %v2455, %v2427
    %v3044 = vpack.c.b16 %v2456, %v2428
    %v3045 = vpack.c.b16 %v2457, %v2429
    %v3046 = vpack.c.b16 %v2458, %v2430
    %v3047 = vpack.c.b16 %v2459, %v2431
    %v3048 = vpack.c.b16 %v2460, %v2432
    %v3049 = vpack.c.b16 %v2461, %v2433
    %v3050 = vpack.c.b16 %v2462, %v2434
    %v3051 = vpack.c.b16 %v2463, %v2435
    %v3052 = vpack.c.b16 %v2464, %v2436
    %v3053 = vpack.c.b16 %v2465, %v2437
    %v3054 = vpack.c.b16 %v2466, %v2438
    %v3055 = vpack.c.b16 %v2467, %v2439
    %v3056 = vpack.c.b16 %v2468, %v2440
    %v3057 = vpack.c.b16 %v2469, %v2441
    %v3058 = vpack.c.b16 %v2470, %v2442
    %v3059 = vpack.c.b16 %v2471, %v2443
    %v3060 = vpack.c.b16 %v2472, %v2444
    %v3061 = vpack.c.b16 %v2473, %v2445
    %v3062 = vpack.c.b16 %v2474, %v2446
    %v3063 = vpack.c.b16 %v2475, %v2447
    %v3064 = vpack.c.b16 %v2476, %v2448
    %v3065 = vpack.c.b16 %v2477, %v2449
    %v3066 = vpack.c.b16 %v2478, %v2450
    %v3067 = vpack.c.b16 %v2479, %v2451
    %v3068 = vpack.c.b16 %v2480, %v2452
    %v3069 = vpack.c.b16 %v2481, %v2453
    %v3070 = vpack.c.b16 %v2482, %v2454
    %vm3659 = vcmask 654336
    %v3661 = vsel %vm3659, %v716, 0
    %3663 = vmatprep.subr.bf16.mxu0 %v2484
    %3664 = vmatpush1.bf16.msra.mxu0 %v2483
    %3665 = vmatprep.subr.bf16.mxu0 %v2512
    %3666 = vmatpush1.bf16.msra.mxu0 %v2511
    %3667 = vmatprep.subr.bf16.mxu0 %v2540
    %3668 = vmatpush1.bf16.msra.mxu0 %v2539
    %3669 = vmatprep.subr.bf16.mxu0 %v2568
    %3670 = vmatpush1.bf16.msra.mxu0 %v2567
    %3671 = vmatprep.subr.bf16.mxu0 %v2596
    %3672 = vmatpush1.bf16.msra.mxu0 %v2595
    %3673 = vmatprep.subr.bf16.mxu0 %v2624
    %3674 = vmatpush1.bf16.msra.mxu0 %v2623
    %3675 = vmatprep.subr.bf16.mxu0 %v2652
    %3676 = vmatpush1.bf16.msra.mxu0 %v2651
    %3677 = vmatprep.subr.bf16.mxu0 %v2680
    %3678 = vmatpush1.bf16.msra.mxu0 %v2679
    %3679 = vmatprep.subr.bf16.mxu0 %v2708
    %3680 = vmatpush1.bf16.msra.mxu0 %v2707
    %3681 = vmatprep.subr.bf16.mxu0 %v2736
    %3682 = vmatpush1.bf16.msra.mxu0 %v2735
    %3683 = vmatprep.subr.bf16.mxu0 %v2764
    %3684 = vmatpush1.bf16.msra.mxu0 %v2763
    %3685 = vmatprep.subr.bf16.mxu0 %v2792
    %3686 = vmatpush1.bf16.msra.mxu0 %v2791
    %3687 = vmatprep.subr.bf16.mxu0 %v2820
    %3688 = vmatpush1.bf16.msra.mxu0 %v2819
    %3689 = vmatprep.subr.bf16.mxu0 %v2848
    %3690 = vmatpush1.bf16.msra.mxu0 %v2847
    %3691 = vmatprep.subr.bf16.mxu0 %v2876
    %3692 = vmatpush1.bf16.msra.mxu0 %v2875
    %3693 = vmatprep.subr.bf16.mxu0 %v2904
    %3694 = vmatpush1.bf16.msra.mxu0 %v2903
    %3695 = vmatprep.mubr.bf16.mxu0 %v715
    %3696 = vmatmul.mubr.bf16.gmra.mrb[0].mxu0 %v714
    %v3697 = vpop.f32.mrb[0].mxu0
    %v3698 = vadd.f32 0.0, %v3697
    %v3699 = vpop.f32.mrb[0].mxu0
    %v3700 = vadd.f32 0.0, %v3699
    %v3701 = vpop.f32.mrb[0].mxu0
    %v3702 = vpop.f32.mrb[0].mxu0
    %3703 = vdwg.mxu0
    %3704 = vmatprep.subr.bf16.mxu0 %v2932
    %3705 = vmatpush1.bf16.msra.mxu0 %v2931
    %3706 = vmatprep.subr.bf16.mxu0 %v2960
    %3707 = vmatpush1.bf16.msra.mxu0 %v2959
    %3708 = vmatprep.subr.bf16.mxu0 %v2988
    %3709 = vmatpush1.bf16.msra.mxu0 %v2987
    %3710 = vmatprep.subr.bf16.mxu0 %v3016
    %3711 = vmatpush1.bf16.msra.mxu0 %v3015
    %3712 = vmatprep.subr.bf16.mxu0 %v3044
    %3713 = vmatpush1.bf16.msra.mxu0 %v3043
    %3714 = vmatprep.subr.bf16.mxu0 0
    %3715 = vmatpush1.bf16.msra.mxu0 0
    %3716 = vmatprep.subr.bf16.mxu0 0
    %3717 = vmatpush1.bf16.msra.mxu0 0
    %3718 = vmatprep.subr.bf16.mxu0 0
    %3719 = vmatpush1.bf16.msra.mxu0 0
    %3720 = vmatprep.subr.bf16.mxu0 0
    %3721 = vmatpush1.bf16.msra.mxu0 0
    %3722 = vmatprep.subr.bf16.mxu0 0
    %3723 = vmatpush1.bf16.msra.mxu0 0
    %3724 = vmatprep.subr.bf16.mxu0 0
    %3725 = vmatpush1.bf16.msra.mxu0 0
    %3726 = vmatprep.subr.bf16.mxu0 0
    %3727 = vmatpush1.bf16.msra.mxu0 0
    %3728 = vmatprep.subr.bf16.mxu0 0
    %3729 = vmatpush1.bf16.msra.mxu0 0
    %3730 = vmatprep.subr.bf16.mxu0 0
    %3731 = vmatpush1.bf16.msra.mxu0 0
    %3732 = vmatprep.subr.bf16.mxu0 0
    %3733 = vmatpush1.bf16.msra.mxu0 0
    %3734 = vmatprep.subr.bf16.mxu0 0
    %3735 = vmatpush1.bf16.msra.mxu0 0
    %3736 = vmatprep.mubr.bf16.mxu0 0
    %3737 = vmatmul.mubr.bf16.gmra.mrb[0].mxu0 %v3661
    %v3738 = vpop.f32.mrb[0].mxu0
    %v3739 = vadd.f32 %v3698, %v3738
    %v3740 = vpop.f32.mrb[0].mxu0
    %v3741 = vadd.f32 %v3700, %v3740
    %v3742 = vpop.f32.mrb[0].mxu0
    %v3743 = vpop.f32.mrb[0].mxu0
    %3744 = vdwg.mxu0
    %3745 = vmatprep.subr.bf16.mxu0 %v2486
    %3746 = vmatpush1.bf16.msra.mxu0 %v2485
    %3747 = vmatprep.subr.bf16.mxu0 %v2514
    %3748 = vmatpush1.bf16.msra.mxu0 %v2513
    %3749 = vmatprep.subr.bf16.mxu0 %v2542
    %3750 = vmatpush1.bf16.msra.mxu0 %v2541
    %3751 = vmatprep.subr.bf16.mxu0 %v2570
    %3752 = vmatpush1.bf16.msra.mxu0 %v2569
    %3753 = vmatprep.subr.bf16.mxu0 %v2598
    %3754 = vmatpush1.bf16.msra.mxu0 %v2597
    %3755 = vmatprep.subr.bf16.mxu0 %v2626
    %3756 = vmatpush1.bf16.msra.mxu0 %v2625
    %3757 = vmatprep.subr.bf16.mxu0 %v2654
    %3758 = vmatpush1.bf16.msra.mxu0 %v2653
    %3759 = vmatprep.subr.bf16.mxu0 %v2682
    %3760 = vmatpush1.bf16.msra.mxu0 %v2681
    %3761 = vmatprep.subr.bf16.mxu0 %v2710
    %3762 = vmatpush1.bf16.msra.mxu0 %v2709
    %3763 = vmatprep.subr.bf16.mxu0 %v2738
    %3764 = vmatpush1.bf16.msra.mxu0 %v2737
    %3765 = vmatprep.subr.bf16.mxu0 %v2766
    %3766 = vmatpush1.bf16.msra.mxu0 %v2765
    %3767 = vmatprep.subr.bf16.mxu0 %v2794
    %3768 = vmatpush1.bf16.msra.mxu0 %v2793
    %3769 = vmatprep.subr.bf16.mxu0 %v2822
    %3770 = vmatpush1.bf16.msra.mxu0 %v2821
    %3771 = vmatprep.subr.bf16.mxu0 %v2850
    %3772 = vmatpush1.bf16.msra.mxu0 %v2849
    %3773 = vmatprep.subr.bf16.mxu0 %v2878
    %3774 = vmatpush1.bf16.msra.mxu0 %v2877
    %3775 = vmatprep.subr.bf16.mxu0 %v2906
    %3776 = vmatpush1.bf16.msra.mxu0 %v2905
    %3777 = vmatprep.mubr.bf16.mxu0 %v715
    %3778 = vmatmul.mubr.bf16.gmra.mrb[0].mxu0 %v714
    %v3779 = vpop.f32.mrb[0].mxu0
    %v3780 = vadd.f32 0.0, %v3779
    %v3781 = vpop.f32.mrb[0].mxu0
    %v3782 = vadd.f32 0.0, %v3781
    %v3783 = vpop.f32.mrb[0].mxu0
    %v3784 = vpop.f32.mrb[0].mxu0
    %3785 = vdwg.mxu0
    %3786 = vmatprep.subr.bf16.mxu0 %v2934
    %3787 = vmatpush1.bf16.msra.mxu0 %v2933
    %3788 = vmatprep.subr.bf16.mxu0 %v2962
    %3789 = vmatpush1.bf16.msra.mxu0 %v2961
    %3790 = vmatprep.subr.bf16.mxu0 %v2990
    %3791 = vmatpush1.bf16.msra.mxu0 %v2989
    %3792 = vmatprep.subr.bf16.mxu0 %v3018
    %3793 = vmatpush1.bf16.msra.mxu0 %v3017
    %3794 = vmatprep.subr.bf16.mxu0 %v3046
    %3795 = vmatpush1.bf16.msra.mxu0 %v3045
    %3796 = vmatprep.subr.bf16.mxu0 0
    %3797 = vmatpush1.bf16.msra.mxu0 0
    %3798 = vmatprep.subr.bf16.mxu0 0
    %3799 = vmatpush1.bf16.msra.mxu0 0
    %3800 = vmatprep.subr.bf16.mxu0 0
    %3801 = vmatpush1.bf16.msra.mxu0 0
    %3802 = vmatprep.subr.bf16.mxu0 0
    %3803 = vmatpush1.bf16.msra.mxu0 0
    %3804 = vmatprep.subr.bf16.mxu0 0
    %3805 = vmatpush1.bf16.msra.mxu0 0
    %3806 = vmatprep.subr.bf16.mxu0 0
    %3807 = vmatpush1.bf16.msra.mxu0 0
    %3808 = vmatprep.subr.bf16.mxu0 0
    %3809 = vmatpush1.bf16.msra.mxu0 0
    %3810 = vmatprep.subr.bf16.mxu0 0
    %3811 = vmatpush1.bf16.msra.mxu0 0
    %3812 = vmatprep.subr.bf16.mxu0 0
    %3813 = vmatpush1.bf16.msra.mxu0 0
    %3814 = vmatprep.subr.bf16.mxu0 0
    %3815 = vmatpush1.bf16.msra.mxu0 0
    %3816 = vmatprep.subr.bf16.mxu0 0
    %3817 = vmatpush1.bf16.msra.mxu0 0
    %3818 = vmatprep.mubr.bf16.mxu0 0
    %3819 = vmatmul.mubr.bf16.gmra.mrb[0].mxu0 %v3661
    %v3820 = vpop.f32.mrb[0].mxu0
    %v3821 = vadd.f32 %v3780, %v3820
    %v3822 = vpop.f32.mrb[0].mxu0
    %v3823 = vadd.f32 %v3782, %v3822
    %v3824 = vpop.f32.mrb[0].mxu0
    %v3825 = vpop.f32.mrb[0].mxu0
    %3826 = vdwg.mxu0
    %3827 = vmatprep.subr.bf16.mxu0 %v2488
    %3828 = vmatpush1.bf16.msra.mxu0 %v2487
    %3829 = vmatprep.subr.bf16.mxu0 %v2516
    %3830 = vmatpush1.bf16.msra.mxu0 %v2515
    %3831 = vmatprep.subr.bf16.mxu0 %v2544
    %3832 = vmatpush1.bf16.msra.mxu0 %v2543
    %3833 = vmatprep.subr.bf16.mxu0 %v2572
    %3834 = vmatpush1.bf16.msra.mxu0 %v2571
    %3835 = vmatprep.subr.bf16.mxu0 %v2600
    %3836 = vmatpush1.bf16.msra.mxu0 %v2599
    %3837 = vmatprep.subr.bf16.mxu0 %v2628
    %3838 = vmatpush1.bf16.msra.mxu0 %v2627
    %3839 = vmatprep.subr.bf16.mxu0 %v2656
    %3840 = vmatpush1.bf16.msra.mxu0 %v2655
    %3841 = vmatprep.subr.bf16.mxu0 %v2684
    %3842 = vmatpush1.bf16.msra.mxu0 %v2683
    %3843 = vmatprep.subr.bf16.mxu0 %v2712
    %3844 = vmatpush1.bf16.msra.mxu0 %v2711
    %3845 = vmatprep.subr.bf16.mxu0 %v2740
    %3846 = vmatpush1.bf16.msra.mxu0 %v2739
    %3847 = vmatprep.subr.bf16.mxu0 %v2768
    %3848 = vmatpush1.bf16.msra.mxu0 %v2767
    %3849 = vmatprep.subr.bf16.mxu0 %v2796
    %3850 = vmatpush1.bf16.msra.mxu0 %v2795
    %3851 = vmatprep.subr.bf16.mxu0 %v2824
    %3852 = vmatpush1.bf16.msra.mxu0 %v2823
    %3853 = vmatprep.subr.bf16.mxu0 %v2852
    %3854 = vmatpush1.bf16.msra.mxu0 %v2851
    %3855 = vmatprep.subr.bf16.mxu0 %v2880
    %3856 = vmatpush1.bf16.msra.mxu0 %v2879
    %3857 = vmatprep.subr.bf16.mxu0 %v2908
    %3858 = vmatpush1.bf16.msra.mxu0 %v2907
    %3859 = vmatprep.mubr.bf16.mxu0 %v715
    %3860 = vmatmul.mubr.bf16.gmra.mrb[0].mxu0 %v714
    %v3861 = vpop.f32.mrb[0].mxu0
    %v3862 = vadd.f32 0.0, %v3861
    %v3863 = vpop.f32.mrb[0].mxu0
    %v3864 = vadd.f32 0.0, %v3863
    %v3865 = vpop.f32.mrb[0].mxu0
    %v3866 = vpop.f32.mrb[0].mxu0
    %3867 = vdwg.mxu0
    %3868 = vmatprep.subr.bf16.mxu0 %v2936
    %3869 = vmatpush1.bf16.msra.mxu0 %v2935
    %3870 = vmatprep.subr.bf16.mxu0 %v2964
    %3871 = vmatpush1.bf16.msra.mxu0 %v2963
    %3872 = vmatprep.subr.bf16.mxu0 %v2992
    %3873 = vmatpush1.bf16.msra.mxu0 %v2991
    %3874 = vmatprep.subr.bf16.mxu0 %v3020
    %3875 = vmatpush1.bf16.msra.mxu0 %v3019
    %3876 = vmatprep.subr.bf16.mxu0 %v3048
    %3877 = vmatpush1.bf16.msra.mxu0 %v3047
    %3878 = vmatprep.subr.bf16.mxu0 0
    %3879 = vmatpush1.bf16.msra.mxu0 0
    %3880 = vmatprep.subr.bf16.mxu0 0
    %3881 = vmatpush1.bf16.msra.mxu0 0
    %3882 = vmatprep.subr.bf16.mxu0 0
    %3883 = vmatpush1.bf16.msra.mxu0 0
    %3884 = vmatprep.subr.bf16.mxu0 0
    %3885 = vmatpush1.bf16.msra.mxu0 0
    %3886 = vmatprep.subr.bf16.mxu0 0
    %3887 = vmatpush1.bf16.msra.mxu0 0
    %3888 = vmatprep.subr.bf16.mxu0 0
    %3889 = vmatpush1.bf16.msra.mxu0 0
    %3890 = vmatprep.subr.bf16.mxu0 0
    %3891 = vmatpush1.bf16.msra.mxu0 0
    %3892 = vmatprep.subr.bf16.mxu0 0
    %3893 = vmatpush1.bf16.msra.mxu0 0
    %3894 = vmatprep.subr.bf16.mxu0 0
    %3895 = vmatpush1.bf16.msra.mxu0 0
    %3896 = vmatprep.subr.bf16.mxu0 0
    %3897 = vmatpush1.bf16.msra.mxu0 0
    %3898 = vmatprep.subr.bf16.mxu0 0
    %3899 = vmatpush1.bf16.msra.mxu0 0
    %3900 = vmatprep.mubr.bf16.mxu0 0
    %3901 = vmatmul.mubr.bf16.gmra.mrb[0].mxu0 %v3661
    %v3902 = vpop.f32.mrb[0].mxu0
    %v3903 = vadd.f32 %v3862, %v3902
    %v3904 = vpop.f32.mrb[0].mxu0
    %v3905 = vadd.f32 %v3864, %v3904
    %v3906 = vpop.f32.mrb[0].mxu0
    %v3907 = vpop.f32.mrb[0].mxu0
    %3908 = vdwg.mxu0
    %3909 = vmatprep.subr.bf16.mxu0 %v2490
    %3910 = vmatpush1.bf16.msra.mxu0 %v2489
    %3911 = vmatprep.subr.bf16.mxu0 %v2518
    %3912 = vmatpush1.bf16.msra.mxu0 %v2517
    %3913 = vmatprep.subr.bf16.mxu0 %v2546
    %3914 = vmatpush1.bf16.msra.mxu0 %v2545
    %3915 = vmatprep.subr.bf16.mxu0 %v2574
    %3916 = vmatpush1.bf16.msra.mxu0 %v2573
    %3917 = vmatprep.subr.bf16.mxu0 %v2602
    %3918 = vmatpush1.bf16.msra.mxu0 %v2601
    %3919 = vmatprep.subr.bf16.mxu0 %v2630
    %3920 = vmatpush1.bf16.msra.mxu0 %v2629
    %3921 = vmatprep.subr.bf16.mxu0 %v2658
    %3922 = vmatpush1.bf16.msra.mxu0 %v2657
    %3923 = vmatprep.subr.bf16.mxu0 %v2686
    %3924 = vmatpush1.bf16.msra.mxu0 %v2685
    %3925 = vmatprep.subr.bf16.mxu0 %v2714
    %3926 = vmatpush1.bf16.msra.mxu0 %v2713
    %3927 = vmatprep.subr.bf16.mxu0 %v2742
    %3928 = vmatpush1.bf16.msra.mxu0 %v2741
    %3929 = vmatprep.subr.bf16.mxu0 %v2770
    %3930 = vmatpush1.bf16.msra.mxu0 %v2769
    %3931 = vmatprep.subr.bf16.mxu0 %v2798
    %3932 = vmatpush1.bf16.msra.mxu0 %v2797
    %3933 = vmatprep.subr.bf16.mxu0 %v2826
    %3934 = vmatpush1.bf16.msra.mxu0 %v2825
    %3935 = vmatprep.subr.bf16.mxu0 %v2854
    %3936 = vmatpush1.bf16.msra.mxu0 %v2853
    %3937 = vmatprep.subr.bf16.mxu0 %v2882
    %3938 = vmatpush1.bf16.msra.mxu0 %v2881
    %3939 = vmatprep.subr.bf16.mxu0 %v2910
    %3940 = vmatpush1.bf16.msra.mxu0 %v2909
    %3941 = vmatprep.mubr.bf16.mxu0 %v715
    %3942 = vmatmul.mubr.bf16.gmra.mrb[0].mxu0 %v714
    %v3943 = vpop.f32.mrb[0].mxu0
    %v3944 = vadd.f32 0.0, %v3943
    %v3945 = vpop.f32.mrb[0].mxu0
    %v3946 = vadd.f32 0.0, %v3945
    %v3947 = vpop.f32.mrb[0].mxu0
    %v3948 = vpop.f32.mrb[0].mxu0
    %3949 = vdwg.mxu0
    %3950 = vmatprep.subr.bf16.mxu0 %v2938
    %3951 = vmatpush1.bf16.msra.mxu0 %v2937
    %3952 = vmatprep.subr.bf16.mxu0 %v2966
    %3953 = vmatpush1.bf16.msra.mxu0 %v2965
    %3954 = vmatprep.subr.bf16.mxu0 %v2994
    %3955 = vmatpush1.bf16.msra.mxu0 %v2993
    %3956 = vmatprep.subr.bf16.mxu0 %v3022
    %3957 = vmatpush1.bf16.msra.mxu0 %v3021
    %3958 = vmatprep.subr.bf16.mxu0 %v3050
    %3959 = vmatpush1.bf16.msra.mxu0 %v3049
    %3960 = vmatprep.subr.bf16.mxu0 0
    %3961 = vmatpush1.bf16.msra.mxu0 0
    %3962 = vmatprep.subr.bf16.mxu0 0
    %3963 = vmatpush1.bf16.msra.mxu0 0
    %3964 = vmatprep.subr.bf16.mxu0 0
    %3965 = vmatpush1.bf16.msra.mxu0 0
    %3966 = vmatprep.subr.bf16.mxu0 0
    %3967 = vmatpush1.bf16.msra.mxu0 0
    %3968 = vmatprep.subr.bf16.mxu0 0
    %3969 = vmatpush1.bf16.msra.mxu0 0
    %3970 = vmatprep.subr.bf16.mxu0 0
    %3971 = vmatpush1.bf16.msra.mxu0 0
    %3972 = vmatprep.subr.bf16.mxu0 0
    %3973 = vmatpush1.bf16.msra.mxu0 0
    %3974 = vmatprep.subr.bf16.mxu0 0
    %3975 = vmatpush1.bf16.msra.mxu0 0
    %3976 = vmatprep.subr.bf16.mxu0 0
    %3977 = vmatpush1.bf16.msra.mxu0 0
    %3978 = vmatprep.subr.bf16.mxu0 0
    %3979 = vmatpush1.bf16.msra.mxu0 0
    %3980 = vmatprep.subr.bf16.mxu0 0
    %3981 = vmatpush1.bf16.msra.mxu0 0
    %3982 = vmatprep.mubr.bf16.mxu0 0
    %3983 = vmatmul.mubr.bf16.gmra.mrb[0].mxu0 %v3661
    %v3984 = vpop.f32.mrb[0].mxu0
    %v3985 = vadd.f32 %v3944, %v3984
    %v3986 = vpop.f32.mrb[0].mxu0
    %v3987 = vadd.f32 %v3946, %v3986
    %v3988 = vpop.f32.mrb[0].mxu0
    %v3989 = vpop.f32.mrb[0].mxu0
    %3990 = vdwg.mxu0
    %3991 = vmatprep.subr.bf16.mxu0 %v2492
    %3992 = vmatpush1.bf16.msra.mxu0 %v2491
    %3993 = vmatprep.subr.bf16.mxu0 %v2520
    %3994 = vmatpush1.bf16.msra.mxu0 %v2519
    %3995 = vmatprep.subr.bf16.mxu0 %v2548
    %3996 = vmatpush1.bf16.msra.mxu0 %v2547
    %3997 = vmatprep.subr.bf16.mxu0 %v2576
    %3998 = vmatpush1.bf16.msra.mxu0 %v2575
    %3999 = vmatprep.subr.bf16.mxu0 %v2604
    %4000 = vmatpush1.bf16.msra.mxu0 %v2603
    %4001 = vmatprep.subr.bf16.mxu0 %v2632
    %4002 = vmatpush1.bf16.msra.mxu0 %v2631
    %4003 = vmatprep.subr.bf16.mxu0 %v2660
    %4004 = vmatpush1.bf16.msra.mxu0 %v2659
    %4005 = vmatprep.subr.bf16.mxu0 %v2688
    %4006 = vmatpush1.bf16.msra.mxu0 %v2687
    %4007 = vmatprep.subr.bf16.mxu0 %v2716
    %4008 = vmatpush1.bf16.msra.mxu0 %v2715
    %4009 = vmatprep.subr.bf16.mxu0 %v2744
    %4010 = vmatpush1.bf16.msra.mxu0 %v2743
    %4011 = vmatprep.subr.bf16.mxu0 %v2772
    %4012 = vmatpush1.bf16.msra.mxu0 %v2771
    %4013 = vmatprep.subr.bf16.mxu0 %v2800
    %4014 = vmatpush1.bf16.msra.mxu0 %v2799
    %4015 = vmatprep.subr.bf16.mxu0 %v2828
    %4016 = vmatpush1.bf16.msra.mxu0 %v2827
    %4017 = vmatprep.subr.bf16.mxu0 %v2856
    %4018 = vmatpush1.bf16.msra.mxu0 %v2855
    %4019 = vmatprep.subr.bf16.mxu0 %v2884
    %4020 = vmatpush1.bf16.msra.mxu0 %v2883
    %4021 = vmatprep.subr.bf16.mxu0 %v2912
    %4022 = vmatpush1.bf16.msra.mxu0 %v2911
    %4023 = vmatprep.mubr.bf16.mxu0 %v715
    %4024 = vmatmul.mubr.bf16.gmra.mrb[0].mxu0 %v714
    %v4025 = vpop.f32.mrb[0].mxu0
    %v4026 = vadd.f32 0.0, %v4025
    %v4027 = vpop.f32.mrb[0].mxu0
    %v4028 = vadd.f32 0.0, %v4027
    %v4029 = vpop.f32.mrb[0].mxu0
    %v4030 = vpop.f32.mrb[0].mxu0
    %4031 = vdwg.mxu0
    %4032 = vmatprep.subr.bf16.mxu0 %v2940
    %4033 = vmatpush1.bf16.msra.mxu0 %v2939
    %4034 = vmatprep.subr.bf16.mxu0 %v2968
    %4035 = vmatpush1.bf16.msra.mxu0 %v2967
    %4036 = vmatprep.subr.bf16.mxu0 %v2996
    %4037 = vmatpush1.bf16.msra.mxu0 %v2995
    %4038 = vmatprep.subr.bf16.mxu0 %v3024
    %4039 = vmatpush1.bf16.msra.mxu0 %v3023
    %4040 = vmatprep.subr.bf16.mxu0 %v3052
    %4041 = vmatpush1.bf16.msra.mxu0 %v3051
    %4042 = vmatprep.subr.bf16.mxu0 0
    %4043 = vmatpush1.bf16.msra.mxu0 0
    %4044 = vmatprep.subr.bf16.mxu0 0
    %4045 = vmatpush1.bf16.msra.mxu0 0
    %4046 = vmatprep.subr.bf16.mxu0 0
    %4047 = vmatpush1.bf16.msra.mxu0 0
    %4048 = vmatprep.subr.bf16.mxu0 0
    %4049 = vmatpush1.bf16.msra.mxu0 0
    %4050 = vmatprep.subr.bf16.mxu0 0
    %4051 = vmatpush1.bf16.msra.mxu0 0
    %4052 = vmatprep.subr.bf16.mxu0 0
    %4053 = vmatpush1.bf16.msra.mxu0 0
    %4054 = vmatprep.subr.bf16.mxu0 0
    %4055 = vmatpush1.bf16.msra.mxu0 0
    %4056 = vmatprep.subr.bf16.mxu0 0
    %4057 = vmatpush1.bf16.msra.mxu0 0
    %4058 = vmatprep.subr.bf16.mxu0 0
    %4059 = vmatpush1.bf16.msra.mxu0 0
    %4060 = vmatprep.subr.bf16.mxu0 0
    %4061 = vmatpush1.bf16.msra.mxu0 0
    %4062 = vmatprep.subr.bf16.mxu0 0
    %4063 = vmatpush1.bf16.msra.mxu0 0
    %4064 = vmatprep.mubr.bf16.mxu0 0
    %4065 = vmatmul.mubr.bf16.gmra.mrb[0].mxu0 %v3661
    %v4066 = vpop.f32.mrb[0].mxu0
    %v4067 = vadd.f32 %v4026, %v4066
    %v4068 = vpop.f32.mrb[0].mxu0
    %v4069 = vadd.f32 %v4028, %v4068
    %v4070 = vpop.f32.mrb[0].mxu0
    %v4071 = vpop.f32.mrb[0].mxu0
    %4072 = vdwg.mxu0
    %4073 = vmatprep.subr.bf16.mxu0 %v2494
    %4074 = vmatpush1.bf16.msra.mxu0 %v2493
    %4075 = vmatprep.subr.bf16.mxu0 %v2522
    %4076 = vmatpush1.bf16.msra.mxu0 %v2521
    %4077 = vmatprep.subr.bf16.mxu0 %v2550
    %4078 = vmatpush1.bf16.msra.mxu0 %v2549
    %4079 = vmatprep.subr.bf16.mxu0 %v2578
    %4080 = vmatpush1.bf16.msra.mxu0 %v2577
    %4081 = vmatprep.subr.bf16.mxu0 %v2606
    %4082 = vmatpush1.bf16.msra.mxu0 %v2605
    %4083 = vmatprep.subr.bf16.mxu0 %v2634
    %4084 = vmatpush1.bf16.msra.mxu0 %v2633
    %4085 = vmatprep.subr.bf16.mxu0 %v2662
    %4086 = vmatpush1.bf16.msra.mxu0 %v2661
    %4087 = vmatprep.subr.bf16.mxu0 %v2690
    %4088 = vmatpush1.bf16.msra.mxu0 %v2689
    %4089 = vmatprep.subr.bf16.mxu0 %v2718
    %4090 = vmatpush1.bf16.msra.mxu0 %v2717
    %4091 = vmatprep.subr.bf16.mxu0 %v2746
    %4092 = vmatpush1.bf16.msra.mxu0 %v2745
    %4093 = vmatprep.subr.bf16.mxu0 %v2774
    %4094 = vmatpush1.bf16.msra.mxu0 %v2773
    %4095 = vmatprep.subr.bf16.mxu0 %v2802
    %4096 = vmatpush1.bf16.msra.mxu0 %v2801
    %4097 = vmatprep.subr.bf16.mxu0 %v2830
    %4098 = vmatpush1.bf16.msra.mxu0 %v2829
    %4099 = vmatprep.subr.bf16.mxu0 %v2858
    %4100 = vmatpush1.bf16.msra.mxu0 %v2857
    %4101 = vmatprep.subr.bf16.mxu0 %v2886
    %4102 = vmatpush1.bf16.msra.mxu0 %v2885
    %4103 = vmatprep.subr.bf16.mxu0 %v2914
    %4104 = vmatpush1.bf16.msra.mxu0 %v2913
    %4105 = vmatprep.mubr.bf16.mxu0 %v715
    %4106 = vmatmul.mubr.bf16.gmra.mrb[0].mxu0 %v714
    %v4107 = vpop.f32.mrb[0].mxu0
    %v4108 = vadd.f32 0.0, %v4107
    %v4109 = vpop.f32.mrb[0].mxu0
    %v4110 = vadd.f32 0.0, %v4109
    %v4111 = vpop.f32.mrb[0].mxu0
    %v4112 = vpop.f32.mrb[0].mxu0
    %4113 = vdwg.mxu0
    %4114 = vmatprep.subr.bf16.mxu0 %v2942
    %4115 = vmatpush1.bf16.msra.mxu0 %v2941
    %4116 = vmatprep.subr.bf16.mxu0 %v2970
    %4117 = vmatpush1.bf16.msra.mxu0 %v2969
    %4118 = vmatprep.subr.bf16.mxu0 %v2998
    %4119 = vmatpush1.bf16.msra.mxu0 %v2997
    %4120 = vmatprep.subr.bf16.mxu0 %v3026
    %4121 = vmatpush1.bf16.msra.mxu0 %v3025
    %4122 = vmatprep.subr.bf16.mxu0 %v3054
    %4123 = vmatpush1.bf16.msra.mxu0 %v3053
    %4124 = vmatprep.subr.bf16.mxu0 0
    %4125 = vmatpush1.bf16.msra.mxu0 0
    %4126 = vmatprep.subr.bf16.mxu0 0
    %4127 = vmatpush1.bf16.msra.mxu0 0
    %4128 = vmatprep.subr.bf16.mxu0 0
    %4129 = vmatpush1.bf16.msra.mxu0 0
    %4130 = vmatprep.subr.bf16.mxu0 0
    %4131 = vmatpush1.bf16.msra.mxu0 0
    %4132 = vmatprep.subr.bf16.mxu0 0
    %4133 = vmatpush1.bf16.msra.mxu0 0
    %4134 = vmatprep.subr.bf16.mxu0 0
    %4135 = vmatpush1.bf16.msra.mxu0 0
    %4136 = vmatprep.subr.bf16.mxu0 0
    %4137 = vmatpush1.bf16.msra.mxu0 0
    %4138 = vmatprep.subr.bf16.mxu0 0
    %4139 = vmatpush1.bf16.msra.mxu0 0
    %4140 = vmatprep.subr.bf16.mxu0 0
    %4141 = vmatpush1.bf16.msra.mxu0 0
    %4142 = vmatprep.subr.bf16.mxu0 0
    %4143 = vmatpush1.bf16.msra.mxu0 0
    %4144 = vmatprep.subr.bf16.mxu0 0
    %4145 = vmatpush1.bf16.msra.mxu0 0
    %4146 = vmatprep.mubr.bf16.mxu0 0
    %4147 = vmatmul.mubr.bf16.gmra.mrb[0].mxu0 %v3661
    %v4148 = vpop.f32.mrb[0].mxu0
    %v4149 = vadd.f32 %v4108, %v4148
    %v4150 = vpop.f32.mrb[0].mxu0
    %v4151 = vadd.f32 %v4110, %v4150
    %v4152 = vpop.f32.mrb[0].mxu0
    %v4153 = vpop.f32.mrb[0].mxu0
    %4154 = vdwg.mxu0
    %4155 = vmatprep.subr.bf16.mxu0 %v2496
    %4156 = vmatpush1.bf16.msra.mxu0 %v2495
    %4157 = vmatprep.subr.bf16.mxu0 %v2524
    %4158 = vmatpush1.bf16.msra.mxu0 %v2523
    %4159 = vmatprep.subr.bf16.mxu0 %v2552
    %4160 = vmatpush1.bf16.msra.mxu0 %v2551
    %4161 = vmatprep.subr.bf16.mxu0 %v2580
    %4162 = vmatpush1.bf16.msra.mxu0 %v2579
    %4163 = vmatprep.subr.bf16.mxu0 %v2608
    %4164 = vmatpush1.bf16.msra.mxu0 %v2607
    %4165 = vmatprep.subr.bf16.mxu0 %v2636
    %4166 = vmatpush1.bf16.msra.mxu0 %v2635
    %4167 = vmatprep.subr.bf16.mxu0 %v2664
    %4168 = vmatpush1.bf16.msra.mxu0 %v2663
    %4169 = vmatprep.subr.bf16.mxu0 %v2692
    %4170 = vmatpush1.bf16.msra.mxu0 %v2691
    %4171 = vmatprep.subr.bf16.mxu0 %v2720
    %4172 = vmatpush1.bf16.msra.mxu0 %v2719
    %4173 = vmatprep.subr.bf16.mxu0 %v2748
    %4174 = vmatpush1.bf16.msra.mxu0 %v2747
    %4175 = vmatprep.subr.bf16.mxu0 %v2776
    %4176 = vmatpush1.bf16.msra.mxu0 %v2775
    %4177 = vmatprep.subr.bf16.mxu0 %v2804
    %4178 = vmatpush1.bf16.msra.mxu0 %v2803
    %4179 = vmatprep.subr.bf16.mxu0 %v2832
    %4180 = vmatpush1.bf16.msra.mxu0 %v2831
    %4181 = vmatprep.subr.bf16.mxu0 %v2860
    %4182 = vmatpush1.bf16.msra.mxu0 %v2859
    %4183 = vmatprep.subr.bf16.mxu0 %v2888
    %4184 = vmatpush1.bf16.msra.mxu0 %v2887
    %4185 = vmatprep.subr.bf16.mxu0 %v2916
    %4186 = vmatpush1.bf16.msra.mxu0 %v2915
    %4187 = vmatprep.mubr.bf16.mxu0 %v715
    %4188 = vmatmul.mubr.bf16.gmra.mrb[0].mxu0 %v714
    %v4189 = vpop.f32.mrb[0].mxu0
    %v4190 = vadd.f32 0.0, %v4189
    %v4191 = vpop.f32.mrb[0].mxu0
    %v4192 = vadd.f32 0.0, %v4191
    %v4193 = vpop.f32.mrb[0].mxu0
    %v4194 = vpop.f32.mrb[0].mxu0
    %4195 = vdwg.mxu0
    %4196 = vmatprep.subr.bf16.mxu0 %v2944
    %4197 = vmatpush1.bf16.msra.mxu0 %v2943
    %4198 = vmatprep.subr.bf16.mxu0 %v2972
    %4199 = vmatpush1.bf16.msra.mxu0 %v2971
    %4200 = vmatprep.subr.bf16.mxu0 %v3000
    %4201 = vmatpush1.bf16.msra.mxu0 %v2999
    %4202 = vmatprep.subr.bf16.mxu0 %v3028
    %4203 = vmatpush1.bf16.msra.mxu0 %v3027
    %4204 = vmatprep.subr.bf16.mxu0 %v3056
    %4205 = vmatpush1.bf16.msra.mxu0 %v3055
    %4206 = vmatprep.subr.bf16.mxu0 0
    %4207 = vmatpush1.bf16.msra.mxu0 0
    %4208 = vmatprep.subr.bf16.mxu0 0
    %4209 = vmatpush1.bf16.msra.mxu0 0
    %4210 = vmatprep.subr.bf16.mxu0 0
    %4211 = vmatpush1.bf16.msra.mxu0 0
    %4212 = vmatprep.subr.bf16.mxu0 0
    %4213 = vmatpush1.bf16.msra.mxu0 0
    %4214 = vmatprep.subr.bf16.mxu0 0
    %4215 = vmatpush1.bf16.msra.mxu0 0
    %4216 = vmatprep.subr.bf16.mxu0 0
    %4217 = vmatpush1.bf16.msra.mxu0 0
    %4218 = vmatprep.subr.bf16.mxu0 0
    %4219 = vmatpush1.bf16.msra.mxu0 0
    %4220 = vmatprep.subr.bf16.mxu0 0
    %4221 = vmatpush1.bf16.msra.mxu0 0
    %4222 = vmatprep.subr.bf16.mxu0 0
    %4223 = vmatpush1.bf16.msra.mxu0 0
    %4224 = vmatprep.subr.bf16.mxu0 0
    %4225 = vmatpush1.bf16.msra.mxu0 0
    %4226 = vmatprep.subr.bf16.mxu0 0
    %4227 = vmatpush1.bf16.msra.mxu0 0
    %4228 = vmatprep.mubr.bf16.mxu0 0
    %4229 = vmatmul.mubr.bf16.gmra.mrb[0].mxu0 %v3661
    %v4230 = vpop.f32.mrb[0].mxu0
    %v4231 = vadd.f32 %v4190, %v4230
    %v4232 = vpop.f32.mrb[0].mxu0
    %v4233 = vadd.f32 %v4192, %v4232
    %v4234 = vpop.f32.mrb[0].mxu0
    %v4235 = vpop.f32.mrb[0].mxu0
    %4236 = vdwg.mxu0
    %4237 = vmatprep.subr.bf16.mxu0 %v2498
    %4238 = vmatpush1.bf16.msra.mxu0 %v2497
    %4239 = vmatprep.subr.bf16.mxu0 %v2526
    %4240 = vmatpush1.bf16.msra.mxu0 %v2525
    %4241 = vmatprep.subr.bf16.mxu0 %v2554
    %4242 = vmatpush1.bf16.msra.mxu0 %v2553
    %4243 = vmatprep.subr.bf16.mxu0 %v2582
    %4244 = vmatpush1.bf16.msra.mxu0 %v2581
    %4245 = vmatprep.subr.bf16.mxu0 %v2610
    %4246 = vmatpush1.bf16.msra.mxu0 %v2609
    %4247 = vmatprep.subr.bf16.mxu0 %v2638
    %4248 = vmatpush1.bf16.msra.mxu0 %v2637
    %4249 = vmatprep.subr.bf16.mxu0 %v2666
    %4250 = vmatpush1.bf16.msra.mxu0 %v2665
    %4251 = vmatprep.subr.bf16.mxu0 %v2694
    %4252 = vmatpush1.bf16.msra.mxu0 %v2693
    %4253 = vmatprep.subr.bf16.mxu0 %v2722
    %4254 = vmatpush1.bf16.msra.mxu0 %v2721
    %4255 = vmatprep.subr.bf16.mxu0 %v2750
    %4256 = vmatpush1.bf16.msra.mxu0 %v2749
    %4257 = vmatprep.subr.bf16.mxu0 %v2778
    %4258 = vmatpush1.bf16.msra.mxu0 %v2777
    %4259 = vmatprep.subr.bf16.mxu0 %v2806
    %4260 = vmatpush1.bf16.msra.mxu0 %v2805
    %4261 = vmatprep.subr.bf16.mxu0 %v2834
    %4262 = vmatpush1.bf16.msra.mxu0 %v2833
    %4263 = vmatprep.subr.bf16.mxu0 %v2862
    %4264 = vmatpush1.bf16.msra.mxu0 %v2861
    %4265 = vmatprep.subr.bf16.mxu0 %v2890
    %4266 = vmatpush1.bf16.msra.mxu0 %v2889
    %4267 = vmatprep.subr.bf16.mxu0 %v2918
    %4268 = vmatpush1.bf16.msra.mxu0 %v2917
    %4269 = vmatprep.mubr.bf16.mxu0 %v715
    %4270 = vmatmul.mubr.bf16.gmra.mrb[0].mxu0 %v714
    %v4271 = vpop.f32.mrb[0].mxu0
    %v4272 = vadd.f32 0.0, %v4271
    %v4273 = vpop.f32.mrb[0].mxu0
    %v4274 = vadd.f32 0.0, %v4273
    %v4275 = vpop.f32.mrb[0].mxu0
    %v4276 = vpop.f32.mrb[0].mxu0
    %4277 = vdwg.mxu0
    %4278 = vmatprep.subr.bf16.mxu0 %v2946
    %4279 = vmatpush1.bf16.msra.mxu0 %v2945
    %4280 = vmatprep.subr.bf16.mxu0 %v2974
    %4281 = vmatpush1.bf16.msra.mxu0 %v2973
    %4282 = vmatprep.subr.bf16.mxu0 %v3002
    %4283 = vmatpush1.bf16.msra.mxu0 %v3001
    %4284 = vmatprep.subr.bf16.mxu0 %v3030
    %4285 = vmatpush1.bf16.msra.mxu0 %v3029
    %4286 = vmatprep.subr.bf16.mxu0 %v3058
    %4287 = vmatpush1.bf16.msra.mxu0 %v3057
    %4288 = vmatprep.subr.bf16.mxu0 0
    %4289 = vmatpush1.bf16.msra.mxu0 0
    %4290 = vmatprep.subr.bf16.mxu0 0
    %4291 = vmatpush1.bf16.msra.mxu0 0
    %4292 = vmatprep.subr.bf16.mxu0 0
    %4293 = vmatpush1.bf16.msra.mxu0 0
    %4294 = vmatprep.subr.bf16.mxu0 0
    %4295 = vmatpush1.bf16.msra.mxu0 0
    %4296 = vmatprep.subr.bf16.mxu0 0
    %4297 = vmatpush1.bf16.msra.mxu0 0
    %4298 = vmatprep.subr.bf16.mxu0 0
    %4299 = vmatpush1.bf16.msra.mxu0 0
    %4300 = vmatprep.subr.bf16.mxu0 0
    %4301 = vmatpush1.bf16.msra.mxu0 0
    %4302 = vmatprep.subr.bf16.mxu0 0
    %4303 = vmatpush1.bf16.msra.mxu0 0
    %4304 = vmatprep.subr.bf16.mxu0 0
    %4305 = vmatpush1.bf16.msra.mxu0 0
    %4306 = vmatprep.subr.bf16.mxu0 0
    %4307 = vmatpush1.bf16.msra.mxu0 0
    %4308 = vmatprep.subr.bf16.mxu0 0
    %4309 = vmatpush1.bf16.msra.mxu0 0
    %4310 = vmatprep.mubr.bf16.mxu0 0
    %4311 = vmatmul.mubr.bf16.gmra.mrb[0].mxu0 %v3661
    %v4312 = vpop.f32.mrb[0].mxu0
    %v4313 = vadd.f32 %v4272, %v4312
    %v4314 = vpop.f32.mrb[0].mxu0
    %v4315 = vadd.f32 %v4274, %v4314
    %v4316 = vpop.f32.mrb[0].mxu0
    %v4317 = vpop.f32.mrb[0].mxu0
    %4318 = vdwg.mxu0
    %4319 = vmatprep.subr.bf16.mxu0 %v2500
    %4320 = vmatpush1.bf16.msra.mxu0 %v2499
    %4321 = vmatprep.subr.bf16.mxu0 %v2528
    %4322 = vmatpush1.bf16.msra.mxu0 %v2527
    %4323 = vmatprep.subr.bf16.mxu0 %v2556
    %4324 = vmatpush1.bf16.msra.mxu0 %v2555
    %4325 = vmatprep.subr.bf16.mxu0 %v2584
    %4326 = vmatpush1.bf16.msra.mxu0 %v2583
    %4327 = vmatprep.subr.bf16.mxu0 %v2612
    %4328 = vmatpush1.bf16.msra.mxu0 %v2611
    %4329 = vmatprep.subr.bf16.mxu0 %v2640
    %4330 = vmatpush1.bf16.msra.mxu0 %v2639
    %4331 = vmatprep.subr.bf16.mxu0 %v2668
    %4332 = vmatpush1.bf16.msra.mxu0 %v2667
    %4333 = vmatprep.subr.bf16.mxu0 %v2696
    %4334 = vmatpush1.bf16.msra.mxu0 %v2695
    %4335 = vmatprep.subr.bf16.mxu0 %v2724
    %4336 = vmatpush1.bf16.msra.mxu0 %v2723
    %4337 = vmatprep.subr.bf16.mxu0 %v2752
    %4338 = vmatpush1.bf16.msra.mxu0 %v2751
    %4339 = vmatprep.subr.bf16.mxu0 %v2780
    %4340 = vmatpush1.bf16.msra.mxu0 %v2779
    %4341 = vmatprep.subr.bf16.mxu0 %v2808
    %4342 = vmatpush1.bf16.msra.mxu0 %v2807
    %4343 = vmatprep.subr.bf16.mxu0 %v2836
    %4344 = vmatpush1.bf16.msra.mxu0 %v2835
    %4345 = vmatprep.subr.bf16.mxu0 %v2864
    %4346 = vmatpush1.bf16.msra.mxu0 %v2863
    %4347 = vmatprep.subr.bf16.mxu0 %v2892
    %4348 = vmatpush1.bf16.msra.mxu0 %v2891
    %4349 = vmatprep.subr.bf16.mxu0 %v2920
    %4350 = vmatpush1.bf16.msra.mxu0 %v2919
    %4351 = vmatprep.mubr.bf16.mxu0 %v715
    %4352 = vmatmul.mubr.bf16.gmra.mrb[0].mxu0 %v714
    %v4353 = vpop.f32.mrb[0].mxu0
    %v4354 = vadd.f32 0.0, %v4353
    %v4355 = vpop.f32.mrb[0].mxu0
    %v4356 = vadd.f32 0.0, %v4355
    %v4357 = vpop.f32.mrb[0].mxu0
    %v4358 = vpop.f32.mrb[0].mxu0
    %4359 = vdwg.mxu0
    %4360 = vmatprep.subr.bf16.mxu0 %v2948
    %4361 = vmatpush1.bf16.msra.mxu0 %v2947
    %4362 = vmatprep.subr.bf16.mxu0 %v2976
    %4363 = vmatpush1.bf16.msra.mxu0 %v2975
    %4364 = vmatprep.subr.bf16.mxu0 %v3004
    %4365 = vmatpush1.bf16.msra.mxu0 %v3003
    %4366 = vmatprep.subr.bf16.mxu0 %v3032
    %4367 = vmatpush1.bf16.msra.mxu0 %v3031
    %4368 = vmatprep.subr.bf16.mxu0 %v3060
    %4369 = vmatpush1.bf16.msra.mxu0 %v3059
    %4370 = vmatprep.subr.bf16.mxu0 0
    %4371 = vmatpush1.bf16.msra.mxu0 0
    %4372 = vmatprep.subr.bf16.mxu0 0
    %4373 = vmatpush1.bf16.msra.mxu0 0
    %4374 = vmatprep.subr.bf16.mxu0 0
    %4375 = vmatpush1.bf16.msra.mxu0 0
    %4376 = vmatprep.subr.bf16.mxu0 0
    %4377 = vmatpush1.bf16.msra.mxu0 0
    %4378 = vmatprep.subr.bf16.mxu0 0
    %4379 = vmatpush1.bf16.msra.mxu0 0
    %4380 = vmatprep.subr.bf16.mxu0 0
    %4381 = vmatpush1.bf16.msra.mxu0 0
    %4382 = vmatprep.subr.bf16.mxu0 0
    %4383 = vmatpush1.bf16.msra.mxu0 0
    %4384 = vmatprep.subr.bf16.mxu0 0
    %4385 = vmatpush1.bf16.msra.mxu0 0
    %4386 = vmatprep.subr.bf16.mxu0 0
    %4387 = vmatpush1.bf16.msra.mxu0 0
    %4388 = vmatprep.subr.bf16.mxu0 0
    %4389 = vmatpush1.bf16.msra.mxu0 0
    %4390 = vmatprep.subr.bf16.mxu0 0
    %4391 = vmatpush1.bf16.msra.mxu0 0
    %4392 = vmatprep.mubr.bf16.mxu0 0
    %4393 = vmatmul.mubr.bf16.gmra.mrb[0].mxu0 %v3661
    %v4394 = vpop.f32.mrb[0].mxu0
    %v4395 = vadd.f32 %v4354, %v4394
    %v4396 = vpop.f32.mrb[0].mxu0
    %v4397 = vadd.f32 %v4356, %v4396
    %v4398 = vpop.f32.mrb[0].mxu0
    %v4399 = vpop.f32.mrb[0].mxu0
    %4400 = vdwg.mxu0
    %4401 = vmatprep.subr.bf16.mxu0 %v2502
    %4402 = vmatpush1.bf16.msra.mxu0 %v2501
    %4403 = vmatprep.subr.bf16.mxu0 %v2530
    %4404 = vmatpush1.bf16.msra.mxu0 %v2529
    %4405 = vmatprep.subr.bf16.mxu0 %v2558
    %4406 = vmatpush1.bf16.msra.mxu0 %v2557
    %4407 = vmatprep.subr.bf16.mxu0 %v2586
    %4408 = vmatpush1.bf16.msra.mxu0 %v2585
    %4409 = vmatprep.subr.bf16.mxu0 %v2614
    %4410 = vmatpush1.bf16.msra.mxu0 %v2613
    %4411 = vmatprep.subr.bf16.mxu0 %v2642
    %4412 = vmatpush1.bf16.msra.mxu0 %v2641
    %4413 = vmatprep.subr.bf16.mxu0 %v2670
    %4414 = vmatpush1.bf16.msra.mxu0 %v2669
    %4415 = vmatprep.subr.bf16.mxu0 %v2698
    %4416 = vmatpush1.bf16.msra.mxu0 %v2697
    %4417 = vmatprep.subr.bf16.mxu0 %v2726
    %4418 = vmatpush1.bf16.msra.mxu0 %v2725
    %4419 = vmatprep.subr.bf16.mxu0 %v2754
    %4420 = vmatpush1.bf16.msra.mxu0 %v2753
    %4421 = vmatprep.subr.bf16.mxu0 %v2782
    %4422 = vmatpush1.bf16.msra.mxu0 %v2781
    %4423 = vmatprep.subr.bf16.mxu0 %v2810
    %4424 = vmatpush1.bf16.msra.mxu0 %v2809
    %4425 = vmatprep.subr.bf16.mxu0 %v2838
    %4426 = vmatpush1.bf16.msra.mxu0 %v2837
    %4427 = vmatprep.subr.bf16.mxu0 %v2866
    %4428 = vmatpush1.bf16.msra.mxu0 %v2865
    %4429 = vmatprep.subr.bf16.mxu0 %v2894
    %4430 = vmatpush1.bf16.msra.mxu0 %v2893
    %4431 = vmatprep.subr.bf16.mxu0 %v2922
    %4432 = vmatpush1.bf16.msra.mxu0 %v2921
    %4433 = vmatprep.mubr.bf16.mxu0 %v715
    %4434 = vmatmul.mubr.bf16.gmra.mrb[0].mxu0 %v714
    %v4435 = vpop.f32.mrb[0].mxu0
    %v4436 = vadd.f32 0.0, %v4435
    %v4437 = vpop.f32.mrb[0].mxu0
    %v4438 = vadd.f32 0.0, %v4437
    %v4439 = vpop.f32.mrb[0].mxu0
    %v4440 = vpop.f32.mrb[0].mxu0
    %4441 = vdwg.mxu0
    %4442 = vmatprep.subr.bf16.mxu0 %v2950
    %4443 = vmatpush1.bf16.msra.mxu0 %v2949
    %4444 = vmatprep.subr.bf16.mxu0 %v2978
    %4445 = vmatpush1.bf16.msra.mxu0 %v2977
    %4446 = vmatprep.subr.bf16.mxu0 %v3006
    %4447 = vmatpush1.bf16.msra.mxu0 %v3005
    %4448 = vmatprep.subr.bf16.mxu0 %v3034
    %4449 = vmatpush1.bf16.msra.mxu0 %v3033
    %4450 = vmatprep.subr.bf16.mxu0 %v3062
    %4451 = vmatpush1.bf16.msra.mxu0 %v3061
    %4452 = vmatprep.subr.bf16.mxu0 0
    %4453 = vmatpush1.bf16.msra.mxu0 0
    %4454 = vmatprep.subr.bf16.mxu0 0
    %4455 = vmatpush1.bf16.msra.mxu0 0
    %4456 = vmatprep.subr.bf16.mxu0 0
    %4457 = vmatpush1.bf16.msra.mxu0 0
    %4458 = vmatprep.subr.bf16.mxu0 0
    %4459 = vmatpush1.bf16.msra.mxu0 0
    %4460 = vmatprep.subr.bf16.mxu0 0
    %4461 = vmatpush1.bf16.msra.mxu0 0
    %4462 = vmatprep.subr.bf16.mxu0 0
    %4463 = vmatpush1.bf16.msra.mxu0 0
    %4464 = vmatprep.subr.bf16.mxu0 0
    %4465 = vmatpush1.bf16.msra.mxu0 0
    %4466 = vmatprep.subr.bf16.mxu0 0
    %4467 = vmatpush1.bf16.msra.mxu0 0
    %4468 = vmatprep.subr.bf16.mxu0 0
    %4469 = vmatpush1.bf16.msra.mxu0 0
    %4470 = vmatprep.subr.bf16.mxu0 0
    %4471 = vmatpush1.bf16.msra.mxu0 0
    %4472 = vmatprep.subr.bf16.mxu0 0
    %4473 = vmatpush1.bf16.msra.mxu0 0
    %4474 = vmatprep.mubr.bf16.mxu0 0
    %4475 = vmatmul.mubr.bf16.gmra.mrb[0].mxu0 %v3661
    %v4476 = vpop.f32.mrb[0].mxu0
    %v4477 = vadd.f32 %v4436, %v4476
    %v4478 = vpop.f32.mrb[0].mxu0
    %v4479 = vadd.f32 %v4438, %v4478
    %v4480 = vpop.f32.mrb[0].mxu0
    %v4481 = vpop.f32.mrb[0].mxu0
    %4482 = vdwg.mxu0
    %4483 = vmatprep.subr.bf16.mxu0 %v2504
    %4484 = vmatpush1.bf16.msra.mxu0 %v2503
    %4485 = vmatprep.subr.bf16.mxu0 %v2532
    %4486 = vmatpush1.bf16.msra.mxu0 %v2531
    %4487 = vmatprep.subr.bf16.mxu0 %v2560
    %4488 = vmatpush1.bf16.msra.mxu0 %v2559
    %4489 = vmatprep.subr.bf16.mxu0 %v2588
    %4490 = vmatpush1.bf16.msra.mxu0 %v2587
    %4491 = vmatprep.subr.bf16.mxu0 %v2616
    %4492 = vmatpush1.bf16.msra.mxu0 %v2615
    %4493 = vmatprep.subr.bf16.mxu0 %v2644
    %4494 = vmatpush1.bf16.msra.mxu0 %v2643
    %4495 = vmatprep.subr.bf16.mxu0 %v2672
    %4496 = vmatpush1.bf16.msra.mxu0 %v2671
    %4497 = vmatprep.subr.bf16.mxu0 %v2700
    %4498 = vmatpush1.bf16.msra.mxu0 %v2699
    %4499 = vmatprep.subr.bf16.mxu0 %v2728
    %4500 = vmatpush1.bf16.msra.mxu0 %v2727
    %4501 = vmatprep.subr.bf16.mxu0 %v2756
    %4502 = vmatpush1.bf16.msra.mxu0 %v2755
    %4503 = vmatprep.subr.bf16.mxu0 %v2784
    %4504 = vmatpush1.bf16.msra.mxu0 %v2783
    %4505 = vmatprep.subr.bf16.mxu0 %v2812
    %4506 = vmatpush1.bf16.msra.mxu0 %v2811
    %4507 = vmatprep.subr.bf16.mxu0 %v2840
    %4508 = vmatpush1.bf16.msra.mxu0 %v2839
    %4509 = vmatprep.subr.bf16.mxu0 %v2868
    %4510 = vmatpush1.bf16.msra.mxu0 %v2867
    %4511 = vmatprep.subr.bf16.mxu0 %v2896
    %4512 = vmatpush1.bf16.msra.mxu0 %v2895
    %4513 = vmatprep.subr.bf16.mxu0 %v2924
    %4514 = vmatpush1.bf16.msra.mxu0 %v2923
    %4515 = vmatprep.mubr.bf16.mxu0 %v715
    %4516 = vmatmul.mubr.bf16.gmra.mrb[0].mxu0 %v714
    %v4517 = vpop.f32.mrb[0].mxu0
    %v4518 = vadd.f32 0.0, %v4517
    %v4519 = vpop.f32.mrb[0].mxu0
    %v4520 = vadd.f32 0.0, %v4519
    %v4521 = vpop.f32.mrb[0].mxu0
    %v4522 = vpop.f32.mrb[0].mxu0
    %4523 = vdwg.mxu0
    %4524 = vmatprep.subr.bf16.mxu0 %v2952
    %4525 = vmatpush1.bf16.msra.mxu0 %v2951
    %4526 = vmatprep.subr.bf16.mxu0 %v2980
    %4527 = vmatpush1.bf16.msra.mxu0 %v2979
    %4528 = vmatprep.subr.bf16.mxu0 %v3008
    %4529 = vmatpush1.bf16.msra.mxu0 %v3007
    %4530 = vmatprep.subr.bf16.mxu0 %v3036
    %4531 = vmatpush1.bf16.msra.mxu0 %v3035
    %4532 = vmatprep.subr.bf16.mxu0 %v3064
    %4533 = vmatpush1.bf16.msra.mxu0 %v3063
    %4534 = vmatprep.subr.bf16.mxu0 0
    %4535 = vmatpush1.bf16.msra.mxu0 0
    %4536 = vmatprep.subr.bf16.mxu0 0
    %4537 = vmatpush1.bf16.msra.mxu0 0
    %4538 = vmatprep.subr.bf16.mxu0 0
    %4539 = vmatpush1.bf16.msra.mxu0 0
    %4540 = vmatprep.subr.bf16.mxu0 0
    %4541 = vmatpush1.bf16.msra.mxu0 0
    %4542 = vmatprep.subr.bf16.mxu0 0
    %4543 = vmatpush1.bf16.msra.mxu0 0
    %4544 = vmatprep.subr.bf16.mxu0 0
    %4545 = vmatpush1.bf16.msra.mxu0 0
    %4546 = vmatprep.subr.bf16.mxu0 0
    %4547 = vmatpush1.bf16.msra.mxu0 0
    %4548 = vmatprep.subr.bf16.mxu0 0
    %4549 = vmatpush1.bf16.msra.mxu0 0
    %4550 = vmatprep.subr.bf16.mxu0 0
    %4551 = vmatpush1.bf16.msra.mxu0 0
    %4552 = vmatprep.subr.bf16.mxu0 0
    %4553 = vmatpush1.bf16.msra.mxu0 0
    %4554 = vmatprep.subr.bf16.mxu0 0
    %4555 = vmatpush1.bf16.msra.mxu0 0
    %4556 = vmatprep.mubr.bf16.mxu0 0
    %4557 = vmatmul.mubr.bf16.gmra.mrb[0].mxu0 %v3661
    %v4558 = vpop.f32.mrb[0].mxu0
    %v4559 = vadd.f32 %v4518, %v4558
    %v4560 = vpop.f32.mrb[0].mxu0
    %v4561 = vadd.f32 %v4520, %v4560
    %v4562 = vpop.f32.mrb[0].mxu0
    %v4563 = vpop.f32.mrb[0].mxu0
    %4564 = vdwg.mxu0
    %4565 = vmatprep.subr.bf16.mxu0 %v2506
    %4566 = vmatpush1.bf16.msra.mxu0 %v2505
    %4567 = vmatprep.subr.bf16.mxu0 %v2534
    %4568 = vmatpush1.bf16.msra.mxu0 %v2533
    %4569 = vmatprep.subr.bf16.mxu0 %v2562
    %4570 = vmatpush1.bf16.msra.mxu0 %v2561
    %4571 = vmatprep.subr.bf16.mxu0 %v2590
    %4572 = vmatpush1.bf16.msra.mxu0 %v2589
    %4573 = vmatprep.subr.bf16.mxu0 %v2618
    %4574 = vmatpush1.bf16.msra.mxu0 %v2617
    %4575 = vmatprep.subr.bf16.mxu0 %v2646
    %4576 = vmatpush1.bf16.msra.mxu0 %v2645
    %4577 = vmatprep.subr.bf16.mxu0 %v2674
    %4578 = vmatpush1.bf16.msra.mxu0 %v2673
    %4579 = vmatprep.subr.bf16.mxu0 %v2702
    %4580 = vmatpush1.bf16.msra.mxu0 %v2701
    %4581 = vmatprep.subr.bf16.mxu0 %v2730
    %4582 = vmatpush1.bf16.msra.mxu0 %v2729
    %4583 = vmatprep.subr.bf16.mxu0 %v2758
    %4584 = vmatpush1.bf16.msra.mxu0 %v2757
    %4585 = vmatprep.subr.bf16.mxu0 %v2786
    %4586 = vmatpush1.bf16.msra.mxu0 %v2785
    %4587 = vmatprep.subr.bf16.mxu0 %v2814
    %4588 = vmatpush1.bf16.msra.mxu0 %v2813
    %4589 = vmatprep.subr.bf16.mxu0 %v2842
    %4590 = vmatpush1.bf16.msra.mxu0 %v2841
    %4591 = vmatprep.subr.bf16.mxu0 %v2870
    %4592 = vmatpush1.bf16.msra.mxu0 %v2869
    %4593 = vmatprep.subr.bf16.mxu0 %v2898
    %4594 = vmatpush1.bf16.msra.mxu0 %v2897
    %4595 = vmatprep.subr.bf16.mxu0 %v2926
    %4596 = vmatpush1.bf16.msra.mxu0 %v2925
    %4597 = vmatprep.mubr.bf16.mxu0 %v715
    %4598 = vmatmul.mubr.bf16.gmra.mrb[0].mxu0 %v714
    %v4599 = vpop.f32.mrb[0].mxu0
    %v4600 = vadd.f32 0.0, %v4599
    %v4601 = vpop.f32.mrb[0].mxu0
    %v4602 = vadd.f32 0.0, %v4601
    %v4603 = vpop.f32.mrb[0].mxu0
    %v4604 = vpop.f32.mrb[0].mxu0
    %4605 = vdwg.mxu0
    %4606 = vmatprep.subr.bf16.mxu0 %v2954
    %4607 = vmatpush1.bf16.msra.mxu0 %v2953
    %4608 = vmatprep.subr.bf16.mxu0 %v2982
    %4609 = vmatpush1.bf16.msra.mxu0 %v2981
    %4610 = vmatprep.subr.bf16.mxu0 %v3010
    %4611 = vmatpush1.bf16.msra.mxu0 %v3009
    %4612 = vmatprep.subr.bf16.mxu0 %v3038
    %4613 = vmatpush1.bf16.msra.mxu0 %v3037
    %4614 = vmatprep.subr.bf16.mxu0 %v3066
    %4615 = vmatpush1.bf16.msra.mxu0 %v3065
    %4616 = vmatprep.subr.bf16.mxu0 0
    %4617 = vmatpush1.bf16.msra.mxu0 0
    %4618 = vmatprep.subr.bf16.mxu0 0
    %4619 = vmatpush1.bf16.msra.mxu0 0
    %4620 = vmatprep.subr.bf16.mxu0 0
    %4621 = vmatpush1.bf16.msra.mxu0 0
    %4622 = vmatprep.subr.bf16.mxu0 0
    %4623 = vmatpush1.bf16.msra.mxu0 0
    %4624 = vmatprep.subr.bf16.mxu0 0
    %4625 = vmatpush1.bf16.msra.mxu0 0
    %4626 = vmatprep.subr.bf16.mxu0 0
    %4627 = vmatpush1.bf16.msra.mxu0 0
    %4628 = vmatprep.subr.bf16.mxu0 0
    %4629 = vmatpush1.bf16.msra.mxu0 0
    %4630 = vmatprep.subr.bf16.mxu0 0
    %4631 = vmatpush1.bf16.msra.mxu0 0
    %4632 = vmatprep.subr.bf16.mxu0 0
    %4633 = vmatpush1.bf16.msra.mxu0 0
    %4634 = vmatprep.subr.bf16.mxu0 0
    %4635 = vmatpush1.bf16.msra.mxu0 0
    %4636 = vmatprep.subr.bf16.mxu0 0
    %4637 = vmatpush1.bf16.msra.mxu0 0
    %4638 = vmatprep.mubr.bf16.mxu0 0
    %4639 = vmatmul.mubr.bf16.gmra.mrb[0].mxu0 %v3661
    %v4640 = vpop.f32.mrb[0].mxu0
    %v4641 = vadd.f32 %v4600, %v4640
    %v4642 = vpop.f32.mrb[0].mxu0
    %v4643 = vadd.f32 %v4602, %v4642
    %v4644 = vpop.f32.mrb[0].mxu0
    %v4645 = vpop.f32.mrb[0].mxu0
    %4646 = vdwg.mxu0
    %4647 = vmatprep.subr.bf16.mxu0 %v2508
    %4648 = vmatpush1.bf16.msra.mxu0 %v2507
    %4649 = vmatprep.subr.bf16.mxu0 %v2536
    %4650 = vmatpush1.bf16.msra.mxu0 %v2535
    %4651 = vmatprep.subr.bf16.mxu0 %v2564
    %4652 = vmatpush1.bf16.msra.mxu0 %v2563
    %4653 = vmatprep.subr.bf16.mxu0 %v2592
    %4654 = vmatpush1.bf16.msra.mxu0 %v2591
    %4655 = vmatprep.subr.bf16.mxu0 %v2620
    %4656 = vmatpush1.bf16.msra.mxu0 %v2619
    %4657 = vmatprep.subr.bf16.mxu0 %v2648
    %4658 = vmatpush1.bf16.msra.mxu0 %v2647
    %4659 = vmatprep.subr.bf16.mxu0 %v2676
    %4660 = vmatpush1.bf16.msra.mxu0 %v2675
    %4661 = vmatprep.subr.bf16.mxu0 %v2704
    %4662 = vmatpush1.bf16.msra.mxu0 %v2703
    %4663 = vmatprep.subr.bf16.mxu0 %v2732
    %4664 = vmatpush1.bf16.msra.mxu0 %v2731
    %4665 = vmatprep.subr.bf16.mxu0 %v2760
    %4666 = vmatpush1.bf16.msra.mxu0 %v2759
    %4667 = vmatprep.subr.bf16.mxu0 %v2788
    %4668 = vmatpush1.bf16.msra.mxu0 %v2787
    %4669 = vmatprep.subr.bf16.mxu0 %v2816
    %4670 = vmatpush1.bf16.msra.mxu0 %v2815
    %4671 = vmatprep.subr.bf16.mxu0 %v2844
    %4672 = vmatpush1.bf16.msra.mxu0 %v2843
    %4673 = vmatprep.subr.bf16.mxu0 %v2872
    %4674 = vmatpush1.bf16.msra.mxu0 %v2871
    %4675 = vmatprep.subr.bf16.mxu0 %v2900
    %4676 = vmatpush1.bf16.msra.mxu0 %v2899
    %4677 = vmatprep.subr.bf16.mxu0 %v2928
    %4678 = vmatpush1.bf16.msra.mxu0 %v2927
    %4679 = vmatprep.mubr.bf16.mxu0 %v715
    %4680 = vmatmul.mubr.bf16.gmra.mrb[0].mxu0 %v714
    %v4681 = vpop.f32.mrb[0].mxu0
    %v4682 = vadd.f32 0.0, %v4681
    %v4683 = vpop.f32.mrb[0].mxu0
    %v4684 = vadd.f32 0.0, %v4683
    %v4685 = vpop.f32.mrb[0].mxu0
    %v4686 = vpop.f32.mrb[0].mxu0
    %4687 = vdwg.mxu0
    %4688 = vmatprep.subr.bf16.mxu0 %v2956
    %4689 = vmatpush1.bf16.msra.mxu0 %v2955
    %4690 = vmatprep.subr.bf16.mxu0 %v2984
    %4691 = vmatpush1.bf16.msra.mxu0 %v2983
    %4692 = vmatprep.subr.bf16.mxu0 %v3012
    %4693 = vmatpush1.bf16.msra.mxu0 %v3011
    %4694 = vmatprep.subr.bf16.mxu0 %v3040
    %4695 = vmatpush1.bf16.msra.mxu0 %v3039
    %4696 = vmatprep.subr.bf16.mxu0 %v3068
    %4697 = vmatpush1.bf16.msra.mxu0 %v3067
    %4698 = vmatprep.subr.bf16.mxu0 0
    %4699 = vmatpush1.bf16.msra.mxu0 0
    %4700 = vmatprep.subr.bf16.mxu0 0
    %4701 = vmatpush1.bf16.msra.mxu0 0
    %4702 = vmatprep.subr.bf16.mxu0 0
    %4703 = vmatpush1.bf16.msra.mxu0 0
    %4704 = vmatprep.subr.bf16.mxu0 0
    %4705 = vmatpush1.bf16.msra.mxu0 0
    %4706 = vmatprep.subr.bf16.mxu0 0
    %4707 = vmatpush1.bf16.msra.mxu0 0
    %4708 = vmatprep.subr.bf16.mxu0 0
    %4709 = vmatpush1.bf16.msra.mxu0 0
    %4710 = vmatprep.subr.bf16.mxu0 0
    %4711 = vmatpush1.bf16.msra.mxu0 0
    %4712 = vmatprep.subr.bf16.mxu0 0
    %4713 = vmatpush1.bf16.msra.mxu0 0
    %4714 = vmatprep.subr.bf16.mxu0 0
    %4715 = vmatpush1.bf16.msra.mxu0 0
    %4716 = vmatprep.subr.bf16.mxu0 0
    %4717 = vmatpush1.bf16.msra.mxu0 0
    %4718 = vmatprep.subr.bf16.mxu0 0
    %4719 = vmatpush1.bf16.msra.mxu0 0
    %4720 = vmatprep.mubr.bf16.mxu0 0
    %4721 = vmatmul.mubr.bf16.gmra.mrb[0].mxu0 %v3661
    %v4722 = vpop.f32.mrb[0].mxu0
    %v4723 = vadd.f32 %v4682, %v4722
    %v4724 = vpop.f32.mrb[0].mxu0
    %v4725 = vadd.f32 %v4684, %v4724
    %v4726 = vpop.f32.mrb[0].mxu0
    %v4727 = vpop.f32.mrb[0].mxu0
    %4728 = vdwg.mxu0
    %4729 = vmatprep.subr.bf16.mxu0 %v2510
    %4730 = vmatpush1.bf16.msra.mxu0 %v2509
    %4731 = vmatprep.subr.bf16.mxu0 %v2538
    %4732 = vmatpush1.bf16.msra.mxu0 %v2537
    %4733 = vmatprep.subr.bf16.mxu0 %v2566
    %4734 = vmatpush1.bf16.msra.mxu0 %v2565
    %4735 = vmatprep.subr.bf16.mxu0 %v2594
    %4736 = vmatpush1.bf16.msra.mxu0 %v2593
    %4737 = vmatprep.subr.bf16.mxu0 %v2622
    %4738 = vmatpush1.bf16.msra.mxu0 %v2621
    %4739 = vmatprep.subr.bf16.mxu0 %v2650
    %4740 = vmatpush1.bf16.msra.mxu0 %v2649
    %4741 = vmatprep.subr.bf16.mxu0 %v2678
    %4742 = vmatpush1.bf16.msra.mxu0 %v2677
    %4743 = vmatprep.subr.bf16.mxu0 %v2706
    %4744 = vmatpush1.bf16.msra.mxu0 %v2705
    %4745 = vmatprep.subr.bf16.mxu0 %v2734
    %4746 = vmatpush1.bf16.msra.mxu0 %v2733
    %4747 = vmatprep.subr.bf16.mxu0 %v2762
    %4748 = vmatpush1.bf16.msra.mxu0 %v2761
    %4749 = vmatprep.subr.bf16.mxu0 %v2790
    %4750 = vmatpush1.bf16.msra.mxu0 %v2789
    %4751 = vmatprep.subr.bf16.mxu0 %v2818
    %4752 = vmatpush1.bf16.msra.mxu0 %v2817
    %4753 = vmatprep.subr.bf16.mxu0 %v2846
    %4754 = vmatpush1.bf16.msra.mxu0 %v2845
    %4755 = vmatprep.subr.bf16.mxu0 %v2874
    %4756 = vmatpush1.bf16.msra.mxu0 %v2873
    %4757 = vmatprep.subr.bf16.mxu0 %v2902
    %4758 = vmatpush1.bf16.msra.mxu0 %v2901
    %4759 = vmatprep.subr.bf16.mxu0 %v2930
    %4760 = vmatpush1.bf16.msra.mxu0 %v2929
    %4761 = vmatprep.mubr.bf16.mxu0 %v715
    %4762 = vmatmul.mubr.bf16.gmra.mrb[0].mxu0 %v714
    %v4763 = vpop.f32.mrb[0].mxu0
    %v4764 = vadd.f32 0.0, %v4763
    %v4765 = vpop.f32.mrb[0].mxu0
    %v4766 = vadd.f32 0.0, %v4765
    %v4767 = vpop.f32.mrb[0].mxu0
    %v4768 = vpop.f32.mrb[0].mxu0
    %4769 = vdwg.mxu0
    %4770 = vmatprep.subr.bf16.mxu0 %v2958
    %4771 = vmatpush1.bf16.msra.mxu0 %v2957
    %4772 = vmatprep.subr.bf16.mxu0 %v2986
    %4773 = vmatpush1.bf16.msra.mxu0 %v2985
    %4774 = vmatprep.subr.bf16.mxu0 %v3014
    %4775 = vmatpush1.bf16.msra.mxu0 %v3013
    %4776 = vmatprep.subr.bf16.mxu0 %v3042
    %4777 = vmatpush1.bf16.msra.mxu0 %v3041
    %4778 = vmatprep.subr.bf16.mxu0 %v3070
    %4779 = vmatpush1.bf16.msra.mxu0 %v3069
    %4780 = vmatprep.subr.bf16.mxu0 0
    %4781 = vmatpush1.bf16.msra.mxu0 0
    %4782 = vmatprep.subr.bf16.mxu0 0
    %4783 = vmatpush1.bf16.msra.mxu0 0
    %4784 = vmatprep.subr.bf16.mxu0 0
    %4785 = vmatpush1.bf16.msra.mxu0 0
    %4786 = vmatprep.subr.bf16.mxu0 0
    %4787 = vmatpush1.bf16.msra.mxu0 0
    %4788 = vmatprep.subr.bf16.mxu0 0
    %4789 = vmatpush1.bf16.msra.mxu0 0
    %4790 = vmatprep.subr.bf16.mxu0 0
    %4791 = vmatpush1.bf16.msra.mxu0 0
    %4792 = vmatprep.subr.bf16.mxu0 0
    %4793 = vmatpush1.bf16.msra.mxu0 0
    %4794 = vmatprep.subr.bf16.mxu0 0
    %4795 = vmatpush1.bf16.msra.mxu0 0
    %4796 = vmatprep.subr.bf16.mxu0 0
    %4797 = vmatpush1.bf16.msra.mxu0 0
    %4798 = vmatprep.subr.bf16.mxu0 0
    %4799 = vmatpush1.bf16.msra.mxu0 0
    %4800 = vmatprep.subr.bf16.mxu0 0
    %4801 = vmatpush1.bf16.msra.mxu0 0
    %4802 = vmatprep.mubr.bf16.mxu0 0
    %4803 = vmatmul.mubr.bf16.gmra.mrb[0].mxu0 %v3661
    %v4804 = vpop.f32.mrb[0].mxu0
    %v4805 = vadd.f32 %v4764, %v4804
    %v4806 = vpop.f32.mrb[0].mxu0
    %v4807 = vadd.f32 %v4766, %v4806
    %v4808 = vpop.f32.mrb[0].mxu0
    %v4809 = vpop.f32.mrb[0].mxu0
    %4810 = vdwg.mxu0
    %v4811 = vmax.f32 %v3739, %v3987
    %v4812 = vmax.f32 %v3741, %v4067
    %v4813 = vmax.f32 %v3821, %v4069
    %v4814 = vmax.f32 %v3823, %v4149
    %v4815 = vmax.f32 %v3903, %v4151
    %v4816 = vmax.f32 %v3905, %v4231
    %v4817 = vmax.f32 %v3985, %v4233
    %v4818 = vmax.f32 %v4313, %v4561
    %v4819 = vmax.f32 %v4315, %v4641
    %v4820 = vmax.f32 %v4395, %v4643
    %v4821 = vmax.f32 %v4397, %v4723
    %v4822 = vmax.f32 %v4477, %v4725
    %v4823 = vmax.f32 %v4479, %v4805
    %v4824 = vmax.f32 %v4559, %v4807
    %v4825 = vmax.f32 %v4811, %v4818
    %v4826 = vmax.f32 %v4812, %v4819
    %v4827 = vmax.f32 %v4813, %v4820
    %v4828 = vmax.f32 %v4814, %v4821
    %v4829 = vmax.f32 %v4815, %v4822
    %v4830 = vmax.f32 %v4816, %v4823
    %v4831 = vmax.f32 %v4817, %v4824
    %v4832 = vmax.f32 %v4825, 0.0
    %v4833 = vmax.f32 %v4826, 0.0
    %v4834 = vmax.f32 %v4827, 0.0
    %v4835 = vmax.f32 %v4828, 0.0
    %v4836 = vmax.f32 %v4829, 0.0
    %v4837 = vmax.f32 %v4830, 0.0
    %v4838 = vmax.f32 %v4831, 0.0
    %v4839 = vpack.c.bf16 %v4832, %v4832
    %v4840 = vpack.c.bf16 %v4833, %v4833
    %v4841 = vpack.c.bf16 %v4834, %v4834
    %v4842 = vpack.c.bf16 %v4835, %v4835
    %v4843 = vpack.c.bf16 %v4836, %v4836
    %v4844 = vpack.c.bf16 %v4837, %v4837
    %v4845 = vpack.c.bf16 %v4838, %v4838
    %v4846 = vld [vmem:[#allocation4] sm:$0xff]
    %v4847 = vld [vmem:[#allocation4 + $0x8] sm:$0xff]
    %v4848 = vld [vmem:[#allocation4 + $0x10] sm:$0xff]
    %v4849 = vld [vmem:[#allocation4 + $0x18] sm:$0xff]
    %v4850 = vld [vmem:[#allocation4 + $0x20] sm:$0xff]
    %v4851 = vld [vmem:[#allocation4 + $0x28] sm:$0xff]
    %v4852 = vld [vmem:[#allocation4 + $0x30] sm:$0xff]
    %v4853 = vld [vmem:[#allocation4 + $0x38] sm:$0xff]
    %v4854 = vld [vmem:[#allocation4 + $0x40] sm:$0xff]
    %v4855 = vld [vmem:[#allocation4 + $0x48] sm:$0xff]
    %v4856 = vld [vmem:[#allocation4 + $0x50] sm:$0xff]
    %v4857 = vld [vmem:[#allocation4 + $0x58] sm:$0xff]
    %v4858 = vld [vmem:[#allocation4 + $0x60] sm:$0xff]
    %v4859 = vld [vmem:[#allocation4 + $0x68] sm:$0xff]
    %v4860 = vld [vmem:[#allocation4 + $0x70] sm:$0xff]
    %v4861 = vld [vmem:[#allocation4 + $0x78] sm:$0xff]
    %v4862 = vld [vmem:[#allocation4 + $0x80] sm:$0xff]
    %v4863 = vld [vmem:[#allocation4 + $0x88] sm:$0xff]
    %v4864 = vld [vmem:[#allocation4 + $0x90] sm:$0xff]
    %v4865 = vld [vmem:[#allocation4 + $0x98] sm:$0xff]
    %v4866 = vld [vmem:[#allocation4 + $0xa0] sm:$0xff]
    %v4867 = vld [vmem:[#allocation4 + $0xa8] sm:$0xff]
    %v4868 = vld [vmem:[#allocation4 + $0xb0] sm:$0xff]
    %v4869 = vld [vmem:[#allocation4 + $0xb8] sm:$0xff]
    %v4870 = vld [vmem:[#allocation4 + $0xc0] sm:$0xff]
    %v4871 = vld [vmem:[#allocation4 + $0xc8] sm:$0xff]
    %v4872 = vld [vmem:[#allocation4 + $0xd0] sm:$0xff]
    %v4873 = vld [vmem:[#allocation4 + $0xd8] sm:$0xff]
    %v4874 = vld [vmem:[#allocation4 + $0xe0] sm:$0xff]
    %v4875 = vld [vmem:[#allocation4 + $0xe8] sm:$0xff]
    %v4876 = vld [vmem:[#allocation4 + $0xf0] sm:$0xff]
    %v4877 = vld [vmem:[#allocation4 + $0xf8] sm:$0xff]
    %v4878 = vld [vmem:[#allocation4 + $0x100] sm:$0xff]
    %v4879 = vld [vmem:[#allocation4 + $0x108] sm:$0xff]
    %v4880 = vld [vmem:[#allocation4 + $0x110] sm:$0xff]
    %v4881 = vld [vmem:[#allocation4 + $0x118] sm:$0xff]
    %v4882 = vld [vmem:[#allocation4 + $0x120] sm:$0xff]
    %v4883 = vld [vmem:[#allocation4 + $0x128] sm:$0xff]
    %v4884 = vld [vmem:[#allocation4 + $0x130] sm:$0xff]
    %v4885 = vld [vmem:[#allocation4 + $0x138] sm:$0xff]
    %v4886 = vld [vmem:[#allocation4 + $0x140] sm:$0xff]
    %v4887 = vld [vmem:[#allocation4 + $0x148] sm:$0xff]
    %v4888 = vld [vmem:[#allocation4 + $0x150] sm:$0xff]
    %v4889 = vld [vmem:[#allocation4 + $0x158] sm:$0xff]
    %v4890 = vld [vmem:[#allocation4 + $0x160] sm:$0xff]
    %v4891 = vld [vmem:[#allocation4 + $0x168] sm:$0xff]
    %v4892 = vld [vmem:[#allocation4 + $0x170] sm:$0xff]
    %v4893 = vld [vmem:[#allocation4 + $0x178] sm:$0xff]
    %v4894 = vld [vmem:[#allocation4 + $0x180] sm:$0xff]
    %v4895 = vld [vmem:[#allocation4 + $0x188] sm:$0xff]
    %v4896 = vld [vmem:[#allocation4 + $0x190] sm:$0xff]
    %v4897 = vld [vmem:[#allocation4 + $0x198] sm:$0xff]
    %v4898 = vld [vmem:[#allocation4 + $0x1a0] sm:$0xff]
    %v4899 = vld [vmem:[#allocation4 + $0x1a8] sm:$0xff]
    %v4900 = vld [vmem:[#allocation4 + $0x1b0] sm:$0xff]
    %v4901 = vld [vmem:[#allocation4 + $0x1b8] sm:$0xff]
    %v4902 = vld [vmem:[#allocation4 + $0x1c0] sm:$0xff]
    %v4903 = vld [vmem:[#allocation4 + $0x1c8] sm:$0xff]
    %v4904 = vld [vmem:[#allocation4 + $0x1d0] sm:$0xff]
    %v4905 = vld [vmem:[#allocation4 + $0x1d8] sm:$0xff]
    %v4906 = vld [vmem:[#allocation4 + $0x1e0] sm:$0xff]
    %v4907 = vld [vmem:[#allocation4 + $0x1e8] sm:$0xff]
    %v4908 = vld [vmem:[#allocation4 + $0x1f0] sm:$0xff]
    %v4909 = vld [vmem:[#allocation4 + $0x1f8] sm:$0xff]
    %v4910 = vld [vmem:[#allocation4 + $0x200] sm:$0xff]
    %v4911 = vld [vmem:[#allocation4 + $0x208] sm:$0xff]
    %v4912 = vld [vmem:[#allocation4 + $0x210] sm:$0xff]
    %v4913 = vld [vmem:[#allocation4 + $0x218] sm:$0xff]
    %v4914 = vld [vmem:[#allocation4 + $0x220] sm:$0xff]
    %v4915 = vld [vmem:[#allocation4 + $0x228] sm:$0xff]
    %v4916 = vld [vmem:[#allocation4 + $0x230] sm:$0xff]
    %v4917 = vld [vmem:[#allocation4 + $0x238] sm:$0xff]
    %v4918 = vld [vmem:[#allocation4 + $0x240] sm:$0xff]
    %v4919 = vld [vmem:[#allocation4 + $0x248] sm:$0xff]
    %v4920 = vld [vmem:[#allocation4 + $0x250] sm:$0xff]
    %v4921 = vld [vmem:[#allocation4 + $0x258] sm:$0xff]
    %v4922 = vld [vmem:[#allocation4 + $0x260] sm:$0xff]
    %v4923 = vld [vmem:[#allocation4 + $0x268] sm:$0xff]
    %v4924 = vld [vmem:[#allocation4 + $0x270] sm:$0xff]
    %v4925 = vld [vmem:[#allocation4 + $0x278] sm:$0xff]
    %v4926 = vld [vmem:[#allocation4 + $0x280] sm:$0xff]
    %v4927 = vld [vmem:[#allocation4 + $0x288] sm:$0xff]
    %v4928 = vld [vmem:[#allocation4 + $0x290] sm:$0xff]
    %v4929 = vld [vmem:[#allocation4 + $0x298] sm:$0xff]
    %v4930 = vld [vmem:[#allocation4 + $0x2a0] sm:$0xff]
    %v4931 = vld [vmem:[#allocation4 + $0x2a8] sm:$0xff]
    %v4932 = vld [vmem:[#allocation4 + $0x2b0] sm:$0xff]
    %v4933 = vld [vmem:[#allocation4 + $0x2b8] sm:$0xff]
    %v4934 = vld [vmem:[#allocation4 + $0x2c0] sm:$0xff]
    %v4935 = vld [vmem:[#allocation4 + $0x2c8] sm:$0xff]
    %v4936 = vld [vmem:[#allocation4 + $0x2d0] sm:$0xff]
    %v4937 = vld [vmem:[#allocation4 + $0x2d8] sm:$0xff]
    %v4938 = vld [vmem:[#allocation4 + $0x2e0] sm:$0xff]
    %v4939 = vld [vmem:[#allocation4 + $0x2e8] sm:$0xff]
    %v4940 = vld [vmem:[#allocation4 + $0x2f0] sm:$0xff]
    %v4941 = vld [vmem:[#allocation4 + $0x2f8] sm:$0xff]
    %v4942 = vld [vmem:[#allocation4 + $0x300] sm:$0xff]
    %v4943 = vld [vmem:[#allocation4 + $0x308] sm:$0xff]
    %v4944 = vld [vmem:[#allocation4 + $0x310] sm:$0xff]
    %v4945 = vld [vmem:[#allocation4 + $0x318] sm:$0xff]
    %v4946 = vld [vmem:[#allocation4 + $0x320] sm:$0xff]
    %v4947 = vld [vmem:[#allocation4 + $0x328] sm:$0xff]
    %v4948 = vld [vmem:[#allocation4 + $0x330] sm:$0xff]
    %v4949 = vld [vmem:[#allocation4 + $0x338] sm:$0xff]
    %v4950 = vld [vmem:[#allocation4 + $0x340] sm:$0xff]
    %v4951 = vld [vmem:[#allocation4 + $0x348] sm:$0xff]
    %v4952 = vld [vmem:[#allocation4 + $0x350] sm:$0xff]
    %v4953 = vld [vmem:[#allocation4 + $0x358] sm:$0xff]
    %v4954 = vld [vmem:[#allocation4 + $0x360] sm:$0xff]
    %v4955 = vld [vmem:[#allocation4 + $0x368] sm:$0xff]
    %v4956 = vld [vmem:[#allocation4 + $0x370] sm:$0xff]
    %v4957 = vld [vmem:[#allocation4 + $0x378] sm:$0xff]
    %v4958 = vld [vmem:[#allocation4 + $0x380] sm:$0xff]
    %v4959 = vld [vmem:[#allocation4 + $0x388] sm:$0xff]
    %v4960 = vld [vmem:[#allocation4 + $0x390] sm:$0xff]
    %v4961 = vld [vmem:[#allocation4 + $0x398] sm:$0xff]
    %v4962 = vld [vmem:[#allocation4 + $0x3a0] sm:$0xff]
    %v4963 = vld [vmem:[#allocation4 + $0x3a8] sm:$0xff]
    %v4964 = vld [vmem:[#allocation4 + $0x3b0] sm:$0xff]
    %v4965 = vld [vmem:[#allocation4 + $0x3b8] sm:$0xff]
    %v4966 = vld [vmem:[#allocation4 + $0x3c0] sm:$0xff]
    %v4967 = vld [vmem:[#allocation4 + $0x3c8] sm:$0xff]
    %v4968 = vld [vmem:[#allocation4 + $0x3d0] sm:$0xff]
    %v4969 = vld [vmem:[#allocation4 + $0x3d8] sm:$0xff]
    %v4970 = vld [vmem:[#allocation4 + $0x3e0] sm:$0xff]
    %v4971 = vld [vmem:[#allocation4 + $0x3e8] sm:$0xff]
    %v4972 = vld [vmem:[#allocation4 + $0x3f0] sm:$0xff]
    %v4973 = vld [vmem:[#allocation4 + $0x3f8] sm:$0xff]
    %v4974 = vld [vmem:[#allocation4 + $0x400] sm:$0xff]
    %v4975 = vld [vmem:[#allocation4 + $0x408] sm:$0xff]
    %v4976 = vld [vmem:[#allocation4 + $0x410] sm:$0xff]
    %v4977 = vld [vmem:[#allocation4 + $0x418] sm:$0xff]
    %v4978 = vld [vmem:[#allocation4 + $0x420] sm:$0xff]
    %v4979 = vld [vmem:[#allocation4 + $0x428] sm:$0xff]
    %v4980 = vld [vmem:[#allocation4 + $0x430] sm:$0xff]
    %v4981 = vld [vmem:[#allocation4 + $0x438] sm:$0xff]
    %v4982 = vld [vmem:[#allocation4 + $0x440] sm:$0xff]
    %v4983 = vld [vmem:[#allocation4 + $0x448] sm:$0xff]
    %v4984 = vld [vmem:[#allocation4 + $0x450] sm:$0xff]
    %v4985 = vld [vmem:[#allocation4 + $0x458] sm:$0xff]
    %v4986 = vld [vmem:[#allocation4 + $0x460] sm:$0xff]
    %v4987 = vld [vmem:[#allocation4 + $0x468] sm:$0xff]
    %v4988 = vld [vmem:[#allocation4 + $0x470] sm:$0xff]
    %v4989 = vld [vmem:[#allocation4 + $0x478] sm:$0xff]
    %v4990 = vld [vmem:[#allocation4 + $0x480] sm:$0xff]
    %v4991 = vld [vmem:[#allocation4 + $0x488] sm:$0xff]
    %v4992 = vld [vmem:[#allocation4 + $0x490] sm:$0xff]
    %v4993 = vld [vmem:[#allocation4 + $0x498] sm:$0xff]
    %v4994 = vld [vmem:[#allocation4 + $0x4a0] sm:$0xff]
    %v4995 = vld [vmem:[#allocation4 + $0x4a8] sm:$0xff]
    %v4996 = vld [vmem:[#allocation4 + $0x4b0] sm:$0xff]
    %v4997 = vld [vmem:[#allocation4 + $0x4b8] sm:$0xff]
    %v4998 = vld [vmem:[#allocation4 + $0x4c0] sm:$0xff]
    %v4999 = vld [vmem:[#allocation4 + $0x4c8] sm:$0xff]
    %v5000 = vld [vmem:[#allocation4 + $0x4d0] sm:$0xff]
    %v5001 = vld [vmem:[#allocation4 + $0x4d8] sm:$0xff]
    %v5002 = vld [vmem:[#allocation4 + $0x4e0] sm:$0xff]
    %v5003 = vld [vmem:[#allocation4 + $0x4e8] sm:$0xff]
    %v5004 = vld [vmem:[#allocation4 + $0x4f0] sm:$0xff]
    %v5005 = vld [vmem:[#allocation4 + $0x4f8] sm:$0xff]
    %v5006 = vld [vmem:[#allocation4 + $0x500] sm:$0xff]
    %v5007 = vld [vmem:[#allocation4 + $0x508] sm:$0xff]
    %v5008 = vld [vmem:[#allocation4 + $0x510] sm:$0xff]
    %v5009 = vld [vmem:[#allocation4 + $0x518] sm:$0xff]
    %v5010 = vld [vmem:[#allocation4 + $0x520] sm:$0xff]
    %v5011 = vld [vmem:[#allocation4 + $0x528] sm:$0xff]
    %v5012 = vld [vmem:[#allocation4 + $0x530] sm:$0xff]
    %v5013 = vld [vmem:[#allocation4 + $0x538] sm:$0xff]
    %v5014 = vld [vmem:[#allocation4 + $0x540] sm:$0xff]
    %v5015 = vld [vmem:[#allocation4 + $0x548] sm:$0xff]
    %v5016 = vld [vmem:[#allocation4 + $0x550] sm:$0xff]
    %v5017 = vld [vmem:[#allocation4 + $0x558] sm:$0xff]
    %v5018 = vld [vmem:[#allocation4 + $0x560] sm:$0xff]
    %v5019 = vld [vmem:[#allocation4 + $0x568] sm:$0xff]
    %v5020 = vld [vmem:[#allocation4 + $0x570] sm:$0xff]
    %v5021 = vld [vmem:[#allocation4 + $0x578] sm:$0xff]
    %v5022 = vld [vmem:[#allocation4 + $0x580] sm:$0xff]
    %v5023 = vld [vmem:[#allocation4 + $0x588] sm:$0xff]
    %v5024 = vld [vmem:[#allocation4 + $0x590] sm:$0xff]
    %v5025 = vld [vmem:[#allocation4 + $0x598] sm:$0xff]
    %v5026 = vld [vmem:[#allocation4 + $0x5a0] sm:$0xff]
    %v5027 = vld [vmem:[#allocation4 + $0x5a8] sm:$0xff]
    %v5028 = vld [vmem:[#allocation4 + $0x5b0] sm:$0xff]
    %v5029 = vld [vmem:[#allocation4 + $0x5b8] sm:$0xff]
    %v5030 = vld [vmem:[#allocation4 + $0x5c0] sm:$0xff]
    %v5031 = vld [vmem:[#allocation4 + $0x5c8] sm:$0xff]
    %v5032 = vld [vmem:[#allocation4 + $0x5d0] sm:$0xff]
    %v5033 = vld [vmem:[#allocation4 + $0x5d8] sm:$0xff]
    %v5034 = vld [vmem:[#allocation4 + $0x5e0] sm:$0xff]
    %v5035 = vld [vmem:[#allocation4 + $0x5e8] sm:$0xff]
    %v5036 = vld [vmem:[#allocation4 + $0x5f0] sm:$0xff]
    %v5037 = vld [vmem:[#allocation4 + $0x5f8] sm:$0xff]
    %v5038 = vld [vmem:[#allocation4 + $0x600] sm:$0xff]
    %v5039 = vld [vmem:[#allocation4 + $0x608] sm:$0xff]
    %v5040 = vld [vmem:[#allocation4 + $0x610] sm:$0xff]
    %v5041 = vld [vmem:[#allocation4 + $0x618] sm:$0xff]
    %v5042 = vld [vmem:[#allocation4 + $0x620] sm:$0xff]
    %v5043 = vld [vmem:[#allocation4 + $0x628] sm:$0xff]
    %v5044 = vld [vmem:[#allocation4 + $0x630] sm:$0xff]
    %v5045 = vld [vmem:[#allocation4 + $0x638] sm:$0xff]
    %v5046 = vld [vmem:[#allocation4 + $0x640] sm:$0xff]
    %v5047 = vld [vmem:[#allocation4 + $0x648] sm:$0xff]
    %v5048 = vld [vmem:[#allocation4 + $0x650] sm:$0xff]
    %v5049 = vld [vmem:[#allocation4 + $0x658] sm:$0xff]
    %v5050 = vld [vmem:[#allocation4 + $0x660] sm:$0xff]
    %v5051 = vld [vmem:[#allocation4 + $0x668] sm:$0xff]
    %v5052 = vld [vmem:[#allocation4 + $0x670] sm:$0xff]
    %v5053 = vld [vmem:[#allocation4 + $0x678] sm:$0xff]
    %v5054 = vld [vmem:[#allocation4 + $0x680] sm:$0xff]
    %v5055 = vld [vmem:[#allocation4 + $0x688] sm:$0xff]
    %v5056 = vld [vmem:[#allocation4 + $0x690] sm:$0xff]
    %v5057 = vld [vmem:[#allocation4 + $0x698] sm:$0xff]
    %v5058 = vld [vmem:[#allocation4 + $0x6a0] sm:$0xff]
    %v5059 = vld [vmem:[#allocation4 + $0x6a8] sm:$0xff]
    %v5060 = vld [vmem:[#allocation4 + $0x6b0] sm:$0xff]
    %v5061 = vld [vmem:[#allocation4 + $0x6b8] sm:$0xff]
    %v5062 = vld [vmem:[#allocation4 + $0x6c0] sm:$0xff]
    %v5063 = vld [vmem:[#allocation4 + $0x6c8] sm:$0xff]
    %v5064 = vld [vmem:[#allocation4 + $0x6d0] sm:$0xff]
    %v5065 = vld [vmem:[#allocation4 + $0x6d8] sm:$0xff]
    %v5066 = vld [vmem:[#allocation4 + $0x6e0] sm:$0xff]
    %v5067 = vld [vmem:[#allocation4 + $0x6e8] sm:$0xff]
    %v5068 = vld [vmem:[#allocation4 + $0x6f0] sm:$0xff]
    %v5069 = vld [vmem:[#allocation4 + $0x6f8] sm:$0xff]
    %v5294 = vunpack.c.l.b16 %v4846
    %v5295 = vunpack.c.h.b16 %v4846
    %v5296 = vunpack.c.l.b16 %v4847
    %v5297 = vunpack.c.h.b16 %v4847
    %v5298 = vunpack.c.l.b16 %v4848
    %v5299 = vunpack.c.h.b16 %v4848
    %v5300 = vunpack.c.l.b16 %v4849
    %v5301 = vunpack.c.h.b16 %v4849
    %v5302 = vunpack.c.l.b16 %v4850
    %v5303 = vunpack.c.h.b16 %v4850
    %v5304 = vunpack.c.l.b16 %v4851
    %v5305 = vunpack.c.h.b16 %v4851
    %v5306 = vunpack.c.l.b16 %v4852
    %v5307 = vunpack.c.h.b16 %v4852
    %v5308 = vunpack.c.l.b16 %v4853
    %v5309 = vunpack.c.h.b16 %v4853
    %v5310 = vunpack.c.l.b16 %v4854
    %v5311 = vunpack.c.h.b16 %v4854
    %v5312 = vunpack.c.l.b16 %v4855
    %v5313 = vunpack.c.h.b16 %v4855
    %v5314 = vunpack.c.l.b16 %v4856
    %v5315 = vunpack.c.h.b16 %v4856
    %v5316 = vunpack.c.l.b16 %v4857
    %v5317 = vunpack.c.h.b16 %v4857
    %v5318 = vunpack.c.l.b16 %v4858
    %v5319 = vunpack.c.h.b16 %v4858
    %v5320 = vunpack.c.l.b16 %v4859
    %v5321 = vunpack.c.h.b16 %v4859
    %v5322 = vunpack.c.l.b16 %v4860
    %v5323 = vunpack.c.h.b16 %v4860
    %v5324 = vunpack.c.l.b16 %v4861
    %v5325 = vunpack.c.h.b16 %v4861
    %v5326 = vunpack.c.l.b16 %v4862
    %v5327 = vunpack.c.h.b16 %v4862
    %v5328 = vunpack.c.l.b16 %v4863
    %v5329 = vunpack.c.h.b16 %v4863
    %v5330 = vunpack.c.l.b16 %v4864
    %v5331 = vunpack.c.h.b16 %v4864
    %v5332 = vunpack.c.l.b16 %v4865
    %v5333 = vunpack.c.h.b16 %v4865
    %v5334 = vunpack.c.l.b16 %v4866
    %v5335 = vunpack.c.h.b16 %v4866
    %v5336 = vunpack.c.l.b16 %v4867
    %v5337 = vunpack.c.h.b16 %v4867
    %v5338 = vunpack.c.l.b16 %v4868
    %v5339 = vunpack.c.h.b16 %v4868
    %v5340 = vunpack.c.l.b16 %v4869
    %v5341 = vunpack.c.h.b16 %v4869
    %v5342 = vunpack.c.l.b16 %v4870
    %v5343 = vunpack.c.h.b16 %v4870
    %v5344 = vunpack.c.l.b16 %v4871
    %v5345 = vunpack.c.h.b16 %v4871
    %v5346 = vunpack.c.l.b16 %v4872
    %v5347 = vunpack.c.h.b16 %v4872
    %v5348 = vunpack.c.l.b16 %v4873
    %v5349 = vunpack.c.h.b16 %v4873
    %v5350 = vunpack.c.l.b16 %v4874
    %v5351 = vunpack.c.h.b16 %v4874
    %v5352 = vunpack.c.l.b16 %v4875
    %v5353 = vunpack.c.h.b16 %v4875
    %v5354 = vunpack.c.l.b16 %v4876
    %v5355 = vunpack.c.h.b16 %v4876
    %v5356 = vunpack.c.l.b16 %v4877
    %v5357 = vunpack.c.h.b16 %v4877
    %v5358 = vunpack.c.l.b16 %v4878
    %v5359 = vunpack.c.h.b16 %v4878
    %v5360 = vunpack.c.l.b16 %v4879
    %v5361 = vunpack.c.h.b16 %v4879
    %v5362 = vunpack.c.l.b16 %v4880
    %v5363 = vunpack.c.h.b16 %v4880
    %v5364 = vunpack.c.l.b16 %v4881
    %v5365 = vunpack.c.h.b16 %v4881
    %v5366 = vunpack.c.l.b16 %v4882
    %v5367 = vunpack.c.h.b16 %v4882
    %v5368 = vunpack.c.l.b16 %v4883
    %v5369 = vunpack.c.h.b16 %v4883
    %v5370 = vunpack.c.l.b16 %v4884
    %v5371 = vunpack.c.h.b16 %v4884
    %v5372 = vunpack.c.l.b16 %v4885
    %v5373 = vunpack.c.h.b16 %v4885
    %v5374 = vunpack.c.l.b16 %v4886
    %v5375 = vunpack.c.h.b16 %v4886
    %v5376 = vunpack.c.l.b16 %v4887
    %v5377 = vunpack.c.h.b16 %v4887
    %v5378 = vunpack.c.l.b16 %v4888
    %v5379 = vunpack.c.h.b16 %v4888
    %v5380 = vunpack.c.l.b16 %v4889
    %v5381 = vunpack.c.h.b16 %v4889
    %v5382 = vunpack.c.l.b16 %v4890
    %v5383 = vunpack.c.h.b16 %v4890
    %v5384 = vunpack.c.l.b16 %v4891
    %v5385 = vunpack.c.h.b16 %v4891
    %v5386 = vunpack.c.l.b16 %v4892
    %v5387 = vunpack.c.h.b16 %v4892
    %v5388 = vunpack.c.l.b16 %v4893
    %v5389 = vunpack.c.h.b16 %v4893
    %v5390 = vunpack.c.l.b16 %v4894
    %v5391 = vunpack.c.h.b16 %v4894
    %v5392 = vunpack.c.l.b16 %v4895
    %v5393 = vunpack.c.h.b16 %v4895
    %v5394 = vunpack.c.l.b16 %v4896
    %v5395 = vunpack.c.h.b16 %v4896
    %v5396 = vunpack.c.l.b16 %v4897
    %v5397 = vunpack.c.h.b16 %v4897
    %v5398 = vunpack.c.l.b16 %v4898
    %v5399 = vunpack.c.h.b16 %v4898
    %v5400 = vunpack.c.l.b16 %v4899
    %v5401 = vunpack.c.h.b16 %v4899
    %v5402 = vunpack.c.l.b16 %v4900
    %v5403 = vunpack.c.h.b16 %v4900
    %v5404 = vunpack.c.l.b16 %v4901
    %v5405 = vunpack.c.h.b16 %v4901
    %v5406 = vunpack.c.l.b16 %v4902
    %v5407 = vunpack.c.h.b16 %v4902
    %v5408 = vunpack.c.l.b16 %v4903
    %v5409 = vunpack.c.h.b16 %v4903
    %v5410 = vunpack.c.l.b16 %v4904
    %v5411 = vunpack.c.h.b16 %v4904
    %v5412 = vunpack.c.l.b16 %v4905
    %v5413 = vunpack.c.h.b16 %v4905
    %v5414 = vunpack.c.l.b16 %v4906
    %v5415 = vunpack.c.h.b16 %v4906
    %v5416 = vunpack.c.l.b16 %v4907
    %v5417 = vunpack.c.h.b16 %v4907
    %v5418 = vunpack.c.l.b16 %v4908
    %v5419 = vunpack.c.h.b16 %v4908
    %v5420 = vunpack.c.l.b16 %v4909
    %v5421 = vunpack.c.h.b16 %v4909
    %v5422 = vunpack.c.l.b16 %v4910
    %v5423 = vunpack.c.h.b16 %v4910
    %v5424 = vunpack.c.l.b16 %v4911
    %v5425 = vunpack.c.h.b16 %v4911
    %v5426 = vunpack.c.l.b16 %v4912
    %v5427 = vunpack.c.h.b16 %v4912
    %v5428 = vunpack.c.l.b16 %v4913
    %v5429 = vunpack.c.h.b16 %v4913
    %v5430 = vunpack.c.l.b16 %v4914
    %v5431 = vunpack.c.h.b16 %v4914
    %v5432 = vunpack.c.l.b16 %v4915
    %v5433 = vunpack.c.h.b16 %v4915
    %v5434 = vunpack.c.l.b16 %v4916
    %v5435 = vunpack.c.h.b16 %v4916
    %v5436 = vunpack.c.l.b16 %v4917
    %v5437 = vunpack.c.h.b16 %v4917
    %v5438 = vunpack.c.l.b16 %v4918
    %v5439 = vunpack.c.h.b16 %v4918
    %v5440 = vunpack.c.l.b16 %v4919
    %v5441 = vunpack.c.h.b16 %v4919
    %v5442 = vunpack.c.l.b16 %v4920
    %v5443 = vunpack.c.h.b16 %v4920
    %v5444 = vunpack.c.l.b16 %v4921
    %v5445 = vunpack.c.h.b16 %v4921
    %v5446 = vunpack.c.l.b16 %v4922
    %v5447 = vunpack.c.h.b16 %v4922
    %v5448 = vunpack.c.l.b16 %v4923
    %v5449 = vunpack.c.h.b16 %v4923
    %v5450 = vunpack.c.l.b16 %v4924
    %v5451 = vunpack.c.h.b16 %v4924
    %v5452 = vunpack.c.l.b16 %v4925
    %v5453 = vunpack.c.h.b16 %v4925
    %v5454 = vunpack.c.l.b16 %v4926
    %v5455 = vunpack.c.h.b16 %v4926
    %v5456 = vunpack.c.l.b16 %v4927
    %v5457 = vunpack.c.h.b16 %v4927
    %v5458 = vunpack.c.l.b16 %v4928
    %v5459 = vunpack.c.h.b16 %v4928
    %v5460 = vunpack.c.l.b16 %v4929
    %v5461 = vunpack.c.h.b16 %v4929
    %v5462 = vunpack.c.l.b16 %v4930
    %v5463 = vunpack.c.h.b16 %v4930
    %v5464 = vunpack.c.l.b16 %v4931
    %v5465 = vunpack.c.h.b16 %v4931
    %v5466 = vunpack.c.l.b16 %v4932
    %v5467 = vunpack.c.h.b16 %v4932
    %v5468 = vunpack.c.l.b16 %v4933
    %v5469 = vunpack.c.h.b16 %v4933
    %v5470 = vunpack.c.l.b16 %v4934
    %v5471 = vunpack.c.h.b16 %v4934
    %v5472 = vunpack.c.l.b16 %v4935
    %v5473 = vunpack.c.h.b16 %v4935
    %v5474 = vunpack.c.l.b16 %v4936
    %v5475 = vunpack.c.h.b16 %v4936
    %v5476 = vunpack.c.l.b16 %v4937
    %v5477 = vunpack.c.h.b16 %v4937
    %v5478 = vunpack.c.l.b16 %v4938
    %v5479 = vunpack.c.h.b16 %v4938
    %v5480 = vunpack.c.l.b16 %v4939
    %v5481 = vunpack.c.h.b16 %v4939
    %v5482 = vunpack.c.l.b16 %v4940
    %v5483 = vunpack.c.h.b16 %v4940
    %v5484 = vunpack.c.l.b16 %v4941
    %v5485 = vunpack.c.h.b16 %v4941
    %v5486 = vunpack.c.l.b16 %v4942
    %v5487 = vunpack.c.h.b16 %v4942
    %v5488 = vunpack.c.l.b16 %v4943
    %v5489 = vunpack.c.h.b16 %v4943
    %v5490 = vunpack.c.l.b16 %v4944
    %v5491 = vunpack.c.h.b16 %v4944
    %v5492 = vunpack.c.l.b16 %v4945
    %v5493 = vunpack.c.h.b16 %v4945
    %v5494 = vunpack.c.l.b16 %v4946
    %v5495 = vunpack.c.h.b16 %v4946
    %v5496 = vunpack.c.l.b16 %v4947
    %v5497 = vunpack.c.h.b16 %v4947
    %v5498 = vunpack.c.l.b16 %v4948
    %v5499 = vunpack.c.h.b16 %v4948
    %v5500 = vunpack.c.l.b16 %v4949
    %v5501 = vunpack.c.h.b16 %v4949
    %v5502 = vunpack.c.l.b16 %v4950
    %v5503 = vunpack.c.h.b16 %v4950
    %v5504 = vunpack.c.l.b16 %v4951
    %v5505 = vunpack.c.h.b16 %v4951
    %v5506 = vunpack.c.l.b16 %v4952
    %v5507 = vunpack.c.h.b16 %v4952
    %v5508 = vunpack.c.l.b16 %v4953
    %v5509 = vunpack.c.h.b16 %v4953
    %v5510 = vunpack.c.l.b16 %v4954
    %v5511 = vunpack.c.h.b16 %v4954
    %v5512 = vunpack.c.l.b16 %v4955
    %v5513 = vunpack.c.h.b16 %v4955
    %v5514 = vunpack.c.l.b16 %v4956
    %v5515 = vunpack.c.h.b16 %v4956
    %v5516 = vunpack.c.l.b16 %v4957
    %v5517 = vunpack.c.h.b16 %v4957
    %v5518 = vunpack.c.l.b16 %v4958
    %v5519 = vunpack.c.h.b16 %v4958
    %v5520 = vunpack.c.l.b16 %v4959
    %v5521 = vunpack.c.h.b16 %v4959
    %v5522 = vunpack.c.l.b16 %v4960
    %v5523 = vunpack.c.h.b16 %v4960
    %v5524 = vunpack.c.l.b16 %v4961
    %v5525 = vunpack.c.h.b16 %v4961
    %v5526 = vunpack.c.l.b16 %v4962
    %v5527 = vunpack.c.h.b16 %v4962
    %v5528 = vunpack.c.l.b16 %v4963
    %v5529 = vunpack.c.h.b16 %v4963
    %v5530 = vunpack.c.l.b16 %v4964
    %v5531 = vunpack.c.h.b16 %v4964
    %v5532 = vunpack.c.l.b16 %v4965
    %v5533 = vunpack.c.h.b16 %v4965
    %v5534 = vunpack.c.l.b16 %v4966
    %v5535 = vunpack.c.h.b16 %v4966
    %v5536 = vunpack.c.l.b16 %v4967
    %v5537 = vunpack.c.h.b16 %v4967
    %v5538 = vunpack.c.l.b16 %v4968
    %v5539 = vunpack.c.h.b16 %v4968
    %v5540 = vunpack.c.l.b16 %v4969
    %v5541 = vunpack.c.h.b16 %v4969
    %v5542 = vunpack.c.l.b16 %v4970
    %v5543 = vunpack.c.h.b16 %v4970
    %v5544 = vunpack.c.l.b16 %v4971
    %v5545 = vunpack.c.h.b16 %v4971
    %v5546 = vunpack.c.l.b16 %v4972
    %v5547 = vunpack.c.h.b16 %v4972
    %v5548 = vunpack.c.l.b16 %v4973
    %v5549 = vunpack.c.h.b16 %v4973
    %v5550 = vunpack.c.l.b16 %v4974
    %v5551 = vunpack.c.h.b16 %v4974
    %v5552 = vunpack.c.l.b16 %v4975
    %v5553 = vunpack.c.h.b16 %v4975
    %v5554 = vunpack.c.l.b16 %v4976
    %v5555 = vunpack.c.h.b16 %v4976
    %v5556 = vunpack.c.l.b16 %v4977
    %v5557 = vunpack.c.h.b16 %v4977
    %v5558 = vunpack.c.l.b16 %v4978
    %v5559 = vunpack.c.h.b16 %v4978
    %v5560 = vunpack.c.l.b16 %v4979
    %v5561 = vunpack.c.h.b16 %v4979
    %v5562 = vunpack.c.l.b16 %v4980
    %v5563 = vunpack.c.h.b16 %v4980
    %v5564 = vunpack.c.l.b16 %v4981
    %v5565 = vunpack.c.h.b16 %v4981
    %v5566 = vunpack.c.l.b16 %v4982
    %v5567 = vunpack.c.h.b16 %v4982
    %v5568 = vunpack.c.l.b16 %v4983
    %v5569 = vunpack.c.h.b16 %v4983
    %v5570 = vunpack.c.l.b16 %v4984
    %v5571 = vunpack.c.h.b16 %v4984
    %v5572 = vunpack.c.l.b16 %v4985
    %v5573 = vunpack.c.h.b16 %v4985
    %v5574 = vunpack.c.l.b16 %v4986
    %v5575 = vunpack.c.h.b16 %v4986
    %v5576 = vunpack.c.l.b16 %v4987
    %v5577 = vunpack.c.h.b16 %v4987
    %v5578 = vunpack.c.l.b16 %v4988
    %v5579 = vunpack.c.h.b16 %v4988
    %v5580 = vunpack.c.l.b16 %v4989
    %v5581 = vunpack.c.h.b16 %v4989
    %v5582 = vunpack.c.l.b16 %v4990
    %v5583 = vunpack.c.h.b16 %v4990
    %v5584 = vunpack.c.l.b16 %v4991
    %v5585 = vunpack.c.h.b16 %v4991
    %v5586 = vunpack.c.l.b16 %v4992
    %v5587 = vunpack.c.h.b16 %v4992
    %v5588 = vunpack.c.l.b16 %v4993
    %v5589 = vunpack.c.h.b16 %v4993
    %v5590 = vunpack.c.l.b16 %v4994
    %v5591 = vunpack.c.h.b16 %v4994
    %v5592 = vunpack.c.l.b16 %v4995
    %v5593 = vunpack.c.h.b16 %v4995
    %v5594 = vunpack.c.l.b16 %v4996
    %v5595 = vunpack.c.h.b16 %v4996
    %v5596 = vunpack.c.l.b16 %v4997
    %v5597 = vunpack.c.h.b16 %v4997
    %v5598 = vunpack.c.l.b16 %v4998
    %v5599 = vunpack.c.h.b16 %v4998
    %v5600 = vunpack.c.l.b16 %v4999
    %v5601 = vunpack.c.h.b16 %v4999
    %v5602 = vunpack.c.l.b16 %v5000
    %v5603 = vunpack.c.h.b16 %v5000
    %v5604 = vunpack.c.l.b16 %v5001
    %v5605 = vunpack.c.h.b16 %v5001
    %v5606 = vunpack.c.l.b16 %v5002
    %v5607 = vunpack.c.h.b16 %v5002
    %v5608 = vunpack.c.l.b16 %v5003
    %v5609 = vunpack.c.h.b16 %v5003
    %v5610 = vunpack.c.l.b16 %v5004
    %v5611 = vunpack.c.h.b16 %v5004
    %v5612 = vunpack.c.l.b16 %v5005
    %v5613 = vunpack.c.h.b16 %v5005
    %v5614 = vunpack.c.l.b16 %v5006
    %v5615 = vunpack.c.h.b16 %v5006
    %v5616 = vunpack.c.l.b16 %v5007
    %v5617 = vunpack.c.h.b16 %v5007
    %v5618 = vunpack.c.l.b16 %v5008
    %v5619 = vunpack.c.h.b16 %v5008
    %v5620 = vunpack.c.l.b16 %v5009
    %v5621 = vunpack.c.h.b16 %v5009
    %v5622 = vunpack.c.l.b16 %v5010
    %v5623 = vunpack.c.h.b16 %v5010
    %v5624 = vunpack.c.l.b16 %v5011
    %v5625 = vunpack.c.h.b16 %v5011
    %v5626 = vunpack.c.l.b16 %v5012
    %v5627 = vunpack.c.h.b16 %v5012
    %v5628 = vunpack.c.l.b16 %v5013
    %v5629 = vunpack.c.h.b16 %v5013
    %v5630 = vunpack.c.l.b16 %v5014
    %v5631 = vunpack.c.h.b16 %v5014
    %v5632 = vunpack.c.l.b16 %v5015
    %v5633 = vunpack.c.h.b16 %v5015
    %v5634 = vunpack.c.l.b16 %v5016
    %v5635 = vunpack.c.h.b16 %v5016
    %v5636 = vunpack.c.l.b16 %v5017
    %v5637 = vunpack.c.h.b16 %v5017
    %v5638 = vunpack.c.l.b16 %v5018
    %v5639 = vunpack.c.h.b16 %v5018
    %v5640 = vunpack.c.l.b16 %v5019
    %v5641 = vunpack.c.h.b16 %v5019
    %v5642 = vunpack.c.l.b16 %v5020
    %v5643 = vunpack.c.h.b16 %v5020
    %v5644 = vunpack.c.l.b16 %v5021
    %v5645 = vunpack.c.h.b16 %v5021
    %v5646 = vunpack.c.l.b16 %v5022
    %v5647 = vunpack.c.h.b16 %v5022
    %v5648 = vunpack.c.l.b16 %v5023
    %v5649 = vunpack.c.h.b16 %v5023
    %v5650 = vunpack.c.l.b16 %v5024
    %v5651 = vunpack.c.h.b16 %v5024
    %v5652 = vunpack.c.l.b16 %v5025
    %v5653 = vunpack.c.h.b16 %v5025
    %v5654 = vunpack.c.l.b16 %v5026
    %v5655 = vunpack.c.h.b16 %v5026
    %v5656 = vunpack.c.l.b16 %v5027
    %v5657 = vunpack.c.h.b16 %v5027
    %v5658 = vunpack.c.l.b16 %v5028
    %v5659 = vunpack.c.h.b16 %v5028
    %v5660 = vunpack.c.l.b16 %v5029
    %v5661 = vunpack.c.h.b16 %v5029
    %v5662 = vunpack.c.l.b16 %v5030
    %v5663 = vunpack.c.h.b16 %v5030
    %v5664 = vunpack.c.l.b16 %v5031
    %v5665 = vunpack.c.h.b16 %v5031
    %v5666 = vunpack.c.l.b16 %v5032
    %v5667 = vunpack.c.h.b16 %v5032
    %v5668 = vunpack.c.l.b16 %v5033
    %v5669 = vunpack.c.h.b16 %v5033
    %v5670 = vunpack.c.l.b16 %v5034
    %v5671 = vunpack.c.h.b16 %v5034
    %v5672 = vunpack.c.l.b16 %v5035
    %v5673 = vunpack.c.h.b16 %v5035
    %v5674 = vunpack.c.l.b16 %v5036
    %v5675 = vunpack.c.h.b16 %v5036
    %v5676 = vunpack.c.l.b16 %v5037
    %v5677 = vunpack.c.h.b16 %v5037
    %v5678 = vunpack.c.l.b16 %v5038
    %v5679 = vunpack.c.h.b16 %v5038
    %v5680 = vunpack.c.l.b16 %v5039
    %v5681 = vunpack.c.h.b16 %v5039
    %v5682 = vunpack.c.l.b16 %v5040
    %v5683 = vunpack.c.h.b16 %v5040
    %v5684 = vunpack.c.l.b16 %v5041
    %v5685 = vunpack.c.h.b16 %v5041
    %v5686 = vunpack.c.l.b16 %v5042
    %v5687 = vunpack.c.h.b16 %v5042
    %v5688 = vunpack.c.l.b16 %v5043
    %v5689 = vunpack.c.h.b16 %v5043
    %v5690 = vunpack.c.l.b16 %v5044
    %v5691 = vunpack.c.h.b16 %v5044
    %v5692 = vunpack.c.l.b16 %v5045
    %v5693 = vunpack.c.h.b16 %v5045
    %v5694 = vunpack.c.l.b16 %v5046
    %v5695 = vunpack.c.h.b16 %v5046
    %v5696 = vunpack.c.l.b16 %v5047
    %v5697 = vunpack.c.h.b16 %v5047
    %v5698 = vunpack.c.l.b16 %v5048
    %v5699 = vunpack.c.h.b16 %v5048
    %v5700 = vunpack.c.l.b16 %v5049
    %v5701 = vunpack.c.h.b16 %v5049
    %v5702 = vunpack.c.l.b16 %v5050
    %v5703 = vunpack.c.h.b16 %v5050
    %v5704 = vunpack.c.l.b16 %v5051
    %v5705 = vunpack.c.h.b16 %v5051
    %v5706 = vunpack.c.l.b16 %v5052
    %v5707 = vunpack.c.h.b16 %v5052
    %v5708 = vunpack.c.l.b16 %v5053
    %v5709 = vunpack.c.h.b16 %v5053
    %v5710 = vunpack.c.l.b16 %v5054
    %v5711 = vunpack.c.h.b16 %v5054
    %v5712 = vunpack.c.l.b16 %v5055
    %v5713 = vunpack.c.h.b16 %v5055
    %v5714 = vunpack.c.l.b16 %v5056
    %v5715 = vunpack.c.h.b16 %v5056
    %v5716 = vunpack.c.l.b16 %v5057
    %v5717 = vunpack.c.h.b16 %v5057
    %v5718 = vunpack.c.l.b16 %v5058
    %v5719 = vunpack.c.h.b16 %v5058
    %v5720 = vunpack.c.l.b16 %v5059
    %v5721 = vunpack.c.h.b16 %v5059
    %v5722 = vunpack.c.l.b16 %v5060
    %v5723 = vunpack.c.h.b16 %v5060
    %v5724 = vunpack.c.l.b16 %v5061
    %v5725 = vunpack.c.h.b16 %v5061
    %v5726 = vunpack.c.l.b16 %v5062
    %v5727 = vunpack.c.h.b16 %v5062
    %v5728 = vunpack.c.l.b16 %v5063
    %v5729 = vunpack.c.h.b16 %v5063
    %v5730 = vunpack.c.l.b16 %v5064
    %v5731 = vunpack.c.h.b16 %v5064
    %v5732 = vunpack.c.l.b16 %v5065
    %v5733 = vunpack.c.h.b16 %v5065
    %v5734 = vunpack.c.l.b16 %v5066
    %v5735 = vunpack.c.h.b16 %v5066
    %v5736 = vunpack.c.l.b16 %v5067
    %v5737 = vunpack.c.h.b16 %v5067
    %v5738 = vunpack.c.l.b16 %v5068
    %v5739 = vunpack.c.h.b16 %v5068
    %v5740 = vunpack.c.l.b16 %v5069
    %v5741 = vunpack.c.h.b16 %v5069
    %v5742 = vpack.c.b16 %v5298, %v5294
    %v5743 = vpack.c.b16 %v5299, %v5295
    %v5744 = vpack.c.b16 %v5300, %v5296
    %v5745 = vpack.c.b16 %v5301, %v5297
    %v5746 = vpack.c.b16 %v5306, %v5302
    %v5747 = vpack.c.b16 %v5307, %v5303
    %v5748 = vpack.c.b16 %v5308, %v5304
    %v5749 = vpack.c.b16 %v5309, %v5305
    %v5750 = vpack.c.b16 %v5314, %v5310
    %v5751 = vpack.c.b16 %v5315, %v5311
    %v5752 = vpack.c.b16 %v5316, %v5312
    %v5753 = vpack.c.b16 %v5317, %v5313
    %v5754 = vpack.c.b16 %v5322, %v5318
    %v5755 = vpack.c.b16 %v5323, %v5319
    %v5756 = vpack.c.b16 %v5324, %v5320
    %v5757 = vpack.c.b16 %v5325, %v5321
    %v5758 = vpack.c.b16 %v5330, %v5326
    %v5759 = vpack.c.b16 %v5331, %v5327
    %v5760 = vpack.c.b16 %v5332, %v5328
    %v5761 = vpack.c.b16 %v5333, %v5329
    %v5762 = vpack.c.b16 %v5338, %v5334
    %v5763 = vpack.c.b16 %v5339, %v5335
    %v5764 = vpack.c.b16 %v5340, %v5336
    %v5765 = vpack.c.b16 %v5341, %v5337
    %v5766 = vpack.c.b16 %v5346, %v5342
    %v5767 = vpack.c.b16 %v5347, %v5343
    %v5768 = vpack.c.b16 %v5348, %v5344
    %v5769 = vpack.c.b16 %v5349, %v5345
    %v5770 = vpack.c.b16 %v5354, %v5350
    %v5771 = vpack.c.b16 %v5355, %v5351
    %v5772 = vpack.c.b16 %v5356, %v5352
    %v5773 = vpack.c.b16 %v5357, %v5353
    %v5774 = vpack.c.b16 %v5362, %v5358
    %v5775 = vpack.c.b16 %v5363, %v5359
    %v5776 = vpack.c.b16 %v5364, %v5360
    %v5777 = vpack.c.b16 %v5365, %v5361
    %v5778 = vpack.c.b16 %v5370, %v5366
    %v5779 = vpack.c.b16 %v5371, %v5367
    %v5780 = vpack.c.b16 %v5372, %v5368
    %v5781 = vpack.c.b16 %v5373, %v5369
    %v5782 = vpack.c.b16 %v5378, %v5374
    %v5783 = vpack.c.b16 %v5379, %v5375
    %v5784 = vpack.c.b16 %v5380, %v5376
    %v5785 = vpack.c.b16 %v5381, %v5377
    %v5786 = vpack.c.b16 %v5386, %v5382
    %v5787 = vpack.c.b16 %v5387, %v5383
    %v5788 = vpack.c.b16 %v5388, %v5384
    %v5789 = vpack.c.b16 %v5389, %v5385
    %v5790 = vpack.c.b16 %v5394, %v5390
    %v5791 = vpack.c.b16 %v5395, %v5391
    %v5792 = vpack.c.b16 %v5396, %v5392
    %v5793 = vpack.c.b16 %v5397, %v5393
    %v5794 = vpack.c.b16 %v5402, %v5398
    %v5795 = vpack.c.b16 %v5403, %v5399
    %v5796 = vpack.c.b16 %v5404, %v5400
    %v5797 = vpack.c.b16 %v5405, %v5401
    %v5798 = vpack.c.b16 %v5410, %v5406
    %v5799 = vpack.c.b16 %v5411, %v5407
    %v5800 = vpack.c.b16 %v5412, %v5408
    %v5801 = vpack.c.b16 %v5413, %v5409
    %v5802 = vpack.c.b16 %v5418, %v5414
    %v5803 = vpack.c.b16 %v5419, %v5415
    %v5804 = vpack.c.b16 %v5420, %v5416
    %v5805 = vpack.c.b16 %v5421, %v5417
    %v5806 = vpack.c.b16 %v5426, %v5422
    %v5807 = vpack.c.b16 %v5427, %v5423
    %v5808 = vpack.c.b16 %v5428, %v5424
    %v5809 = vpack.c.b16 %v5429, %v5425
    %v5810 = vpack.c.b16 %v5434, %v5430
    %v5811 = vpack.c.b16 %v5435, %v5431
    %v5812 = vpack.c.b16 %v5436, %v5432
    %v5813 = vpack.c.b16 %v5437, %v5433
    %v5814 = vpack.c.b16 %v5442, %v5438
    %v5815 = vpack.c.b16 %v5443, %v5439
    %v5816 = vpack.c.b16 %v5444, %v5440
    %v5817 = vpack.c.b16 %v5445, %v5441
    %v5818 = vpack.c.b16 %v5450, %v5446
    %v5819 = vpack.c.b16 %v5451, %v5447
    %v5820 = vpack.c.b16 %v5452, %v5448
    %v5821 = vpack.c.b16 %v5453, %v5449
    %v5822 = vpack.c.b16 %v5458, %v5454
    %v5823 = vpack.c.b16 %v5459, %v5455
    %v5824 = vpack.c.b16 %v5460, %v5456
    %v5825 = vpack.c.b16 %v5461, %v5457
    %v5826 = vpack.c.b16 %v5466, %v5462
    %v5827 = vpack.c.b16 %v5467, %v5463
    %v5828 = vpack.c.b16 %v5468, %v5464
    %v5829 = vpack.c.b16 %v5469, %v5465
    %v5830 = vpack.c.b16 %v5474, %v5470
    %v5831 = vpack.c.b16 %v5475, %v5471
    %v5832 = vpack.c.b16 %v5476, %v5472
    %v5833 = vpack.c.b16 %v5477, %v5473
    %v5834 = vpack.c.b16 %v5482, %v5478
    %v5835 = vpack.c.b16 %v5483, %v5479
    %v5836 = vpack.c.b16 %v5484, %v5480
    %v5837 = vpack.c.b16 %v5485, %v5481
    %v5838 = vpack.c.b16 %v5490, %v5486
    %v5839 = vpack.c.b16 %v5491, %v5487
    %v5840 = vpack.c.b16 %v5492, %v5488
    %v5841 = vpack.c.b16 %v5493, %v5489
    %v5842 = vpack.c.b16 %v5498, %v5494
    %v5843 = vpack.c.b16 %v5499, %v5495
    %v5844 = vpack.c.b16 %v5500, %v5496
    %v5845 = vpack.c.b16 %v5501, %v5497
    %v5846 = vpack.c.b16 %v5506, %v5502
    %v5847 = vpack.c.b16 %v5507, %v5503
    %v5848 = vpack.c.b16 %v5508, %v5504
    %v5849 = vpack.c.b16 %v5509, %v5505
    %v5850 = vpack.c.b16 %v5514, %v5510
    %v5851 = vpack.c.b16 %v5515, %v5511
    %v5852 = vpack.c.b16 %v5516, %v5512
    %v5853 = vpack.c.b16 %v5517, %v5513
    %v5854 = vpack.c.b16 %v5522, %v5518
    %v5855 = vpack.c.b16 %v5523, %v5519
    %v5856 = vpack.c.b16 %v5524, %v5520
    %v5857 = vpack.c.b16 %v5525, %v5521
    %v5858 = vpack.c.b16 %v5530, %v5526
    %v5859 = vpack.c.b16 %v5531, %v5527
    %v5860 = vpack.c.b16 %v5532, %v5528
    %v5861 = vpack.c.b16 %v5533, %v5529
    %v5862 = vpack.c.b16 %v5538, %v5534
    %v5863 = vpack.c.b16 %v5539, %v5535
    %v5864 = vpack.c.b16 %v5540, %v5536
    %v5865 = vpack.c.b16 %v5541, %v5537
    %v5866 = vpack.c.b16 %v5546, %v5542
    %v5867 = vpack.c.b16 %v5547, %v5543
    %v5868 = vpack.c.b16 %v5548, %v5544
    %v5869 = vpack.c.b16 %v5549, %v5545
    %v5870 = vpack.c.b16 %v5554, %v5550
    %v5871 = vpack.c.b16 %v5555, %v5551
    %v5872 = vpack.c.b16 %v5556, %v5552
    %v5873 = vpack.c.b16 %v5557, %v5553
    %v5874 = vpack.c.b16 %v5562, %v5558
    %v5875 = vpack.c.b16 %v5563, %v5559
    %v5876 = vpack.c.b16 %v5564, %v5560
    %v5877 = vpack.c.b16 %v5565, %v5561
    %v5878 = vpack.c.b16 %v5570, %v5566
    %v5879 = vpack.c.b16 %v5571, %v5567
    %v5880 = vpack.c.b16 %v5572, %v5568
    %v5881 = vpack.c.b16 %v5573, %v5569
    %v5882 = vpack.c.b16 %v5578, %v5574
    %v5883 = vpack.c.b16 %v5579, %v5575
    %v5884 = vpack.c.b16 %v5580, %v5576
    %v5885 = vpack.c.b16 %v5581, %v5577
    %v5886 = vpack.c.b16 %v5586, %v5582
    %v5887 = vpack.c.b16 %v5587, %v5583
    %v5888 = vpack.c.b16 %v5588, %v5584
    %v5889 = vpack.c.b16 %v5589, %v5585
    %v5890 = vpack.c.b16 %v5594, %v5590
    %v5891 = vpack.c.b16 %v5595, %v5591
    %v5892 = vpack.c.b16 %v5596, %v5592
    %v5893 = vpack.c.b16 %v5597, %v5593
    %v5894 = vpack.c.b16 %v5602, %v5598
    %v5895 = vpack.c.b16 %v5603, %v5599
    %v5896 = vpack.c.b16 %v5604, %v5600
    %v5897 = vpack.c.b16 %v5605, %v5601
    %v5898 = vpack.c.b16 %v5610, %v5606
    %v5899 = vpack.c.b16 %v5611, %v5607
    %v5900 = vpack.c.b16 %v5612, %v5608
    %v5901 = vpack.c.b16 %v5613, %v5609
    %v5902 = vpack.c.b16 %v5618, %v5614
    %v5903 = vpack.c.b16 %v5619, %v5615
    %v5904 = vpack.c.b16 %v5620, %v5616
    %v5905 = vpack.c.b16 %v5621, %v5617
    %v5906 = vpack.c.b16 %v5626, %v5622
    %v5907 = vpack.c.b16 %v5627, %v5623
    %v5908 = vpack.c.b16 %v5628, %v5624
    %v5909 = vpack.c.b16 %v5629, %v5625
    %v5910 = vpack.c.b16 %v5634, %v5630
    %v5911 = vpack.c.b16 %v5635, %v5631
    %v5912 = vpack.c.b16 %v5636, %v5632
    %v5913 = vpack.c.b16 %v5637, %v5633
    %v5914 = vpack.c.b16 %v5642, %v5638
    %v5915 = vpack.c.b16 %v5643, %v5639
    %v5916 = vpack.c.b16 %v5644, %v5640
    %v5917 = vpack.c.b16 %v5645, %v5641
    %v5918 = vpack.c.b16 %v5650, %v5646
    %v5919 = vpack.c.b16 %v5651, %v5647
    %v5920 = vpack.c.b16 %v5652, %v5648
    %v5921 = vpack.c.b16 %v5653, %v5649
    %v5922 = vpack.c.b16 %v5658, %v5654
    %v5923 = vpack.c.b16 %v5659, %v5655
    %v5924 = vpack.c.b16 %v5660, %v5656
    %v5925 = vpack.c.b16 %v5661, %v5657
    %v5926 = vpack.c.b16 %v5666, %v5662
    %v5927 = vpack.c.b16 %v5667, %v5663
    %v5928 = vpack.c.b16 %v5668, %v5664
    %v5929 = vpack.c.b16 %v5669, %v5665
    %v5930 = vpack.c.b16 %v5674, %v5670
    %v5931 = vpack.c.b16 %v5675, %v5671
    %v5932 = vpack.c.b16 %v5676, %v5672
    %v5933 = vpack.c.b16 %v5677, %v5673
    %v5934 = vpack.c.b16 %v5682, %v5678
    %v5935 = vpack.c.b16 %v5683, %v5679
    %v5936 = vpack.c.b16 %v5684, %v5680
    %v5937 = vpack.c.b16 %v5685, %v5681
    %v5938 = vpack.c.b16 %v5690, %v5686
    %v5939 = vpack.c.b16 %v5691, %v5687
    %v5940 = vpack.c.b16 %v5692, %v5688
    %v5941 = vpack.c.b16 %v5693, %v5689
    %v5942 = vpack.c.b16 %v5698, %v5694
    %v5943 = vpack.c.b16 %v5699, %v5695
    %v5944 = vpack.c.b16 %v5700, %v5696
    %v5945 = vpack.c.b16 %v5701, %v5697
    %v5946 = vpack.c.b16 %v5706, %v5702
    %v5947 = vpack.c.b16 %v5707, %v5703
    %v5948 = vpack.c.b16 %v5708, %v5704
    %v5949 = vpack.c.b16 %v5709, %v5705
    %v5950 = vpack.c.b16 %v5714, %v5710
    %v5951 = vpack.c.b16 %v5715, %v5711
    %v5952 = vpack.c.b16 %v5716, %v5712
    %v5953 = vpack.c.b16 %v5717, %v5713
    %v5954 = vpack.c.b16 %v5722, %v5718
    %v5955 = vpack.c.b16 %v5723, %v5719
    %v5956 = vpack.c.b16 %v5724, %v5720
    %v5957 = vpack.c.b16 %v5725, %v5721
    %v5958 = vpack.c.b16 %v5730, %v5726
    %v5959 = vpack.c.b16 %v5731, %v5727
    %v5960 = vpack.c.b16 %v5732, %v5728
    %v5961 = vpack.c.b16 %v5733, %v5729
    %v5962 = vpack.c.b16 %v5738, %v5734
    %v5963 = vpack.c.b16 %v5739, %v5735
    %v5964 = vpack.c.b16 %v5740, %v5736
    %v5965 = vpack.c.b16 %v5741, %v5737
    %6190 = vmatprep.subr.bf16.mxu0 %v5743
    %6191 = vmatpush1.bf16.msra.mxu0 %v5742
    %6192 = vmatprep.subr.bf16.mxu0 %v5747
    %6193 = vmatpush1.bf16.msra.mxu0 %v5746
    %6194 = vmatprep.subr.bf16.mxu0 %v5751
    %6195 = vmatpush1.bf16.msra.mxu0 %v5750
    %6196 = vmatprep.subr.bf16.mxu0 %v5755
    %6197 = vmatpush1.bf16.msra.mxu0 %v5754
    %6198 = vmatprep.subr.bf16.mxu0 %v5759
    %6199 = vmatpush1.bf16.msra.mxu0 %v5758
    %6200 = vmatprep.subr.bf16.mxu0 %v5763
    %6201 = vmatpush1.bf16.msra.mxu0 %v5762
    %6202 = vmatprep.subr.bf16.mxu0 %v5767
    %6203 = vmatpush1.bf16.msra.mxu0 %v5766
    %6204 = vmatprep.subr.bf16.mxu0 %v5771
    %6205 = vmatpush1.bf16.msra.mxu0 %v5770
    %6206 = vmatprep.subr.bf16.mxu0 %v5775
    %6207 = vmatpush1.bf16.msra.mxu0 %v5774
    %6208 = vmatprep.subr.bf16.mxu0 %v5779
    %6209 = vmatpush1.bf16.msra.mxu0 %v5778
    %6210 = vmatprep.subr.bf16.mxu0 %v5783
    %6211 = vmatpush1.bf16.msra.mxu0 %v5782
    %6212 = vmatprep.subr.bf16.mxu0 %v5787
    %6213 = vmatpush1.bf16.msra.mxu0 %v5786
    %6214 = vmatprep.subr.bf16.mxu0 %v5791
    %6215 = vmatpush1.bf16.msra.mxu0 %v5790
    %6216 = vmatprep.subr.bf16.mxu0 %v5795
    %6217 = vmatpush1.bf16.msra.mxu0 %v5794
    %6218 = vmatprep.subr.bf16.mxu0 %v5799
    %6219 = vmatpush1.bf16.msra.mxu0 %v5798
    %6220 = vmatprep.subr.bf16.mxu0 %v5803
    %6221 = vmatpush1.bf16.msra.mxu0 %v5802
    %6222 = vmatprep.mubr.bf16.mxu0 %v4840
    %6223 = vmatmul.mubr.bf16.gmra.mrb[0].mxu0 %v4839
    %v6224 = vpop.f32.mrb[0].mxu0
    %v6225 = vadd.f32 0.0, %v6224
    %v6226 = vpop.f32.mrb[0].mxu0
    %v6227 = vadd.f32 0.0, %v6226
    %v6228 = vpop.f32.mrb[0].mxu0
    %v6229 = vpop.f32.mrb[0].mxu0
    %6230 = vdwg.mxu0
    %6231 = vmatprep.subr.bf16.mxu0 %v5807
    %6232 = vmatpush1.bf16.msra.mxu0 %v5806
    %6233 = vmatprep.subr.bf16.mxu0 %v5811
    %6234 = vmatpush1.bf16.msra.mxu0 %v5810
    %6235 = vmatprep.subr.bf16.mxu0 %v5815
    %6236 = vmatpush1.bf16.msra.mxu0 %v5814
    %6237 = vmatprep.subr.bf16.mxu0 %v5819
    %6238 = vmatpush1.bf16.msra.mxu0 %v5818
    %6239 = vmatprep.subr.bf16.mxu0 %v5823
    %6240 = vmatpush1.bf16.msra.mxu0 %v5822
    %6241 = vmatprep.subr.bf16.mxu0 %v5827
    %6242 = vmatpush1.bf16.msra.mxu0 %v5826
    %6243 = vmatprep.subr.bf16.mxu0 %v5831
    %6244 = vmatpush1.bf16.msra.mxu0 %v5830
    %6245 = vmatprep.subr.bf16.mxu0 %v5835
    %6246 = vmatpush1.bf16.msra.mxu0 %v5834
    %6247 = vmatprep.subr.bf16.mxu0 %v5839
    %6248 = vmatpush1.bf16.msra.mxu0 %v5838
    %6249 = vmatprep.subr.bf16.mxu0 %v5843
    %6250 = vmatpush1.bf16.msra.mxu0 %v5842
    %6251 = vmatprep.subr.bf16.mxu0 %v5847
    %6252 = vmatpush1.bf16.msra.mxu0 %v5846
    %6253 = vmatprep.subr.bf16.mxu0 %v5851
    %6254 = vmatpush1.bf16.msra.mxu0 %v5850
    %6255 = vmatprep.subr.bf16.mxu0 %v5855
    %6256 = vmatpush1.bf16.msra.mxu0 %v5854
    %6257 = vmatprep.subr.bf16.mxu0 %v5859
    %6258 = vmatpush1.bf16.msra.mxu0 %v5858
    %6259 = vmatprep.subr.bf16.mxu0 %v5863
    %6260 = vmatpush1.bf16.msra.mxu0 %v5862
    %6261 = vmatprep.subr.bf16.mxu0 %v5867
    %6262 = vmatpush1.bf16.msra.mxu0 %v5866
    %6263 = vmatprep.mubr.bf16.mxu0 %v4842
    %6264 = vmatmul.mubr.bf16.gmra.mrb[0].mxu0 %v4841
    %v6265 = vpop.f32.mrb[0].mxu0
    %v6266 = vadd.f32 %v6225, %v6265
    %v6267 = vpop.f32.mrb[0].mxu0
    %v6268 = vadd.f32 %v6227, %v6267
    %v6269 = vpop.f32.mrb[0].mxu0
    %v6270 = vpop.f32.mrb[0].mxu0
    %6271 = vdwg.mxu0
    %6272 = vmatprep.subr.bf16.mxu0 %v5871
    %6273 = vmatpush1.bf16.msra.mxu0 %v5870
    %6274 = vmatprep.subr.bf16.mxu0 %v5875
    %6275 = vmatpush1.bf16.msra.mxu0 %v5874
    %6276 = vmatprep.subr.bf16.mxu0 %v5879
    %6277 = vmatpush1.bf16.msra.mxu0 %v5878
    %6278 = vmatprep.subr.bf16.mxu0 %v5883
    %6279 = vmatpush1.bf16.msra.mxu0 %v5882
    %6280 = vmatprep.subr.bf16.mxu0 %v5887
    %6281 = vmatpush1.bf16.msra.mxu0 %v5886
    %6282 = vmatprep.subr.bf16.mxu0 %v5891
    %6283 = vmatpush1.bf16.msra.mxu0 %v5890
    %6284 = vmatprep.subr.bf16.mxu0 %v5895
    %6285 = vmatpush1.bf16.msra.mxu0 %v5894
    %6286 = vmatprep.subr.bf16.mxu0 %v5899
    %6287 = vmatpush1.bf16.msra.mxu0 %v5898
    %6288 = vmatprep.subr.bf16.mxu0 %v5903
    %6289 = vmatpush1.bf16.msra.mxu0 %v5902
    %6290 = vmatprep.subr.bf16.mxu0 %v5907
    %6291 = vmatpush1.bf16.msra.mxu0 %v5906
    %6292 = vmatprep.subr.bf16.mxu0 %v5911
    %6293 = vmatpush1.bf16.msra.mxu0 %v5910
    %6294 = vmatprep.subr.bf16.mxu0 %v5915
    %6295 = vmatpush1.bf16.msra.mxu0 %v5914
    %6296 = vmatprep.subr.bf16.mxu0 %v5919
    %6297 = vmatpush1.bf16.msra.mxu0 %v5918
    %6298 = vmatprep.subr.bf16.mxu0 %v5923
    %6299 = vmatpush1.bf16.msra.mxu0 %v5922
    %6300 = vmatprep.subr.bf16.mxu0 %v5927
    %6301 = vmatpush1.bf16.msra.mxu0 %v5926
    %6302 = vmatprep.subr.bf16.mxu0 %v5931
    %6303 = vmatpush1.bf16.msra.mxu0 %v5930
    %6304 = vmatprep.mubr.bf16.mxu0 %v4844
    %6305 = vmatmul.mubr.bf16.gmra.mrb[0].mxu0 %v4843
    %v6306 = vpop.f32.mrb[0].mxu0
    %v6307 = vadd.f32 %v6266, %v6306
    %v6308 = vpop.f32.mrb[0].mxu0
    %v6309 = vadd.f32 %v6268, %v6308
    %v6310 = vpop.f32.mrb[0].mxu0
    %v6311 = vpop.f32.mrb[0].mxu0
    %6312 = vdwg.mxu0
    %6313 = vmatprep.subr.bf16.mxu0 %v5935
    %6314 = vmatpush1.bf16.msra.mxu0 %v5934
    %6315 = vmatprep.subr.bf16.mxu0 %v5939
    %6316 = vmatpush1.bf16.msra.mxu0 %v5938
    %6317 = vmatprep.subr.bf16.mxu0 %v5943
    %6318 = vmatpush1.bf16.msra.mxu0 %v5942
    %6319 = vmatprep.subr.bf16.mxu0 %v5947
    %6320 = vmatpush1.bf16.msra.mxu0 %v5946
    %6321 = vmatprep.subr.bf16.mxu0 %v5951
    %6322 = vmatpush1.bf16.msra.mxu0 %v5950
    %6323 = vmatprep.subr.bf16.mxu0 %v5955
    %6324 = vmatpush1.bf16.msra.mxu0 %v5954
    %6325 = vmatprep.subr.bf16.mxu0 %v5959
    %6326 = vmatpush1.bf16.msra.mxu0 %v5958
    %6327 = vmatprep.subr.bf16.mxu0 %v5963
    %6328 = vmatpush1.bf16.msra.mxu0 %v5962
    %6329 = vmatprep.subr.bf16.mxu0 0
    %6330 = vmatpush1.bf16.msra.mxu0 0
    %6331 = vmatprep.subr.bf16.mxu0 0
    %6332 = vmatpush1.bf16.msra.mxu0 0
    %6333 = vmatprep.subr.bf16.mxu0 0
    %6334 = vmatpush1.bf16.msra.mxu0 0
    %6335 = vmatprep.subr.bf16.mxu0 0
    %6336 = vmatpush1.bf16.msra.mxu0 0
    %6337 = vmatprep.subr.bf16.mxu0 0
    %6338 = vmatpush1.bf16.msra.mxu0 0
    %6339 = vmatprep.subr.bf16.mxu0 0
    %6340 = vmatpush1.bf16.msra.mxu0 0
    %6341 = vmatprep.subr.bf16.mxu0 0
    %6342 = vmatpush1.bf16.msra.mxu0 0
    %6343 = vmatprep.subr.bf16.mxu0 0
    %6344 = vmatpush1.bf16.msra.mxu0 0
    %6345 = vmatprep.mubr.bf16.mxu0 0
    %6346 = vmatmul.mubr.bf16.gmra.mrb[0].mxu0 %v4845
    %v6347 = vpop.f32.mrb[0].mxu0
    %v6348 = vadd.f32 %v6307, %v6347
    %v6349 = vpop.f32.mrb[0].mxu0
    %v6350 = vadd.f32 %v6309, %v6349
    %v6351 = vpop.f32.mrb[0].mxu0
    %v6352 = vpop.f32.mrb[0].mxu0
    %6353 = vdwg.mxu0
    %6354 = vmatprep.subr.bf16.mxu0 %v5745
    %6355 = vmatpush1.bf16.msra.mxu0 %v5744
    %6356 = vmatprep.subr.bf16.mxu0 %v5749
    %6357 = vmatpush1.bf16.msra.mxu0 %v5748
    %6358 = vmatprep.subr.bf16.mxu0 %v5753
    %6359 = vmatpush1.bf16.msra.mxu0 %v5752
    %6360 = vmatprep.subr.bf16.mxu0 %v5757
    %6361 = vmatpush1.bf16.msra.mxu0 %v5756
    %6362 = vmatprep.subr.bf16.mxu0 %v5761
    %6363 = vmatpush1.bf16.msra.mxu0 %v5760
    %6364 = vmatprep.subr.bf16.mxu0 %v5765
    %6365 = vmatpush1.bf16.msra.mxu0 %v5764
    %6366 = vmatprep.subr.bf16.mxu0 %v5769
    %6367 = vmatpush1.bf16.msra.mxu0 %v5768
    %6368 = vmatprep.subr.bf16.mxu0 %v5773
    %6369 = vmatpush1.bf16.msra.mxu0 %v5772
    %6370 = vmatprep.subr.bf16.mxu0 %v5777
    %6371 = vmatpush1.bf16.msra.mxu0 %v5776
    %6372 = vmatprep.subr.bf16.mxu0 %v5781
    %6373 = vmatpush1.bf16.msra.mxu0 %v5780
    %6374 = vmatprep.subr.bf16.mxu0 %v5785
    %6375 = vmatpush1.bf16.msra.mxu0 %v5784
    %6376 = vmatprep.subr.bf16.mxu0 %v5789
    %6377 = vmatpush1.bf16.msra.mxu0 %v5788
    %6378 = vmatprep.subr.bf16.mxu0 %v5793
    %6379 = vmatpush1.bf16.msra.mxu0 %v5792
    %6380 = vmatprep.subr.bf16.mxu0 %v5797
    %6381 = vmatpush1.bf16.msra.mxu0 %v5796
    %6382 = vmatprep.subr.bf16.mxu0 %v5801
    %6383 = vmatpush1.bf16.msra.mxu0 %v5800
    %6384 = vmatprep.subr.bf16.mxu0 %v5805
    %6385 = vmatpush1.bf16.msra.mxu0 %v5804
    %6386 = vmatprep.mubr.bf16.mxu0 %v4840
    %6387 = vmatmul.mubr.bf16.gmra.mrb[0].mxu0 %v4839
    %v6388 = vpop.f32.mrb[0].mxu0
    %v6389 = vadd.f32 0.0, %v6388
    %v6390 = vpop.f32.mrb[0].mxu0
    %v6391 = vadd.f32 0.0, %v6390
    %v6392 = vpop.f32.mrb[0].mxu0
    %v6393 = vpop.f32.mrb[0].mxu0
    %6394 = vdwg.mxu0
    %6395 = vmatprep.subr.bf16.mxu0 %v5809
    %6396 = vmatpush1.bf16.msra.mxu0 %v5808
    %6397 = vmatprep.subr.bf16.mxu0 %v5813
    %6398 = vmatpush1.bf16.msra.mxu0 %v5812
    %6399 = vmatprep.subr.bf16.mxu0 %v5817
    %6400 = vmatpush1.bf16.msra.mxu0 %v5816
    %6401 = vmatprep.subr.bf16.mxu0 %v5821
    %6402 = vmatpush1.bf16.msra.mxu0 %v5820
    %6403 = vmatprep.subr.bf16.mxu0 %v5825
    %6404 = vmatpush1.bf16.msra.mxu0 %v5824
    %6405 = vmatprep.subr.bf16.mxu0 %v5829
    %6406 = vmatpush1.bf16.msra.mxu0 %v5828
    %6407 = vmatprep.subr.bf16.mxu0 %v5833
    %6408 = vmatpush1.bf16.msra.mxu0 %v5832
    %6409 = vmatprep.subr.bf16.mxu0 %v5837
    %6410 = vmatpush1.bf16.msra.mxu0 %v5836
    %6411 = vmatprep.subr.bf16.mxu0 %v5841
    %6412 = vmatpush1.bf16.msra.mxu0 %v5840
    %6413 = vmatprep.subr.bf16.mxu0 %v5845
    %6414 = vmatpush1.bf16.msra.mxu0 %v5844
    %6415 = vmatprep.subr.bf16.mxu0 %v5849
    %6416 = vmatpush1.bf16.msra.mxu0 %v5848
    %6417 = vmatprep.subr.bf16.mxu0 %v5853
    %6418 = vmatpush1.bf16.msra.mxu0 %v5852
    %6419 = vmatprep.subr.bf16.mxu0 %v5857
    %6420 = vmatpush1.bf16.msra.mxu0 %v5856
    %6421 = vmatprep.subr.bf16.mxu0 %v5861
    %6422 = vmatpush1.bf16.msra.mxu0 %v5860
    %6423 = vmatprep.subr.bf16.mxu0 %v5865
    %6424 = vmatpush1.bf16.msra.mxu0 %v5864
    %6425 = vmatprep.subr.bf16.mxu0 %v5869
    %6426 = vmatpush1.bf16.msra.mxu0 %v5868
    %6427 = vmatprep.mubr.bf16.mxu0 %v4842
    %6428 = vmatmul.mubr.bf16.gmra.mrb[0].mxu0 %v4841
    %v6429 = vpop.f32.mrb[0].mxu0
    %v6430 = vadd.f32 %v6389, %v6429
    %v6431 = vpop.f32.mrb[0].mxu0
    %v6432 = vadd.f32 %v6391, %v6431
    %v6433 = vpop.f32.mrb[0].mxu0
    %v6434 = vpop.f32.mrb[0].mxu0
    %6435 = vdwg.mxu0
    %6436 = vmatprep.subr.bf16.mxu0 %v5873
    %6437 = vmatpush1.bf16.msra.mxu0 %v5872
    %6438 = vmatprep.subr.bf16.mxu0 %v5877
    %6439 = vmatpush1.bf16.msra.mxu0 %v5876
    %6440 = vmatprep.subr.bf16.mxu0 %v5881
    %6441 = vmatpush1.bf16.msra.mxu0 %v5880
    %6442 = vmatprep.subr.bf16.mxu0 %v5885
    %6443 = vmatpush1.bf16.msra.mxu0 %v5884
    %6444 = vmatprep.subr.bf16.mxu0 %v5889
    %6445 = vmatpush1.bf16.msra.mxu0 %v5888
    %6446 = vmatprep.subr.bf16.mxu0 %v5893
    %6447 = vmatpush1.bf16.msra.mxu0 %v5892
    %6448 = vmatprep.subr.bf16.mxu0 %v5897
    %6449 = vmatpush1.bf16.msra.mxu0 %v5896
    %6450 = vmatprep.subr.bf16.mxu0 %v5901
    %6451 = vmatpush1.bf16.msra.mxu0 %v5900
    %6452 = vmatprep.subr.bf16.mxu0 %v5905
    %6453 = vmatpush1.bf16.msra.mxu0 %v5904
    %6454 = vmatprep.subr.bf16.mxu0 %v5909
    %6455 = vmatpush1.bf16.msra.mxu0 %v5908
    %6456 = vmatprep.subr.bf16.mxu0 %v5913
    %6457 = vmatpush1.bf16.msra.mxu0 %v5912
    %6458 = vmatprep.subr.bf16.mxu0 %v5917
    %6459 = vmatpush1.bf16.msra.mxu0 %v5916
    %6460 = vmatprep.subr.bf16.mxu0 %v5921
    %6461 = vmatpush1.bf16.msra.mxu0 %v5920
    %6462 = vmatprep.subr.bf16.mxu0 %v5925
    %6463 = vmatpush1.bf16.msra.mxu0 %v5924
    %6464 = vmatprep.subr.bf16.mxu0 %v5929
    %6465 = vmatpush1.bf16.msra.mxu0 %v5928
    %6466 = vmatprep.subr.bf16.mxu0 %v5933
    %6467 = vmatpush1.bf16.msra.mxu0 %v5932
    %6468 = vmatprep.mubr.bf16.mxu0 %v4844
    %6469 = vmatmul.mubr.bf16.gmra.mrb[0].mxu0 %v4843
    %v6470 = vpop.f32.mrb[0].mxu0
    %v6471 = vadd.f32 %v6430, %v6470
    %v6472 = vpop.f32.mrb[0].mxu0
    %v6473 = vadd.f32 %v6432, %v6472
    %v6474 = vpop.f32.mrb[0].mxu0
    %v6475 = vpop.f32.mrb[0].mxu0
    %6476 = vdwg.mxu0
    %6477 = vmatprep.subr.bf16.mxu0 %v5937
    %6478 = vmatpush1.bf16.msra.mxu0 %v5936
    %6479 = vmatprep.subr.bf16.mxu0 %v5941
    %6480 = vmatpush1.bf16.msra.mxu0 %v5940
    %6481 = vmatprep.subr.bf16.mxu0 %v5945
    %6482 = vmatpush1.bf16.msra.mxu0 %v5944
    %6483 = vmatprep.subr.bf16.mxu0 %v5949
    %6484 = vmatpush1.bf16.msra.mxu0 %v5948
    %6485 = vmatprep.subr.bf16.mxu0 %v5953
    %6486 = vmatpush1.bf16.msra.mxu0 %v5952
    %6487 = vmatprep.subr.bf16.mxu0 %v5957
    %6488 = vmatpush1.bf16.msra.mxu0 %v5956
    %6489 = vmatprep.subr.bf16.mxu0 %v5961
    %6490 = vmatpush1.bf16.msra.mxu0 %v5960
    %6491 = vmatprep.subr.bf16.mxu0 %v5965
    %6492 = vmatpush1.bf16.msra.mxu0 %v5964
    %6493 = vmatprep.subr.bf16.mxu0 0
    %6494 = vmatpush1.bf16.msra.mxu0 0
    %6495 = vmatprep.subr.bf16.mxu0 0
    %6496 = vmatpush1.bf16.msra.mxu0 0
    %6497 = vmatprep.subr.bf16.mxu0 0
    %6498 = vmatpush1.bf16.msra.mxu0 0
    %6499 = vmatprep.subr.bf16.mxu0 0
    %6500 = vmatpush1.bf16.msra.mxu0 0
    %6501 = vmatprep.subr.bf16.mxu0 0
    %6502 = vmatpush1.bf16.msra.mxu0 0
    %6503 = vmatprep.subr.bf16.mxu0 0
    %6504 = vmatpush1.bf16.msra.mxu0 0
    %6505 = vmatprep.subr.bf16.mxu0 0
    %6506 = vmatpush1.bf16.msra.mxu0 0
    %6507 = vmatprep.subr.bf16.mxu0 0
    %6508 = vmatpush1.bf16.msra.mxu0 0
    %6509 = vmatprep.mubr.bf16.mxu0 0
    %6510 = vmatmul.mubr.bf16.gmra.mrb[0].mxu0 %v4845
    %v6511 = vpop.f32.mrb[0].mxu0
    %v6512 = vadd.f32 %v6471, %v6511
    %v6513 = vpop.f32.mrb[0].mxu0
    %v6514 = vadd.f32 %v6473, %v6513
    %v6515 = vpop.f32.mrb[0].mxu0
    %v6516 = vpop.f32.mrb[0].mxu0
    %6517 = vdwg.mxu0
    %v6518 = vmax.f32 %v6348, %v6350
    %v6519 = vmax.f32 %v6512, %v6514
    %v6520 = vmax.f32 %v6518, %v6519
    %v6521 = vld [vmem:[#allocation9] sm:$0x1]
    %v6523 = vlaneseq
    %v6524 = vshrl.u32 %v6523, 7
    %v6525 = vsub.s32 0, %v6524
    %v6526 = vrot.slane %v6521, %v6525
    %v6528 = vadd.f32 %v6520, %v6526
    %v6529 = vmax.f32 %v6528, 0.0
    %v6530 = vpack.c.bf16 %v6529, %v6529
    %v6531 = vld [vmem:[#allocation6] sm:$0xf]
    %v6532 = vld [vmem:[#allocation6 + $0x4] sm:$0xf]
    %v6533 = vld [vmem:[#allocation6 + $0x8] sm:$0xf]
    %v6534 = vld [vmem:[#allocation6 + $0xc] sm:$0xf]
    %v6535 = vld [vmem:[#allocation6 + $0x10] sm:$0xf]
    %v6536 = vld [vmem:[#allocation6 + $0x14] sm:$0xf]
    %v6537 = vld [vmem:[#allocation6 + $0x18] sm:$0xf]
    %v6538 = vld [vmem:[#allocation6 + $0x1c] sm:$0xf]
    %v6539 = vld [vmem:[#allocation6 + $0x20] sm:$0xf]
    %v6540 = vld [vmem:[#allocation6 + $0x24] sm:$0xf]
    %v6541 = vld [vmem:[#allocation6 + $0x28] sm:$0xf]
    %v6542 = vld [vmem:[#allocation6 + $0x2c] sm:$0xf]
    %v6543 = vld [vmem:[#allocation6 + $0x30] sm:$0xf]
    %v6544 = vld [vmem:[#allocation6 + $0x34] sm:$0xf]
    %v6545 = vld [vmem:[#allocation6 + $0x38] sm:$0xf]
    %v6546 = vld [vmem:[#allocation6 + $0x3c] sm:$0xf]
    %v6547 = vld [vmem:[#allocation10] sm:$0x1]
    %v6549 = vlaneseq
    %v6550 = vshrl.u32 %v6549, 7
    %v6551 = vsub.s32 0, %v6550
    %v6552 = vrot.slane %v6547, %v6551
    %v6570 = vunpack.c.l.b16 %v6531
    %v6571 = vunpack.c.l.b16 %v6532
    %v6572 = vunpack.c.l.b16 %v6533
    %v6573 = vunpack.c.l.b16 %v6534
    %v6574 = vunpack.c.l.b16 %v6535
    %v6575 = vunpack.c.l.b16 %v6536
    %v6576 = vunpack.c.l.b16 %v6537
    %v6577 = vunpack.c.l.b16 %v6538
    %v6578 = vunpack.c.l.b16 %v6539
    %v6579 = vunpack.c.l.b16 %v6540
    %v6580 = vunpack.c.l.b16 %v6541
    %v6581 = vunpack.c.l.b16 %v6542
    %v6582 = vunpack.c.l.b16 %v6543
    %v6583 = vunpack.c.l.b16 %v6544
    %v6584 = vunpack.c.l.b16 %v6545
    %v6585 = vunpack.c.l.b16 %v6546
    %v6586 = vpack.c.b16 %v6571, %v6570
    %v6587 = vpack.c.b16 %v6573, %v6572
    %v6588 = vpack.c.b16 %v6575, %v6574
    %v6589 = vpack.c.b16 %v6577, %v6576
    %v6590 = vpack.c.b16 %v6579, %v6578
    %v6591 = vpack.c.b16 %v6581, %v6580
    %v6592 = vpack.c.b16 %v6583, %v6582
    %v6593 = vpack.c.b16 %v6585, %v6584
    %6602 = vmatprep.subr.bf16.mxu0 0
    %6603 = vmatpush1.bf16.msra.mxu0 %v6586
    %6604 = vmatprep.subr.bf16.mxu0 0
    %6605 = vmatpush1.bf16.msra.mxu0 %v6587
    %6606 = vmatprep.subr.bf16.mxu0 0
    %6607 = vmatpush1.bf16.msra.mxu0 %v6588
    %6608 = vmatprep.subr.bf16.mxu0 0
    %6609 = vmatpush1.bf16.msra.mxu0 %v6589
    %6610 = vmatprep.subr.bf16.mxu0 0
    %6611 = vmatpush1.bf16.msra.mxu0 %v6590
    %6612 = vmatprep.subr.bf16.mxu0 0
    %6613 = vmatpush1.bf16.msra.mxu0 %v6591
    %6614 = vmatprep.subr.bf16.mxu0 0
    %6615 = vmatpush1.bf16.msra.mxu0 %v6592
    %6616 = vmatprep.subr.bf16.mxu0 0
    %6617 = vmatpush1.bf16.msra.mxu0 %v6593
    %6618 = vmatprep.subr.bf16.mxu0 0
    %6619 = vmatpush1.bf16.msra.mxu0 0
    %6620 = vmatprep.subr.bf16.mxu0 0
    %6621 = vmatpush1.bf16.msra.mxu0 0
    %6622 = vmatprep.subr.bf16.mxu0 0
    %6623 = vmatpush1.bf16.msra.mxu0 0
    %6624 = vmatprep.subr.bf16.mxu0 0
    %6625 = vmatpush1.bf16.msra.mxu0 0
    %6626 = vmatprep.subr.bf16.mxu0 0
    %6627 = vmatpush1.bf16.msra.mxu0 0
    %6628 = vmatprep.subr.bf16.mxu0 0
    %6629 = vmatpush1.bf16.msra.mxu0 0
    %6630 = vmatprep.subr.bf16.mxu0 0
    %6631 = vmatpush1.bf16.msra.mxu0 0
    %6632 = vmatprep.subr.bf16.mxu0 0
    %6633 = vmatpush1.bf16.msra.mxu0 0
    %6634 = vmatprep.mubr.bf16.mxu0 0
    %6635 = vmatmul.mubr.bf16.gmra.mrb[0].mxu0 %v6530
    %v6636 = vpop.f32.mrb[0].mxu0
    %v6637 = vadd.f32 %v6552, %v6636
    %v6638 = vpop.f32.mrb[0].mxu0
    %v6639 = vpop.f32.mrb[0].mxu0
    %v6640 = vpop.f32.mrb[0].mxu0
    %6641 = vdwg.mxu0
    %v6642 = vmax.f32 %v6637, 0.0
    %v6643 = vpack.c.bf16 %v6642, %v6642
    %v6644 = vld [vmem:[#allocation7] sm:$0xf]
    %v6645 = vld [vmem:[#allocation7 + $0x4] sm:$0xf]
    %v6646 = vld [vmem:[#allocation7 + $0x8] sm:$0xf]
    %v6647 = vld [vmem:[#allocation7 + $0xc] sm:$0xf]
    %v6648 = vld [vmem:[#allocation7 + $0x10] sm:$0xf]
    %v6649 = vld [vmem:[#allocation7 + $0x14] sm:$0xf]
    %v6650 = vld [vmem:[#allocation7 + $0x18] sm:$0xf]
    %v6651 = vld [vmem:[#allocation7 + $0x1c] sm:$0xf]
    %v6652 = vld [vmem:[#allocation7 + $0x20] sm:$0xf]
    %v6653 = vld [vmem:[#allocation7 + $0x24] sm:$0xf]
    %v6654 = vld [vmem:[#allocation7 + $0x28] sm:$0xf]
    %v6655 = vld [vmem:[#allocation7 + $0x2c] sm:$0xf]
    %v6656 = vld [vmem:[#allocation7 + $0x30] sm:$0xf]
    %v6657 = vld [vmem:[#allocation7 + $0x34] sm:$0xf]
    %v6658 = vld [vmem:[#allocation7 + $0x38] sm:$0xf]
    %v6659 = vld [vmem:[#allocation7 + $0x3c] sm:$0xf]
    %v6660 = vld [vmem:[#allocation12] sm:$0x1]
    %v6662 = vlaneseq
    %v6663 = vshrl.u32 %v6662, 7
    %v6664 = vsub.s32 0, %v6663
    %v6665 = vrot.slane %v6660, %v6664
    %v6683 = vunpack.c.l.b16 %v6644
    %v6684 = vunpack.c.l.b16 %v6645
    %v6685 = vunpack.c.l.b16 %v6646
    %v6686 = vunpack.c.l.b16 %v6647
    %v6687 = vunpack.c.l.b16 %v6648
    %v6688 = vunpack.c.l.b16 %v6649
    %v6689 = vunpack.c.l.b16 %v6650
    %v6690 = vunpack.c.l.b16 %v6651
    %v6691 = vunpack.c.l.b16 %v6652
    %v6692 = vunpack.c.l.b16 %v6653
    %v6693 = vunpack.c.l.b16 %v6654
    %v6694 = vunpack.c.l.b16 %v6655
    %v6695 = vunpack.c.l.b16 %v6656
    %v6696 = vunpack.c.l.b16 %v6657
    %v6697 = vunpack.c.l.b16 %v6658
    %v6698 = vunpack.c.l.b16 %v6659
    %v6699 = vpack.c.b16 %v6684, %v6683
    %v6700 = vpack.c.b16 %v6686, %v6685
    %v6701 = vpack.c.b16 %v6688, %v6687
    %v6702 = vpack.c.b16 %v6690, %v6689
    %v6703 = vpack.c.b16 %v6692, %v6691
    %v6704 = vpack.c.b16 %v6694, %v6693
    %v6705 = vpack.c.b16 %v6696, %v6695
    %v6706 = vpack.c.b16 %v6698, %v6697
    %6715 = vmatprep.subr.bf16.mxu0 0
    %6716 = vmatpush1.bf16.msra.mxu0 %v6699
    %6717 = vmatprep.subr.bf16.mxu0 0
    %6718 = vmatpush1.bf16.msra.mxu0 %v6700
    %6719 = vmatprep.subr.bf16.mxu0 0
    %6720 = vmatpush1.bf16.msra.mxu0 %v6701
    %6721 = vmatprep.subr.bf16.mxu0 0
    %6722 = vmatpush1.bf16.msra.mxu0 %v6702
    %6723 = vmatprep.subr.bf16.mxu0 0
    %6724 = vmatpush1.bf16.msra.mxu0 %v6703
    %6725 = vmatprep.subr.bf16.mxu0 0
    %6726 = vmatpush1.bf16.msra.mxu0 %v6704
    %6727 = vmatprep.subr.bf16.mxu0 0
    %6728 = vmatpush1.bf16.msra.mxu0 %v6705
    %6729 = vmatprep.subr.bf16.mxu0 0
    %6730 = vmatpush1.bf16.msra.mxu0 %v6706
    %6731 = vmatprep.subr.bf16.mxu0 0
    %6732 = vmatpush1.bf16.msra.mxu0 0
    %6733 = vmatprep.subr.bf16.mxu0 0
    %6734 = vmatpush1.bf16.msra.mxu0 0
    %6735 = vmatprep.subr.bf16.mxu0 0
    %6736 = vmatpush1.bf16.msra.mxu0 0
    %6737 = vmatprep.subr.bf16.mxu0 0
    %6738 = vmatpush1.bf16.msra.mxu0 0
    %6739 = vmatprep.subr.bf16.mxu0 0
    %6740 = vmatpush1.bf16.msra.mxu0 0
    %6741 = vmatprep.subr.bf16.mxu0 0
    %6742 = vmatpush1.bf16.msra.mxu0 0
    %6743 = vmatprep.subr.bf16.mxu0 0
    %6744 = vmatpush1.bf16.msra.mxu0 0
    %6745 = vmatprep.subr.bf16.mxu0 0
    %6746 = vmatpush1.bf16.msra.mxu0 0
    %6747 = vmatprep.mubr.bf16.mxu0 0
    %6748 = vmatmul.mubr.bf16.gmra.mrb[0].mxu0 %v6643
    %v6749 = vpop.f32.mrb[0].mxu0
    %v6750 = vadd.f32 %v6665, %v6749
    %v6751 = vpop.f32.mrb[0].mxu0
    %v6752 = vpop.f32.mrb[0].mxu0
    %v6753 = vpop.f32.mrb[0].mxu0
    %6754 = vdwg.mxu0
    %6755 = vst [vmem:[%s8] sm:$0xff] %v6750
    // Predicated region
    $region62: #{simple_cnn_forward.1} parent=1 // pred_check
      _
    $region63: #{simple_cnn_forward.1} parent=1 // pred_check_branch
      %6757 = sbr.rel (0) target = $region65
    $region64: #{simple_cnn_forward.1} parent=1 // pred_region
      _
    $region65: #{simple_cnn_forward.1} parent=1 // pred_fallthru
      _
    // Predicated region
    $region66: #{simple_cnn_forward.1} parent=1 // pred_check
      _
    $region67: #{simple_cnn_forward.1} parent=1 // pred_check_branch
      %6759 = sbr.rel (0) target = $region69
    $region68: #{simple_cnn_forward.1} parent=1 // pred_region
      _
    $region69: #{simple_cnn_forward.1} parent=1 // pred_fallthru
      _
    %6760 = vsyncpa [#allocation3], 1
    %6761 = vsyncpa [#allocation5], 1
    %6762 = vsyncpa [#allocation8], 1
    %6763 = vsyncpa [#allocation11], 1

</llo_original>
